<compile_context>
chip_gen: v6e
topology: v6e:2x2x1
jax: 0.10.0
libtpu: 0.0.40
codegen_flags: <defaults>
</compile_context>

<pallas_src>
import functools

import jax
import jax.numpy as jnp
import numpy as np
from jax.experimental import pallas as pl
from jax.experimental.pallas import tpu as pltpu

_BN_EPS = 1e-5
_K = 3       # conv kernel size
_CPAD = 128  # lane-dense channel padding


# ----------------------------------------------------------------------------
# Trace-time constant builders (numpy on static shapes -> zero runtime cost)
# ----------------------------------------------------------------------------
def _stage_dims(h, w):
    """Spatial dims after conv3x3 (VALID) + AvgPool2d(2) (floor mode)."""
    oh, ow = h - (_K - 1), w - (_K - 1)
    return oh // 2, ow // 2


@functools.lru_cache(maxsize=None)
def _selection_matrices(h, w):
    """Per-sample pooled-patch selection matrices (batch-invariant).

    G[t] @ act == pooled 3x3-patch tap t of a single sample's activation,
    where act has rows ordered (u, v) over (h, w):
      (G[t] @ act)[(i, j), c] = 0.25 * sum_{du,dv in {0,1}} act[2i+kh+du, 2j+kw+dv, c],
    t = kh*3 + kw (matches the tap-major layout of the K-concatenated weights).
    Entries are exactly 0 or 0.25 -> bf16-exact.
    """
    ph, pw = _stage_dims(h, w)
    g = np.zeros((_K * _K, ph * pw, h * w), np.float32)
    for kh in range(_K):
        for kw in range(_K):
            t = kh * _K + kw
            for i in range(ph):
                for j in range(pw):
                    r = i * pw + j
                    for du in range(2):
                        for dv in range(2):
                            u, v = 2 * i + kh + du, 2 * j + kw + dv
                            g[t, r, u * w + v] = 0.25
    return g, ph, pw


# ----------------------------------------------------------------------------
# Stage-1 pooled im2col (one small XLA fusion on the raw network input)
# ----------------------------------------------------------------------------
def _stage1_pooled_patches(x_nhwc):
    """2x2 box *sum* (0.25 folded into w1) + a single stride-2 patch extraction."""
    n, h, w, c = x_nhwc.shape
    ph, pw = _stage_dims(h, w)
    y = (x_nhwc[:, :-1, :-1, :] + x_nhwc[:, 1:, :-1, :]
         + x_nhwc[:, :-1, 1:, :] + x_nhwc[:, 1:, 1:, :])              # (n, h-1, w-1, c)
    cols = [y[:, kh:kh + 2 * ph:2, kw:kw + 2 * pw:2, :]
            for kh in range(_K) for kw in range(_K)]                  # 9 x (n, ph, pw, c)
    p = jnp.concatenate(cols, axis=-1)                                # (n, ph, pw, 9c)
    return p.reshape(n, ph * pw, _K * _K * c), ph, pw


# ----------------------------------------------------------------------------
# In-kernel helpers
# ----------------------------------------------------------------------------
def _relu_bn(zs, gamma, beta):
    """ReLU then training-mode BatchNorm over the WHOLE batch (list of per-sample
    (M, 128) f32 activations).  Two-pass mean-centred variance, biased (1/m)."""
    acts = [jnp.maximum(z, 0.0) for z in zs]
    m = sum(a.shape[0] for a in acts)
    inv_m = 1.0 / m
    s1 = acts[0].sum(axis=0, keepdims=True)
    for a in acts[1:]:
        s1 = s1 + a.sum(axis=0, keepdims=True)
    mu = s1 * inv_m
    devs = [a - mu for a in acts]
    s2 = (devs[0] * devs[0]).sum(axis=0, keepdims=True)
    for d in devs[1:]:
        s2 = s2 + (d * d).sum(axis=0, keepdims=True)
    var = s2 * inv_m
    scale = jax.lax.rsqrt(var + _BN_EPS) * gamma
    return [d * scale + beta for d in devs]


def _pooled_conv(acts, sel_ref, wcat_ref, b_ref):
    """(Conv3x3 + AvgPool2) of a stage, for every sample in the batch.

    Per sample: 9 selection matmuls produce the 9 pooled-patch taps (M, 128); they are
    concatenated along lanes (128-aligned) and hit the MXU once with the K-concatenated
    tap-major (9*128, 128) weight."""
    f32, bf16 = jnp.float32, jnp.bfloat16
    wcat = wcat_ref[...]
    bias = b_ref[...]
    out = []
    for a in acts:
        a_bf = a.astype(bf16)
        taps = [jnp.dot(sel_ref[t], a_bf, preferred_element_type=f32).astype(bf16)
                for t in range(_K * _K)]
        patches = jnp.concatenate(taps, axis=-1)                      # (Mcur, 9*128) bf16
        out.append(jnp.dot(patches, wcat, preferred_element_type=f32) + bias)
    return out


# ----------------------------------------------------------------------------
# The single fused kernel
# ----------------------------------------------------------------------------
def _simple_cnn_kernel(p1_ref, w1_ref, b1_ref, g1_ref, be1_ref,
                       sel2_ref, w2_ref, b2_ref, g2_ref, be2_ref,
                       sel3_ref, w3_ref, b3_ref, g3_ref, be3_ref,
                       wf_ref, bf_ref, out_ref):
    f32, bf16 = jnp.float32, jnp.bfloat16
    n = out_ref.shape[0]

    # ---- stage 1: pooled-conv patch matmul (per sample) + ReLU + batch-wide BN ------
    w1 = w1_ref[...]
    b1 = b1_ref[...]
    z1 = [jnp.dot(p1_ref[b], w1, preferred_element_type=f32) + b1 for b in range(n)]
    a1 = _relu_bn(z1, g1_ref[...], be1_ref[...])          # list of (M1, 128) f32

    # ---- stage 2 ---------------------------------------------------------------------
    z2 = _pooled_conv(a1, sel2_ref, w2_ref, b2_ref)
    a2 = _relu_bn(z2, g2_ref[...], be2_ref[...])          # list of (M2, 128) f32

    # ---- stage 3 ---------------------------------------------------------------------
    z3 = _pooled_conv(a2, sel3_ref, w3_ref, b3_ref)
    a3 = _relu_bn(z3, g3_ref[...], be3_ref[...])          # list of (M3, 128) f32

    # ---- head: AdaptiveAvgPool2d(1) + 1x1 conv ----------------------------------------
    wf = wf_ref[...]
    bf_ = bf_ref[...]
    for b in range(n):
        pooled = jnp.mean(a3[b], axis=0, keepdims=True)               # (1, 128)
        out_ref[b] = (jnp.dot(pooled.astype(bf16), wf,
                              preferred_element_type=f32) + bf_)


# ----------------------------------------------------------------------------
# Wrapper
# ----------------------------------------------------------------------------
@functools.partial(jax.jit, static_argnames=("num_classes",))
def simple_cnn_forward(x_nchw, params, *, num_classes):
    """Forward pass equivalent to SimpleCNN.forward (fresh module -> training-mode BN)."""
    x = jnp.transpose(x_nchw, (0, 2, 3, 1)).astype(jnp.float32)       # NCHW -> NHWC
    n, h, w, c = x.shape

    p1, ph1, pw1 = _stage1_pooled_patches(x)                          # (n, M1, 9c) f32
    p1 = p1.astype(jnp.bfloat16)

    sel2_np, ph2, pw2 = _selection_matrices(ph1, pw1)                 # (9, M2, M1)
    sel3_np, ph3, pw3 = _selection_matrices(ph2, pw2)                 # (9, M3, M2)
    m1, m2, m3 = ph1 * pw1, ph2 * pw2, ph3 * pw3

    args = (p1,
            params["w1"], params["b1"], params["g1"], params["be1"],
            jnp.asarray(sel2_np, dtype=jnp.bfloat16),
            params["w2cat"], params["b2"], params["g2"], params["be2"],
            jnp.asarray(sel3_np, dtype=jnp.bfloat16),
            params["w3cat"], params["b3"], params["g3"], params["be3"],
            params["wf"], params["bf"])

    flops = 2 * n * (m1 * (_K * _K * c) * _CPAD
                     + 9 * m2 * m1 * _CPAD + m2 * (9 * _CPAD) * _CPAD
                     + 9 * m3 * m2 * _CPAD + m3 * (9 * _CPAD) * _CPAD
                     + _CPAD * _CPAD)
    bytes_accessed = int(sum(int(np.prod(a.shape)) * a.dtype.itemsize for a in args)
                         + n * _CPAD * 4)

    vmem = pl.BlockSpec(memory_space=pltpu.MemorySpace.VMEM)
    out = pl.pallas_call(
        _simple_cnn_kernel,
        out_shape=jax.ShapeDtypeStruct((n, 1, _CPAD), jnp.float32),
        in_specs=[vmem] * len(args),
        out_specs=vmem,
        compiler_params=pltpu.CompilerParams(vmem_limit_bytes=32 * 1024 * 1024),
        cost_estimate=pl.CostEstimate(flops=flops, transcendentals=3 * _CPAD,
                                      bytes_accessed=bytes_accessed),
    )(*args)
    # TODO(synk): BatchNorm running_mean/running_var buffer updates (training-mode
    # side effect of the PyTorch forward) are not materialized; outputs unaffected.
    return out[:, 0, :num_classes]


# ----------------------------------------------------------------------------
# Parameter prep: PyTorch layouts -> kernel layouts
# ----------------------------------------------------------------------------
def _prepare_params(raw, num_classes):
    """raw uses PyTorch layouts: conv weights (Cout, Cin, KH, KW), conv biases (Cout,),
    BN gamma/beta (C,).  Produces kernel layouts: tap-major flattened / K-concatenated
    weights, 0.25 pool scale folded into w1, channels zero-padded to 128, bf16 matmul
    operands, f32 bias/BN vectors."""
    f32, bf16 = jnp.float32, jnp.bfloat16

    def vec(v):                       # (C,) -> zero-padded (1, 128) f32
        return jnp.pad(v.astype(f32), (0, _CPAD - v.shape[0])).reshape(1, _CPAD)

    def to_khkwcico(wt):              # (Cout,Cin,KH,KW) -> (KH,KW,Cin,Cout)
        return jnp.transpose(wt, (2, 3, 1, 0))

    def wcat(wt_torch):               # K-concatenated tap-major (9*128, 128) bf16
        wt = to_khkwcico(wt_torch)
        cin, cout = wt.shape[2], wt.shape[3]
        out = jnp.zeros((_K * _K * _CPAD, _CPAD), f32)
        for kh in range(_K):
            for kw in range(_K):
                t = kh * _K + kw
                out = out.at[t * _CPAD:t * _CPAD + cin, :cout].set(wt[kh, kw])
        return out.astype(bf16)

    w1 = to_khkwcico(raw["conv1_w"])                                  # (3,3,cin,32)
    cin1 = w1.shape[2]
    w1 = (0.25 * w1).reshape(_K * _K * cin1, 32)                      # fold pool scale
    wf = jnp.transpose(raw["final_w"].reshape(num_classes, _CPAD), (1, 0))

    return {
        "w1": jnp.pad(w1, ((0, 0), (0, _CPAD - 32))).astype(bf16),
        "b1": vec(raw["conv1_b"]), "g1": vec(raw["bn1_g"]), "be1": vec(raw["bn1_b"]),
        "w2cat": wcat(raw["conv2_w"]),
        "b2": vec(raw["conv2_b"]), "g2": vec(raw["bn2_g"]), "be2": vec(raw["bn2_b"]),
        "w3cat": wcat(raw["conv3_w"]),
        "b3": vec(raw["conv3_b"]), "g3": vec(raw["bn3_g"]), "be3": vec(raw["bn3_b"]),
        "wf": jnp.pad(wf, ((0, 0), (0, _CPAD - num_classes))).astype(bf16),
        "bf": vec(raw["final_b"]),
    }


def _init_params(key, num_input_channels=3, num_classes=1):
    """Deterministic synthetic parameters in PyTorch layouts."""
    ks = jax.random.split(key, 14)
    f32 = jnp.float32

    def conv_w(k, cout, cin, scale):
        return scale * jax.random.normal(k, (cout, cin, _K, _K), f32)

    return {
        "conv1_w": conv_w(ks[0], 32, num_input_channels, 0.10),
        "conv1_b": 0.05 * jax.random.normal(ks[1], (32,), f32),
        "bn1_g": 1.0 + 0.10 * jax.random.normal(ks[2], (32,), f32),
        "bn1_b": 0.05 * jax.random.normal(ks[3], (32,), f32),
        "conv2_w": conv_w(ks[4], 64, 32, 0.05),
        "conv2_b": 0.05 * jax.random.normal(ks[5], (64,), f32),
        "bn2_g": 1.0 + 0.10 * jax.random.normal(ks[6], (64,), f32),
        "bn2_b": 0.05 * jax.random.normal(ks[7], (64,), f32),
        "conv3_w": conv_w(ks[8], 128, 64, 0.03),
        "conv3_b": 0.05 * jax.random.normal(ks[9], (128,), f32),
        "bn3_g": 1.0 + 0.10 * jax.random.normal(ks[10], (128,), f32),
        "bn3_b": 0.05 * jax.random.normal(ks[11], (128,), f32),
        "final_w": 0.05 * jax.random.normal(ks[12], (num_classes, 128, 1, 1), f32),
        "final_b": 0.05 * jax.random.normal(ks[13], (num_classes,), f32),
    }


if __name__ == "__main__":
    key = jax.random.PRNGKey(0)
    kx, kp = jax.random.split(key)
    # 32x32 spatial keeps all three (conv3 -> pool2) stages valid:
    # 32 -> 30 -> 15 -> 13 -> 6 -> 4 -> 2 -> adaptive-avg 1
    x = jax.random.normal(kx, (2, 3, 32, 32), jnp.float32)            # NCHW like PyTorch
    raw = _init_params(kp, num_input_channels=3, num_classes=1)
    params = _prepare_params(raw, num_classes=1)

    out = simple_cnn_forward(x, params, num_classes=1)
    out = jax.block_until_ready(out)
    assert out.shape == (2, 1), out.shape
    assert bool(jnp.all(jnp.isfinite(out)))
    print("KERNEL_OK")
</pallas_src>

<mosaic_0001>
module attributes {stable_mosaic.version = 11 : i64} {
  func.func @_simple_cnn_kernel(%arg0: memref<2x225x27xbf16, #tpu.memory_space<vmem>>, %arg1: memref<27x128xbf16, #tpu.memory_space<vmem>>, %arg2: memref<1x128xf32, #tpu.memory_space<vmem>>, %arg3: memref<1x128xf32, #tpu.memory_space<vmem>>, %arg4: memref<1x128xf32, #tpu.memory_space<vmem>>, %arg5: memref<9x36x225xbf16, #tpu.memory_space<vmem>>, %arg6: memref<1152x128xbf16, #tpu.memory_space<vmem>>, %arg7: memref<1x128xf32, #tpu.memory_space<vmem>>, %arg8: memref<1x128xf32, #tpu.memory_space<vmem>>, %arg9: memref<1x128xf32, #tpu.memory_space<vmem>>, %arg10: memref<9x4x36xbf16, #tpu.memory_space<vmem>>, %arg11: memref<1152x128xbf16, #tpu.memory_space<vmem>>, %arg12: memref<1x128xf32, #tpu.memory_space<vmem>>, %arg13: memref<1x128xf32, #tpu.memory_space<vmem>>, %arg14: memref<1x128xf32, #tpu.memory_space<vmem>>, %arg15: memref<128x128xbf16, #tpu.memory_space<vmem>>, %arg16: memref<1x128xf32, #tpu.memory_space<vmem>>, %arg17: memref<2x1x128xf32, #tpu.memory_space<vmem>>) attributes {dimension_semantics = [], scalar_prefetch = 0 : i64, scratch_operands = 0 : i64, tpu.core_type = #tpu.core_type<tc>} {
    %c0 = arith.constant 0 : index
    %c0_0 = arith.constant 0 : index
    %0 = vector.load %arg1[%c0, %c0_0] : memref<27x128xbf16, #tpu.memory_space<vmem>>, vector<27x128xbf16>
    %c0_1 = arith.constant 0 : index
    %c0_2 = arith.constant 0 : index
    %1 = vector.load %arg2[%c0_1, %c0_2] : memref<1x128xf32, #tpu.memory_space<vmem>>, vector<1x128xf32>
    %c0_3 = arith.constant 0 : index
    %c0_4 = arith.constant 0 : index
    %c0_5 = arith.constant 0 : index
    %2 = vector.load %arg0[%c0_3, %c0_4, %c0_5] : memref<2x225x27xbf16, #tpu.memory_space<vmem>>, vector<1x225x27xbf16>
    %3 = vector.shape_cast %2 : vector<1x225x27xbf16> to vector<225x27xbf16>
    %cst = arith.constant dense<0.000000e+00> : vector<225x128xf32>
    %4 = tpu.matmul %3, %0, %cst {dimension_numbers = #tpu.dot_dimension_numbers<[1], [0], [0], [1], [0, 0, 1, 1], [], []>} : vector<225x27xbf16>, vector<27x128xbf16>, vector<225x128xf32> -> vector<225x128xf32>
    %5 = vector.broadcast %1 : vector<1x128xf32> to vector<225x128xf32>
    %6 = arith.addf %4, %5 : vector<225x128xf32>
    %c1 = arith.constant 1 : index
    %c0_6 = arith.constant 0 : index
    %c0_7 = arith.constant 0 : index
    %7 = vector.load %arg0[%c1, %c0_6, %c0_7] : memref<2x225x27xbf16, #tpu.memory_space<vmem>>, vector<1x225x27xbf16>
    %8 = vector.shape_cast %7 : vector<1x225x27xbf16> to vector<225x27xbf16>
    %cst_8 = arith.constant dense<0.000000e+00> : vector<225x128xf32>
    %9 = tpu.matmul %8, %0, %cst_8 {dimension_numbers = #tpu.dot_dimension_numbers<[1], [0], [0], [1], [0, 0, 1, 1], [], []>} : vector<225x27xbf16>, vector<27x128xbf16>, vector<225x128xf32> -> vector<225x128xf32>
    %10 = vector.broadcast %1 : vector<1x128xf32> to vector<225x128xf32>
    %11 = arith.addf %9, %10 : vector<225x128xf32>
    %c0_9 = arith.constant 0 : index
    %c0_10 = arith.constant 0 : index
    %12 = vector.load %arg3[%c0_9, %c0_10] : memref<1x128xf32, #tpu.memory_space<vmem>>, vector<1x128xf32>
    %c0_11 = arith.constant 0 : index
    %c0_12 = arith.constant 0 : index
    %13 = vector.load %arg4[%c0_11, %c0_12] : memref<1x128xf32, #tpu.memory_space<vmem>>, vector<1x128xf32>
    %cst_13 = arith.constant 0.000000e+00 : f32
    %14 = vector.broadcast %cst_13 : f32 to vector<225x128xf32>
    %15 = arith.maximumf %6, %14 : vector<225x128xf32>
    %cst_14 = arith.constant 0.000000e+00 : f32
    %16 = vector.broadcast %cst_14 : f32 to vector<225x128xf32>
    %17 = arith.maximumf %11, %16 : vector<225x128xf32>
    %cst_15 = arith.constant dense<0.000000e+00> : vector<128xf32>
    %18 = vector.multi_reduction <add>, %15, %cst_15 [0] : vector<225x128xf32> to vector<128xf32>
    %19 = vector.shape_cast %18 : vector<128xf32> to vector<1x128xf32>
    %cst_16 = arith.constant dense<0.000000e+00> : vector<128xf32>
    %20 = vector.multi_reduction <add>, %17, %cst_16 [0] : vector<225x128xf32> to vector<128xf32>
    %21 = vector.shape_cast %20 : vector<128xf32> to vector<1x128xf32>
    %22 = arith.addf %19, %21 : vector<1x128xf32>
    %cst_17 = arith.constant 0.00222222228 : f32
    %23 = vector.broadcast %cst_17 : f32 to vector<1x128xf32>
    %24 = arith.mulf %22, %23 : vector<1x128xf32>
    %25 = vector.broadcast %24 : vector<1x128xf32> to vector<225x128xf32>
    %26 = arith.subf %15, %25 : vector<225x128xf32>
    %27 = vector.broadcast %24 : vector<1x128xf32> to vector<225x128xf32>
    %28 = arith.subf %17, %27 : vector<225x128xf32>
    %29 = arith.mulf %26, %26 : vector<225x128xf32>
    %cst_18 = arith.constant dense<0.000000e+00> : vector<128xf32>
    %30 = vector.multi_reduction <add>, %29, %cst_18 [0] : vector<225x128xf32> to vector<128xf32>
    %31 = vector.shape_cast %30 : vector<128xf32> to vector<1x128xf32>
    %32 = arith.mulf %28, %28 : vector<225x128xf32>
    %cst_19 = arith.constant dense<0.000000e+00> : vector<128xf32>
    %33 = vector.multi_reduction <add>, %32, %cst_19 [0] : vector<225x128xf32> to vector<128xf32>
    %34 = vector.shape_cast %33 : vector<128xf32> to vector<1x128xf32>
    %35 = arith.addf %31, %34 : vector<1x128xf32>
    %cst_20 = arith.constant 0.00222222228 : f32
    %36 = vector.broadcast %cst_20 : f32 to vector<1x128xf32>
    %37 = arith.mulf %35, %36 : vector<1x128xf32>
    %cst_21 = arith.constant 9.99999974E-6 : f32
    %38 = vector.broadcast %cst_21 : f32 to vector<1x128xf32>
    %39 = arith.addf %37, %38 : vector<1x128xf32>
    %40 = math.rsqrt %39 : vector<1x128xf32>
    %41 = arith.mulf %40, %12 : vector<1x128xf32>
    %42 = vector.broadcast %41 : vector<1x128xf32> to vector<225x128xf32>
    %43 = arith.mulf %26, %42 : vector<225x128xf32>
    %44 = vector.broadcast %13 : vector<1x128xf32> to vector<225x128xf32>
    %45 = arith.addf %43, %44 : vector<225x128xf32>
    %46 = vector.broadcast %41 : vector<1x128xf32> to vector<225x128xf32>
    %47 = arith.mulf %28, %46 : vector<225x128xf32>
    %48 = vector.broadcast %13 : vector<1x128xf32> to vector<225x128xf32>
    %49 = arith.addf %47, %48 : vector<225x128xf32>
    %c0_22 = arith.constant 0 : index
    %c0_23 = arith.constant 0 : index
    %50 = vector.load %arg6[%c0_22, %c0_23] : memref<1152x128xbf16, #tpu.memory_space<vmem>>, vector<1152x128xbf16>
    %c0_24 = arith.constant 0 : index
    %c0_25 = arith.constant 0 : index
    %51 = vector.load %arg7[%c0_24, %c0_25] : memref<1x128xf32, #tpu.memory_space<vmem>>, vector<1x128xf32>
    %52 = arith.truncf %45 : vector<225x128xf32> to vector<225x128xbf16>
    %c0_26 = arith.constant 0 : index
    %c0_27 = arith.constant 0 : index
    %c0_28 = arith.constant 0 : index
    %53 = vector.load %arg5[%c0_26, %c0_27, %c0_28] : memref<9x36x225xbf16, #tpu.memory_space<vmem>>, vector<1x36x225xbf16>
    %54 = vector.shape_cast %53 : vector<1x36x225xbf16> to vector<36x225xbf16>
    %cst_29 = arith.constant dense<0.000000e+00> : vector<36x128xf32>
    %55 = tpu.matmul %54, %52, %cst_29 {dimension_numbers = #tpu.dot_dimension_numbers<[1], [0], [0], [1], [0, 0, 1, 1], [], []>} : vector<36x225xbf16>, vector<225x128xbf16>, vector<36x128xf32> -> vector<36x128xf32>
    %56 = arith.truncf %55 : vector<36x128xf32> to vector<36x128xbf16>
    %c1_30 = arith.constant 1 : index
    %c0_31 = arith.constant 0 : index
    %c0_32 = arith.constant 0 : index
    %57 = vector.load %arg5[%c1_30, %c0_31, %c0_32] : memref<9x36x225xbf16, #tpu.memory_space<vmem>>, vector<1x36x225xbf16>
    %58 = vector.shape_cast %57 : vector<1x36x225xbf16> to vector<36x225xbf16>
    %cst_33 = arith.constant dense<0.000000e+00> : vector<36x128xf32>
    %59 = tpu.matmul %58, %52, %cst_33 {dimension_numbers = #tpu.dot_dimension_numbers<[1], [0], [0], [1], [0, 0, 1, 1], [], []>} : vector<36x225xbf16>, vector<225x128xbf16>, vector<36x128xf32> -> vector<36x128xf32>
    %60 = arith.truncf %59 : vector<36x128xf32> to vector<36x128xbf16>
    %c2 = arith.constant 2 : index
    %c0_34 = arith.constant 0 : index
    %c0_35 = arith.constant 0 : index
    %61 = vector.load %arg5[%c2, %c0_34, %c0_35] : memref<9x36x225xbf16, #tpu.memory_space<vmem>>, vector<1x36x225xbf16>
    %62 = vector.shape_cast %61 : vector<1x36x225xbf16> to vector<36x225xbf16>
    %cst_36 = arith.constant dense<0.000000e+00> : vector<36x128xf32>
    %63 = tpu.matmul %62, %52, %cst_36 {dimension_numbers = #tpu.dot_dimension_numbers<[1], [0], [0], [1], [0, 0, 1, 1], [], []>} : vector<36x225xbf16>, vector<225x128xbf16>, vector<36x128xf32> -> vector<36x128xf32>
    %64 = arith.truncf %63 : vector<36x128xf32> to vector<36x128xbf16>
    %c3 = arith.constant 3 : index
    %c0_37 = arith.constant 0 : index
    %c0_38 = arith.constant 0 : index
    %65 = vector.load %arg5[%c3, %c0_37, %c0_38] : memref<9x36x225xbf16, #tpu.memory_space<vmem>>, vector<1x36x225xbf16>
    %66 = vector.shape_cast %65 : vector<1x36x225xbf16> to vector<36x225xbf16>
    %cst_39 = arith.constant dense<0.000000e+00> : vector<36x128xf32>
    %67 = tpu.matmul %66, %52, %cst_39 {dimension_numbers = #tpu.dot_dimension_numbers<[1], [0], [0], [1], [0, 0, 1, 1], [], []>} : vector<36x225xbf16>, vector<225x128xbf16>, vector<36x128xf32> -> vector<36x128xf32>
    %68 = arith.truncf %67 : vector<36x128xf32> to vector<36x128xbf16>
    %c4 = arith.constant 4 : index
    %c0_40 = arith.constant 0 : index
    %c0_41 = arith.constant 0 : index
    %69 = vector.load %arg5[%c4, %c0_40, %c0_41] : memref<9x36x225xbf16, #tpu.memory_space<vmem>>, vector<1x36x225xbf16>
    %70 = vector.shape_cast %69 : vector<1x36x225xbf16> to vector<36x225xbf16>
    %cst_42 = arith.constant dense<0.000000e+00> : vector<36x128xf32>
    %71 = tpu.matmul %70, %52, %cst_42 {dimension_numbers = #tpu.dot_dimension_numbers<[1], [0], [0], [1], [0, 0, 1, 1], [], []>} : vector<36x225xbf16>, vector<225x128xbf16>, vector<36x128xf32> -> vector<36x128xf32>
    %72 = arith.truncf %71 : vector<36x128xf32> to vector<36x128xbf16>
    %c5 = arith.constant 5 : index
    %c0_43 = arith.constant 0 : index
    %c0_44 = arith.constant 0 : index
    %73 = vector.load %arg5[%c5, %c0_43, %c0_44] : memref<9x36x225xbf16, #tpu.memory_space<vmem>>, vector<1x36x225xbf16>
    %74 = vector.shape_cast %73 : vector<1x36x225xbf16> to vector<36x225xbf16>
    %cst_45 = arith.constant dense<0.000000e+00> : vector<36x128xf32>
    %75 = tpu.matmul %74, %52, %cst_45 {dimension_numbers = #tpu.dot_dimension_numbers<[1], [0], [0], [1], [0, 0, 1, 1], [], []>} : vector<36x225xbf16>, vector<225x128xbf16>, vector<36x128xf32> -> vector<36x128xf32>
    %76 = arith.truncf %75 : vector<36x128xf32> to vector<36x128xbf16>
    %c6 = arith.constant 6 : index
    %c0_46 = arith.constant 0 : index
    %c0_47 = arith.constant 0 : index
    %77 = vector.load %arg5[%c6, %c0_46, %c0_47] : memref<9x36x225xbf16, #tpu.memory_space<vmem>>, vector<1x36x225xbf16>
    %78 = vector.shape_cast %77 : vector<1x36x225xbf16> to vector<36x225xbf16>
    %cst_48 = arith.constant dense<0.000000e+00> : vector<36x128xf32>
    %79 = tpu.matmul %78, %52, %cst_48 {dimension_numbers = #tpu.dot_dimension_numbers<[1], [0], [0], [1], [0, 0, 1, 1], [], []>} : vector<36x225xbf16>, vector<225x128xbf16>, vector<36x128xf32> -> vector<36x128xf32>
    %80 = arith.truncf %79 : vector<36x128xf32> to vector<36x128xbf16>
    %c7 = arith.constant 7 : index
    %c0_49 = arith.constant 0 : index
    %c0_50 = arith.constant 0 : index
    %81 = vector.load %arg5[%c7, %c0_49, %c0_50] : memref<9x36x225xbf16, #tpu.memory_space<vmem>>, vector<1x36x225xbf16>
    %82 = vector.shape_cast %81 : vector<1x36x225xbf16> to vector<36x225xbf16>
    %cst_51 = arith.constant dense<0.000000e+00> : vector<36x128xf32>
    %83 = tpu.matmul %82, %52, %cst_51 {dimension_numbers = #tpu.dot_dimension_numbers<[1], [0], [0], [1], [0, 0, 1, 1], [], []>} : vector<36x225xbf16>, vector<225x128xbf16>, vector<36x128xf32> -> vector<36x128xf32>
    %84 = arith.truncf %83 : vector<36x128xf32> to vector<36x128xbf16>
    %c8 = arith.constant 8 : index
    %c0_52 = arith.constant 0 : index
    %c0_53 = arith.constant 0 : index
    %85 = vector.load %arg5[%c8, %c0_52, %c0_53] : memref<9x36x225xbf16, #tpu.memory_space<vmem>>, vector<1x36x225xbf16>
    %86 = vector.shape_cast %85 : vector<1x36x225xbf16> to vector<36x225xbf16>
    %cst_54 = arith.constant dense<0.000000e+00> : vector<36x128xf32>
    %87 = tpu.matmul %86, %52, %cst_54 {dimension_numbers = #tpu.dot_dimension_numbers<[1], [0], [0], [1], [0, 0, 1, 1], [], []>} : vector<36x225xbf16>, vector<225x128xbf16>, vector<36x128xf32> -> vector<36x128xf32>
    %88 = arith.truncf %87 : vector<36x128xf32> to vector<36x128xbf16>
    %89 = tpu.concatenate %56, %60, %64, %68, %72, %76, %80, %84, %88 in 1 : vector<36x128xbf16>, vector<36x128xbf16>, vector<36x128xbf16>, vector<36x128xbf16>, vector<36x128xbf16>, vector<36x128xbf16>, vector<36x128xbf16>, vector<36x128xbf16>, vector<36x128xbf16> -> vector<36x1152xbf16>
    %cst_55 = arith.constant dense<0.000000e+00> : vector<36x128xf32>
    %90 = tpu.matmul %89, %50, %cst_55 {dimension_numbers = #tpu.dot_dimension_numbers<[1], [0], [0], [1], [0, 0, 1, 1], [], []>} : vector<36x1152xbf16>, vector<1152x128xbf16>, vector<36x128xf32> -> vector<36x128xf32>
    %91 = vector.broadcast %51 : vector<1x128xf32> to vector<36x128xf32>
    %92 = arith.addf %90, %91 : vector<36x128xf32>
    %93 = arith.truncf %49 : vector<225x128xf32> to vector<225x128xbf16>
    %c0_56 = arith.constant 0 : index
    %c0_57 = arith.constant 0 : index
    %c0_58 = arith.constant 0 : index
    %94 = vector.load %arg5[%c0_56, %c0_57, %c0_58] : memref<9x36x225xbf16, #tpu.memory_space<vmem>>, vector<1x36x225xbf16>
    %95 = vector.shape_cast %94 : vector<1x36x225xbf16> to vector<36x225xbf16>
    %cst_59 = arith.constant dense<0.000000e+00> : vector<36x128xf32>
    %96 = tpu.matmul %95, %93, %cst_59 {dimension_numbers = #tpu.dot_dimension_numbers<[1], [0], [0], [1], [0, 0, 1, 1], [], []>} : vector<36x225xbf16>, vector<225x128xbf16>, vector<36x128xf32> -> vector<36x128xf32>
    %97 = arith.truncf %96 : vector<36x128xf32> to vector<36x128xbf16>
    %c1_60 = arith.constant 1 : index
    %c0_61 = arith.constant 0 : index
    %c0_62 = arith.constant 0 : index
    %98 = vector.load %arg5[%c1_60, %c0_61, %c0_62] : memref<9x36x225xbf16, #tpu.memory_space<vmem>>, vector<1x36x225xbf16>
    %99 = vector.shape_cast %98 : vector<1x36x225xbf16> to vector<36x225xbf16>
    %cst_63 = arith.constant dense<0.000000e+00> : vector<36x128xf32>
    %100 = tpu.matmul %99, %93, %cst_63 {dimension_numbers = #tpu.dot_dimension_numbers<[1], [0], [0], [1], [0, 0, 1, 1], [], []>} : vector<36x225xbf16>, vector<225x128xbf16>, vector<36x128xf32> -> vector<36x128xf32>
    %101 = arith.truncf %100 : vector<36x128xf32> to vector<36x128xbf16>
    %c2_64 = arith.constant 2 : index
    %c0_65 = arith.constant 0 : index
    %c0_66 = arith.constant 0 : index
    %102 = vector.load %arg5[%c2_64, %c0_65, %c0_66] : memref<9x36x225xbf16, #tpu.memory_space<vmem>>, vector<1x36x225xbf16>
    %103 = vector.shape_cast %102 : vector<1x36x225xbf16> to vector<36x225xbf16>
    %cst_67 = arith.constant dense<0.000000e+00> : vector<36x128xf32>
    %104 = tpu.matmul %103, %93, %cst_67 {dimension_numbers = #tpu.dot_dimension_numbers<[1], [0], [0], [1], [0, 0, 1, 1], [], []>} : vector<36x225xbf16>, vector<225x128xbf16>, vector<36x128xf32> -> vector<36x128xf32>
    %105 = arith.truncf %104 : vector<36x128xf32> to vector<36x128xbf16>
    %c3_68 = arith.constant 3 : index
    %c0_69 = arith.constant 0 : index
    %c0_70 = arith.constant 0 : index
    %106 = vector.load %arg5[%c3_68, %c0_69, %c0_70] : memref<9x36x225xbf16, #tpu.memory_space<vmem>>, vector<1x36x225xbf16>
    %107 = vector.shape_cast %106 : vector<1x36x225xbf16> to vector<36x225xbf16>
    %cst_71 = arith.constant dense<0.000000e+00> : vector<36x128xf32>
    %108 = tpu.matmul %107, %93, %cst_71 {dimension_numbers = #tpu.dot_dimension_numbers<[1], [0], [0], [1], [0, 0, 1, 1], [], []>} : vector<36x225xbf16>, vector<225x128xbf16>, vector<36x128xf32> -> vector<36x128xf32>
    %109 = arith.truncf %108 : vector<36x128xf32> to vector<36x128xbf16>
    %c4_72 = arith.constant 4 : index
    %c0_73 = arith.constant 0 : index
    %c0_74 = arith.constant 0 : index
    %110 = vector.load %arg5[%c4_72, %c0_73, %c0_74] : memref<9x36x225xbf16, #tpu.memory_space<vmem>>, vector<1x36x225xbf16>
    %111 = vector.shape_cast %110 : vector<1x36x225xbf16> to vector<36x225xbf16>
    %cst_75 = arith.constant dense<0.000000e+00> : vector<36x128xf32>
    %112 = tpu.matmul %111, %93, %cst_75 {dimension_numbers = #tpu.dot_dimension_numbers<[1], [0], [0], [1], [0, 0, 1, 1], [], []>} : vector<36x225xbf16>, vector<225x128xbf16>, vector<36x128xf32> -> vector<36x128xf32>
    %113 = arith.truncf %112 : vector<36x128xf32> to vector<36x128xbf16>
    %c5_76 = arith.constant 5 : index
    %c0_77 = arith.constant 0 : index
    %c0_78 = arith.constant 0 : index
    %114 = vector.load %arg5[%c5_76, %c0_77, %c0_78] : memref<9x36x225xbf16, #tpu.memory_space<vmem>>, vector<1x36x225xbf16>
    %115 = vector.shape_cast %114 : vector<1x36x225xbf16> to vector<36x225xbf16>
    %cst_79 = arith.constant dense<0.000000e+00> : vector<36x128xf32>
    %116 = tpu.matmul %115, %93, %cst_79 {dimension_numbers = #tpu.dot_dimension_numbers<[1], [0], [0], [1], [0, 0, 1, 1], [], []>} : vector<36x225xbf16>, vector<225x128xbf16>, vector<36x128xf32> -> vector<36x128xf32>
    %117 = arith.truncf %116 : vector<36x128xf32> to vector<36x128xbf16>
    %c6_80 = arith.constant 6 : index
    %c0_81 = arith.constant 0 : index
    %c0_82 = arith.constant 0 : index
    %118 = vector.load %arg5[%c6_80, %c0_81, %c0_82] : memref<9x36x225xbf16, #tpu.memory_space<vmem>>, vector<1x36x225xbf16>
    %119 = vector.shape_cast %118 : vector<1x36x225xbf16> to vector<36x225xbf16>
    %cst_83 = arith.constant dense<0.000000e+00> : vector<36x128xf32>
    %120 = tpu.matmul %119, %93, %cst_83 {dimension_numbers = #tpu.dot_dimension_numbers<[1], [0], [0], [1], [0, 0, 1, 1], [], []>} : vector<36x225xbf16>, vector<225x128xbf16>, vector<36x128xf32> -> vector<36x128xf32>
    %121 = arith.truncf %120 : vector<36x128xf32> to vector<36x128xbf16>
    %c7_84 = arith.constant 7 : index
    %c0_85 = arith.constant 0 : index
    %c0_86 = arith.constant 0 : index
    %122 = vector.load %arg5[%c7_84, %c0_85, %c0_86] : memref<9x36x225xbf16, #tpu.memory_space<vmem>>, vector<1x36x225xbf16>
    %123 = vector.shape_cast %122 : vector<1x36x225xbf16> to vector<36x225xbf16>
    %cst_87 = arith.constant dense<0.000000e+00> : vector<36x128xf32>
    %124 = tpu.matmul %123, %93, %cst_87 {dimension_numbers = #tpu.dot_dimension_numbers<[1], [0], [0], [1], [0, 0, 1, 1], [], []>} : vector<36x225xbf16>, vector<225x128xbf16>, vector<36x128xf32> -> vector<36x128xf32>
    %125 = arith.truncf %124 : vector<36x128xf32> to vector<36x128xbf16>
    %c8_88 = arith.constant 8 : index
    %c0_89 = arith.constant 0 : index
    %c0_90 = arith.constant 0 : index
    %126 = vector.load %arg5[%c8_88, %c0_89, %c0_90] : memref<9x36x225xbf16, #tpu.memory_space<vmem>>, vector<1x36x225xbf16>
    %127 = vector.shape_cast %126 : vector<1x36x225xbf16> to vector<36x225xbf16>
    %cst_91 = arith.constant dense<0.000000e+00> : vector<36x128xf32>
    %128 = tpu.matmul %127, %93, %cst_91 {dimension_numbers = #tpu.dot_dimension_numbers<[1], [0], [0], [1], [0, 0, 1, 1], [], []>} : vector<36x225xbf16>, vector<225x128xbf16>, vector<36x128xf32> -> vector<36x128xf32>
    %129 = arith.truncf %128 : vector<36x128xf32> to vector<36x128xbf16>
    %130 = tpu.concatenate %97, %101, %105, %109, %113, %117, %121, %125, %129 in 1 : vector<36x128xbf16>, vector<36x128xbf16>, vector<36x128xbf16>, vector<36x128xbf16>, vector<36x128xbf16>, vector<36x128xbf16>, vector<36x128xbf16>, vector<36x128xbf16>, vector<36x128xbf16> -> vector<36x1152xbf16>
    %cst_92 = arith.constant dense<0.000000e+00> : vector<36x128xf32>
    %131 = tpu.matmul %130, %50, %cst_92 {dimension_numbers = #tpu.dot_dimension_numbers<[1], [0], [0], [1], [0, 0, 1, 1], [], []>} : vector<36x1152xbf16>, vector<1152x128xbf16>, vector<36x128xf32> -> vector<36x128xf32>
    %132 = vector.broadcast %51 : vector<1x128xf32> to vector<36x128xf32>
    %133 = arith.addf %131, %132 : vector<36x128xf32>
    %c0_93 = arith.constant 0 : index
    %c0_94 = arith.constant 0 : index
    %134 = vector.load %arg8[%c0_93, %c0_94] : memref<1x128xf32, #tpu.memory_space<vmem>>, vector<1x128xf32>
    %c0_95 = arith.constant 0 : index
    %c0_96 = arith.constant 0 : index
    %135 = vector.load %arg9[%c0_95, %c0_96] : memref<1x128xf32, #tpu.memory_space<vmem>>, vector<1x128xf32>
    %cst_97 = arith.constant 0.000000e+00 : f32
    %136 = vector.broadcast %cst_97 : f32 to vector<36x128xf32>
    %137 = arith.maximumf %92, %136 : vector<36x128xf32>
    %cst_98 = arith.constant 0.000000e+00 : f32
    %138 = vector.broadcast %cst_98 : f32 to vector<36x128xf32>
    %139 = arith.maximumf %133, %138 : vector<36x128xf32>
    %cst_99 = arith.constant dense<0.000000e+00> : vector<128xf32>
    %140 = vector.multi_reduction <add>, %137, %cst_99 [0] : vector<36x128xf32> to vector<128xf32>
    %141 = vector.shape_cast %140 : vector<128xf32> to vector<1x128xf32>
    %cst_100 = arith.constant dense<0.000000e+00> : vector<128xf32>
    %142 = vector.multi_reduction <add>, %139, %cst_100 [0] : vector<36x128xf32> to vector<128xf32>
    %143 = vector.shape_cast %142 : vector<128xf32> to vector<1x128xf32>
    %144 = arith.addf %141, %143 : vector<1x128xf32>
    %cst_101 = arith.constant 0.013888889 : f32
    %145 = vector.broadcast %cst_101 : f32 to vector<1x128xf32>
    %146 = arith.mulf %144, %145 : vector<1x128xf32>
    %147 = vector.broadcast %146 : vector<1x128xf32> to vector<36x128xf32>
    %148 = arith.subf %137, %147 : vector<36x128xf32>
    %149 = vector.broadcast %146 : vector<1x128xf32> to vector<36x128xf32>
    %150 = arith.subf %139, %149 : vector<36x128xf32>
    %151 = arith.mulf %148, %148 : vector<36x128xf32>
    %cst_102 = arith.constant dense<0.000000e+00> : vector<128xf32>
    %152 = vector.multi_reduction <add>, %151, %cst_102 [0] : vector<36x128xf32> to vector<128xf32>
    %153 = vector.shape_cast %152 : vector<128xf32> to vector<1x128xf32>
    %154 = arith.mulf %150, %150 : vector<36x128xf32>
    %cst_103 = arith.constant dense<0.000000e+00> : vector<128xf32>
    %155 = vector.multi_reduction <add>, %154, %cst_103 [0] : vector<36x128xf32> to vector<128xf32>
    %156 = vector.shape_cast %155 : vector<128xf32> to vector<1x128xf32>
    %157 = arith.addf %153, %156 : vector<1x128xf32>
    %cst_104 = arith.constant 0.013888889 : f32
    %158 = vector.broadcast %cst_104 : f32 to vector<1x128xf32>
    %159 = arith.mulf %157, %158 : vector<1x128xf32>
    %cst_105 = arith.constant 9.99999974E-6 : f32
    %160 = vector.broadcast %cst_105 : f32 to vector<1x128xf32>
    %161 = arith.addf %159, %160 : vector<1x128xf32>
    %162 = math.rsqrt %161 : vector<1x128xf32>
    %163 = arith.mulf %162, %134 : vector<1x128xf32>
    %164 = vector.broadcast %163 : vector<1x128xf32> to vector<36x128xf32>
    %165 = arith.mulf %148, %164 : vector<36x128xf32>
    %166 = vector.broadcast %135 : vector<1x128xf32> to vector<36x128xf32>
    %167 = arith.addf %165, %166 : vector<36x128xf32>
    %168 = vector.broadcast %163 : vector<1x128xf32> to vector<36x128xf32>
    %169 = arith.mulf %150, %168 : vector<36x128xf32>
    %170 = vector.broadcast %135 : vector<1x128xf32> to vector<36x128xf32>
    %171 = arith.addf %169, %170 : vector<36x128xf32>
    %c0_106 = arith.constant 0 : index
    %c0_107 = arith.constant 0 : index
    %172 = vector.load %arg11[%c0_106, %c0_107] : memref<1152x128xbf16, #tpu.memory_space<vmem>>, vector<1152x128xbf16>
    %c0_108 = arith.constant 0 : index
    %c0_109 = arith.constant 0 : index
    %173 = vector.load %arg12[%c0_108, %c0_109] : memref<1x128xf32, #tpu.memory_space<vmem>>, vector<1x128xf32>
    %174 = arith.truncf %167 : vector<36x128xf32> to vector<36x128xbf16>
    %c0_110 = arith.constant 0 : index
    %c0_111 = arith.constant 0 : index
    %c0_112 = arith.constant 0 : index
    %175 = vector.load %arg10[%c0_110, %c0_111, %c0_112] : memref<9x4x36xbf16, #tpu.memory_space<vmem>>, vector<1x4x36xbf16>
    %176 = vector.shape_cast %175 : vector<1x4x36xbf16> to vector<4x36xbf16>
    %cst_113 = arith.constant dense<0.000000e+00> : vector<4x128xf32>
    %177 = tpu.matmul %176, %174, %cst_113 {dimension_numbers = #tpu.dot_dimension_numbers<[1], [0], [0], [1], [0, 0, 1, 1], [], []>} : vector<4x36xbf16>, vector<36x128xbf16>, vector<4x128xf32> -> vector<4x128xf32>
    %178 = arith.truncf %177 : vector<4x128xf32> to vector<4x128xbf16>
    %c1_114 = arith.constant 1 : index
    %c0_115 = arith.constant 0 : index
    %c0_116 = arith.constant 0 : index
    %179 = vector.load %arg10[%c1_114, %c0_115, %c0_116] : memref<9x4x36xbf16, #tpu.memory_space<vmem>>, vector<1x4x36xbf16>
    %180 = vector.shape_cast %179 : vector<1x4x36xbf16> to vector<4x36xbf16>
    %cst_117 = arith.constant dense<0.000000e+00> : vector<4x128xf32>
    %181 = tpu.matmul %180, %174, %cst_117 {dimension_numbers = #tpu.dot_dimension_numbers<[1], [0], [0], [1], [0, 0, 1, 1], [], []>} : vector<4x36xbf16>, vector<36x128xbf16>, vector<4x128xf32> -> vector<4x128xf32>
    %182 = arith.truncf %181 : vector<4x128xf32> to vector<4x128xbf16>
    %c2_118 = arith.constant 2 : index
    %c0_119 = arith.constant 0 : index
    %c0_120 = arith.constant 0 : index
    %183 = vector.load %arg10[%c2_118, %c0_119, %c0_120] : memref<9x4x36xbf16, #tpu.memory_space<vmem>>, vector<1x4x36xbf16>
    %184 = vector.shape_cast %183 : vector<1x4x36xbf16> to vector<4x36xbf16>
    %cst_121 = arith.constant dense<0.000000e+00> : vector<4x128xf32>
    %185 = tpu.matmul %184, %174, %cst_121 {dimension_numbers = #tpu.dot_dimension_numbers<[1], [0], [0], [1], [0, 0, 1, 1], [], []>} : vector<4x36xbf16>, vector<36x128xbf16>, vector<4x128xf32> -> vector<4x128xf32>
    %186 = arith.truncf %185 : vector<4x128xf32> to vector<4x128xbf16>
    %c3_122 = arith.constant 3 : index
    %c0_123 = arith.constant 0 : index
    %c0_124 = arith.constant 0 : index
    %187 = vector.load %arg10[%c3_122, %c0_123, %c0_124] : memref<9x4x36xbf16, #tpu.memory_space<vmem>>, vector<1x4x36xbf16>
    %188 = vector.shape_cast %187 : vector<1x4x36xbf16> to vector<4x36xbf16>
    %cst_125 = arith.constant dense<0.000000e+00> : vector<4x128xf32>
    %189 = tpu.matmul %188, %174, %cst_125 {dimension_numbers = #tpu.dot_dimension_numbers<[1], [0], [0], [1], [0, 0, 1, 1], [], []>} : vector<4x36xbf16>, vector<36x128xbf16>, vector<4x128xf32> -> vector<4x128xf32>
    %190 = arith.truncf %189 : vector<4x128xf32> to vector<4x128xbf16>
    %c4_126 = arith.constant 4 : index
    %c0_127 = arith.constant 0 : index
    %c0_128 = arith.constant 0 : index
    %191 = vector.load %arg10[%c4_126, %c0_127, %c0_128] : memref<9x4x36xbf16, #tpu.memory_space<vmem>>, vector<1x4x36xbf16>
    %192 = vector.shape_cast %191 : vector<1x4x36xbf16> to vector<4x36xbf16>
    %cst_129 = arith.constant dense<0.000000e+00> : vector<4x128xf32>
    %193 = tpu.matmul %192, %174, %cst_129 {dimension_numbers = #tpu.dot_dimension_numbers<[1], [0], [0], [1], [0, 0, 1, 1], [], []>} : vector<4x36xbf16>, vector<36x128xbf16>, vector<4x128xf32> -> vector<4x128xf32>
    %194 = arith.truncf %193 : vector<4x128xf32> to vector<4x128xbf16>
    %c5_130 = arith.constant 5 : index
    %c0_131 = arith.constant 0 : index
    %c0_132 = arith.constant 0 : index
    %195 = vector.load %arg10[%c5_130, %c0_131, %c0_132] : memref<9x4x36xbf16, #tpu.memory_space<vmem>>, vector<1x4x36xbf16>
    %196 = vector.shape_cast %195 : vector<1x4x36xbf16> to vector<4x36xbf16>
    %cst_133 = arith.constant dense<0.000000e+00> : vector<4x128xf32>
    %197 = tpu.matmul %196, %174, %cst_133 {dimension_numbers = #tpu.dot_dimension_numbers<[1], [0], [0], [1], [0, 0, 1, 1], [], []>} : vector<4x36xbf16>, vector<36x128xbf16>, vector<4x128xf32> -> vector<4x128xf32>
    %198 = arith.truncf %197 : vector<4x128xf32> to vector<4x128xbf16>
    %c6_134 = arith.constant 6 : index
    %c0_135 = arith.constant 0 : index
    %c0_136 = arith.constant 0 : index
    %199 = vector.load %arg10[%c6_134, %c0_135, %c0_136] : memref<9x4x36xbf16, #tpu.memory_space<vmem>>, vector<1x4x36xbf16>
    %200 = vector.shape_cast %199 : vector<1x4x36xbf16> to vector<4x36xbf16>
    %cst_137 = arith.constant dense<0.000000e+00> : vector<4x128xf32>
    %201 = tpu.matmul %200, %174, %cst_137 {dimension_numbers = #tpu.dot_dimension_numbers<[1], [0], [0], [1], [0, 0, 1, 1], [], []>} : vector<4x36xbf16>, vector<36x128xbf16>, vector<4x128xf32> -> vector<4x128xf32>
    %202 = arith.truncf %201 : vector<4x128xf32> to vector<4x128xbf16>
    %c7_138 = arith.constant 7 : index
    %c0_139 = arith.constant 0 : index
    %c0_140 = arith.constant 0 : index
    %203 = vector.load %arg10[%c7_138, %c0_139, %c0_140] : memref<9x4x36xbf16, #tpu.memory_space<vmem>>, vector<1x4x36xbf16>
    %204 = vector.shape_cast %203 : vector<1x4x36xbf16> to vector<4x36xbf16>
    %cst_141 = arith.constant dense<0.000000e+00> : vector<4x128xf32>
    %205 = tpu.matmul %204, %174, %cst_141 {dimension_numbers = #tpu.dot_dimension_numbers<[1], [0], [0], [1], [0, 0, 1, 1], [], []>} : vector<4x36xbf16>, vector<36x128xbf16>, vector<4x128xf32> -> vector<4x128xf32>
    %206 = arith.truncf %205 : vector<4x128xf32> to vector<4x128xbf16>
    %c8_142 = arith.constant 8 : index
    %c0_143 = arith.constant 0 : index
    %c0_144 = arith.constant 0 : index
    %207 = vector.load %arg10[%c8_142, %c0_143, %c0_144] : memref<9x4x36xbf16, #tpu.memory_space<vmem>>, vector<1x4x36xbf16>
    %208 = vector.shape_cast %207 : vector<1x4x36xbf16> to vector<4x36xbf16>
    %cst_145 = arith.constant dense<0.000000e+00> : vector<4x128xf32>
    %209 = tpu.matmul %208, %174, %cst_145 {dimension_numbers = #tpu.dot_dimension_numbers<[1], [0], [0], [1], [0, 0, 1, 1], [], []>} : vector<4x36xbf16>, vector<36x128xbf16>, vector<4x128xf32> -> vector<4x128xf32>
    %210 = arith.truncf %209 : vector<4x128xf32> to vector<4x128xbf16>
    %211 = tpu.concatenate %178, %182, %186, %190, %194, %198, %202, %206, %210 in 1 : vector<4x128xbf16>, vector<4x128xbf16>, vector<4x128xbf16>, vector<4x128xbf16>, vector<4x128xbf16>, vector<4x128xbf16>, vector<4x128xbf16>, vector<4x128xbf16>, vector<4x128xbf16> -> vector<4x1152xbf16>
    %cst_146 = arith.constant dense<0.000000e+00> : vector<4x128xf32>
    %212 = tpu.matmul %211, %172, %cst_146 {dimension_numbers = #tpu.dot_dimension_numbers<[1], [0], [0], [1], [0, 0, 1, 1], [], []>} : vector<4x1152xbf16>, vector<1152x128xbf16>, vector<4x128xf32> -> vector<4x128xf32>
    %213 = vector.broadcast %173 : vector<1x128xf32> to vector<4x128xf32>
    %214 = arith.addf %212, %213 : vector<4x128xf32>
    %215 = arith.truncf %171 : vector<36x128xf32> to vector<36x128xbf16>
    %c0_147 = arith.constant 0 : index
    %c0_148 = arith.constant 0 : index
    %c0_149 = arith.constant 0 : index
    %216 = vector.load %arg10[%c0_147, %c0_148, %c0_149] : memref<9x4x36xbf16, #tpu.memory_space<vmem>>, vector<1x4x36xbf16>
    %217 = vector.shape_cast %216 : vector<1x4x36xbf16> to vector<4x36xbf16>
    %cst_150 = arith.constant dense<0.000000e+00> : vector<4x128xf32>
    %218 = tpu.matmul %217, %215, %cst_150 {dimension_numbers = #tpu.dot_dimension_numbers<[1], [0], [0], [1], [0, 0, 1, 1], [], []>} : vector<4x36xbf16>, vector<36x128xbf16>, vector<4x128xf32> -> vector<4x128xf32>
    %219 = arith.truncf %218 : vector<4x128xf32> to vector<4x128xbf16>
    %c1_151 = arith.constant 1 : index
    %c0_152 = arith.constant 0 : index
    %c0_153 = arith.constant 0 : index
    %220 = vector.load %arg10[%c1_151, %c0_152, %c0_153] : memref<9x4x36xbf16, #tpu.memory_space<vmem>>, vector<1x4x36xbf16>
    %221 = vector.shape_cast %220 : vector<1x4x36xbf16> to vector<4x36xbf16>
    %cst_154 = arith.constant dense<0.000000e+00> : vector<4x128xf32>
    %222 = tpu.matmul %221, %215, %cst_154 {dimension_numbers = #tpu.dot_dimension_numbers<[1], [0], [0], [1], [0, 0, 1, 1], [], []>} : vector<4x36xbf16>, vector<36x128xbf16>, vector<4x128xf32> -> vector<4x128xf32>
    %223 = arith.truncf %222 : vector<4x128xf32> to vector<4x128xbf16>
    %c2_155 = arith.constant 2 : index
    %c0_156 = arith.constant 0 : index
    %c0_157 = arith.constant 0 : index
    %224 = vector.load %arg10[%c2_155, %c0_156, %c0_157] : memref<9x4x36xbf16, #tpu.memory_space<vmem>>, vector<1x4x36xbf16>
    %225 = vector.shape_cast %224 : vector<1x4x36xbf16> to vector<4x36xbf16>
    %cst_158 = arith.constant dense<0.000000e+00> : vector<4x128xf32>
    %226 = tpu.matmul %225, %215, %cst_158 {dimension_numbers = #tpu.dot_dimension_numbers<[1], [0], [0], [1], [0, 0, 1, 1], [], []>} : vector<4x36xbf16>, vector<36x128xbf16>, vector<4x128xf32> -> vector<4x128xf32>
    %227 = arith.truncf %226 : vector<4x128xf32> to vector<4x128xbf16>
    %c3_159 = arith.constant 3 : index
    %c0_160 = arith.constant 0 : index
    %c0_161 = arith.constant 0 : index
    %228 = vector.load %arg10[%c3_159, %c0_160, %c0_161] : memref<9x4x36xbf16, #tpu.memory_space<vmem>>, vector<1x4x36xbf16>
    %229 = vector.shape_cast %228 : vector<1x4x36xbf16> to vector<4x36xbf16>
    %cst_162 = arith.constant dense<0.000000e+00> : vector<4x128xf32>
    %230 = tpu.matmul %229, %215, %cst_162 {dimension_numbers = #tpu.dot_dimension_numbers<[1], [0], [0], [1], [0, 0, 1, 1], [], []>} : vector<4x36xbf16>, vector<36x128xbf16>, vector<4x128xf32> -> vector<4x128xf32>
    %231 = arith.truncf %230 : vector<4x128xf32> to vector<4x128xbf16>
    %c4_163 = arith.constant 4 : index
    %c0_164 = arith.constant 0 : index
    %c0_165 = arith.constant 0 : index
    %232 = vector.load %arg10[%c4_163, %c0_164, %c0_165] : memref<9x4x36xbf16, #tpu.memory_space<vmem>>, vector<1x4x36xbf16>
    %233 = vector.shape_cast %232 : vector<1x4x36xbf16> to vector<4x36xbf16>
    %cst_166 = arith.constant dense<0.000000e+00> : vector<4x128xf32>
    %234 = tpu.matmul %233, %215, %cst_166 {dimension_numbers = #tpu.dot_dimension_numbers<[1], [0], [0], [1], [0, 0, 1, 1], [], []>} : vector<4x36xbf16>, vector<36x128xbf16>, vector<4x128xf32> -> vector<4x128xf32>
    %235 = arith.truncf %234 : vector<4x128xf32> to vector<4x128xbf16>
    %c5_167 = arith.constant 5 : index
    %c0_168 = arith.constant 0 : index
    %c0_169 = arith.constant 0 : index
    %236 = vector.load %arg10[%c5_167, %c0_168, %c0_169] : memref<9x4x36xbf16, #tpu.memory_space<vmem>>, vector<1x4x36xbf16>
    %237 = vector.shape_cast %236 : vector<1x4x36xbf16> to vector<4x36xbf16>
    %cst_170 = arith.constant dense<0.000000e+00> : vector<4x128xf32>
    %238 = tpu.matmul %237, %215, %cst_170 {dimension_numbers = #tpu.dot_dimension_numbers<[1], [0], [0], [1], [0, 0, 1, 1], [], []>} : vector<4x36xbf16>, vector<36x128xbf16>, vector<4x128xf32> -> vector<4x128xf32>
    %239 = arith.truncf %238 : vector<4x128xf32> to vector<4x128xbf16>
    %c6_171 = arith.constant 6 : index
    %c0_172 = arith.constant 0 : index
    %c0_173 = arith.constant 0 : index
    %240 = vector.load %arg10[%c6_171, %c0_172, %c0_173] : memref<9x4x36xbf16, #tpu.memory_space<vmem>>, vector<1x4x36xbf16>
    %241 = vector.shape_cast %240 : vector<1x4x36xbf16> to vector<4x36xbf16>
    %cst_174 = arith.constant dense<0.000000e+00> : vector<4x128xf32>
    %242 = tpu.matmul %241, %215, %cst_174 {dimension_numbers = #tpu.dot_dimension_numbers<[1], [0], [0], [1], [0, 0, 1, 1], [], []>} : vector<4x36xbf16>, vector<36x128xbf16>, vector<4x128xf32> -> vector<4x128xf32>
    %243 = arith.truncf %242 : vector<4x128xf32> to vector<4x128xbf16>
    %c7_175 = arith.constant 7 : index
    %c0_176 = arith.constant 0 : index
    %c0_177 = arith.constant 0 : index
    %244 = vector.load %arg10[%c7_175, %c0_176, %c0_177] : memref<9x4x36xbf16, #tpu.memory_space<vmem>>, vector<1x4x36xbf16>
    %245 = vector.shape_cast %244 : vector<1x4x36xbf16> to vector<4x36xbf16>
    %cst_178 = arith.constant dense<0.000000e+00> : vector<4x128xf32>
    %246 = tpu.matmul %245, %215, %cst_178 {dimension_numbers = #tpu.dot_dimension_numbers<[1], [0], [0], [1], [0, 0, 1, 1], [], []>} : vector<4x36xbf16>, vector<36x128xbf16>, vector<4x128xf32> -> vector<4x128xf32>
    %247 = arith.truncf %246 : vector<4x128xf32> to vector<4x128xbf16>
    %c8_179 = arith.constant 8 : index
    %c0_180 = arith.constant 0 : index
    %c0_181 = arith.constant 0 : index
    %248 = vector.load %arg10[%c8_179, %c0_180, %c0_181] : memref<9x4x36xbf16, #tpu.memory_space<vmem>>, vector<1x4x36xbf16>
    %249 = vector.shape_cast %248 : vector<1x4x36xbf16> to vector<4x36xbf16>
    %cst_182 = arith.constant dense<0.000000e+00> : vector<4x128xf32>
    %250 = tpu.matmul %249, %215, %cst_182 {dimension_numbers = #tpu.dot_dimension_numbers<[1], [0], [0], [1], [0, 0, 1, 1], [], []>} : vector<4x36xbf16>, vector<36x128xbf16>, vector<4x128xf32> -> vector<4x128xf32>
    %251 = arith.truncf %250 : vector<4x128xf32> to vector<4x128xbf16>
    %252 = tpu.concatenate %219, %223, %227, %231, %235, %239, %243, %247, %251 in 1 : vector<4x128xbf16>, vector<4x128xbf16>, vector<4x128xbf16>, vector<4x128xbf16>, vector<4x128xbf16>, vector<4x128xbf16>, vector<4x128xbf16>, vector<4x128xbf16>, vector<4x128xbf16> -> vector<4x1152xbf16>
    %cst_183 = arith.constant dense<0.000000e+00> : vector<4x128xf32>
    %253 = tpu.matmul %252, %172, %cst_183 {dimension_numbers = #tpu.dot_dimension_numbers<[1], [0], [0], [1], [0, 0, 1, 1], [], []>} : vector<4x1152xbf16>, vector<1152x128xbf16>, vector<4x128xf32> -> vector<4x128xf32>
    %254 = vector.broadcast %173 : vector<1x128xf32> to vector<4x128xf32>
    %255 = arith.addf %253, %254 : vector<4x128xf32>
    %c0_184 = arith.constant 0 : index
    %c0_185 = arith.constant 0 : index
    %256 = vector.load %arg13[%c0_184, %c0_185] : memref<1x128xf32, #tpu.memory_space<vmem>>, vector<1x128xf32>
    %c0_186 = arith.constant 0 : index
    %c0_187 = arith.constant 0 : index
    %257 = vector.load %arg14[%c0_186, %c0_187] : memref<1x128xf32, #tpu.memory_space<vmem>>, vector<1x128xf32>
    %cst_188 = arith.constant 0.000000e+00 : f32
    %258 = vector.broadcast %cst_188 : f32 to vector<4x128xf32>
    %259 = arith.maximumf %214, %258 : vector<4x128xf32>
    %cst_189 = arith.constant 0.000000e+00 : f32
    %260 = vector.broadcast %cst_189 : f32 to vector<4x128xf32>
    %261 = arith.maximumf %255, %260 : vector<4x128xf32>
    %cst_190 = arith.constant dense<0.000000e+00> : vector<128xf32>
    %262 = vector.multi_reduction <add>, %259, %cst_190 [0] : vector<4x128xf32> to vector<128xf32>
    %263 = vector.shape_cast %262 : vector<128xf32> to vector<1x128xf32>
    %cst_191 = arith.constant dense<0.000000e+00> : vector<128xf32>
    %264 = vector.multi_reduction <add>, %261, %cst_191 [0] : vector<4x128xf32> to vector<128xf32>
    %265 = vector.shape_cast %264 : vector<128xf32> to vector<1x128xf32>
    %266 = arith.addf %263, %265 : vector<1x128xf32>
    %cst_192 = arith.constant 1.250000e-01 : f32
    %267 = vector.broadcast %cst_192 : f32 to vector<1x128xf32>
    %268 = arith.mulf %266, %267 : vector<1x128xf32>
    %269 = vector.broadcast %268 : vector<1x128xf32> to vector<4x128xf32>
    %270 = arith.subf %259, %269 : vector<4x128xf32>
    %271 = vector.broadcast %268 : vector<1x128xf32> to vector<4x128xf32>
    %272 = arith.subf %261, %271 : vector<4x128xf32>
    %273 = arith.mulf %270, %270 : vector<4x128xf32>
    %cst_193 = arith.constant dense<0.000000e+00> : vector<128xf32>
    %274 = vector.multi_reduction <add>, %273, %cst_193 [0] : vector<4x128xf32> to vector<128xf32>
    %275 = vector.shape_cast %274 : vector<128xf32> to vector<1x128xf32>
    %276 = arith.mulf %272, %272 : vector<4x128xf32>
    %cst_194 = arith.constant dense<0.000000e+00> : vector<128xf32>
    %277 = vector.multi_reduction <add>, %276, %cst_194 [0] : vector<4x128xf32> to vector<128xf32>
    %278 = vector.shape_cast %277 : vector<128xf32> to vector<1x128xf32>
    %279 = arith.addf %275, %278 : vector<1x128xf32>
    %cst_195 = arith.constant 1.250000e-01 : f32
    %280 = vector.broadcast %cst_195 : f32 to vector<1x128xf32>
    %281 = arith.mulf %279, %280 : vector<1x128xf32>
    %cst_196 = arith.constant 9.99999974E-6 : f32
    %282 = vector.broadcast %cst_196 : f32 to vector<1x128xf32>
    %283 = arith.addf %281, %282 : vector<1x128xf32>
    %284 = math.rsqrt %283 : vector<1x128xf32>
    %285 = arith.mulf %284, %256 : vector<1x128xf32>
    %286 = vector.broadcast %285 : vector<1x128xf32> to vector<4x128xf32>
    %287 = arith.mulf %270, %286 : vector<4x128xf32>
    %288 = vector.broadcast %257 : vector<1x128xf32> to vector<4x128xf32>
    %289 = arith.addf %287, %288 : vector<4x128xf32>
    %290 = vector.broadcast %285 : vector<1x128xf32> to vector<4x128xf32>
    %291 = arith.mulf %272, %290 : vector<4x128xf32>
    %292 = vector.broadcast %257 : vector<1x128xf32> to vector<4x128xf32>
    %293 = arith.addf %291, %292 : vector<4x128xf32>
    %c0_197 = arith.constant 0 : index
    %c0_198 = arith.constant 0 : index
    %294 = vector.load %arg15[%c0_197, %c0_198] : memref<128x128xbf16, #tpu.memory_space<vmem>>, vector<128x128xbf16>
    %c0_199 = arith.constant 0 : index
    %c0_200 = arith.constant 0 : index
    %295 = vector.load %arg16[%c0_199, %c0_200] : memref<1x128xf32, #tpu.memory_space<vmem>>, vector<1x128xf32>
    %cst_201 = arith.constant dense<0.000000e+00> : vector<128xf32>
    %296 = vector.multi_reduction <add>, %289, %cst_201 [0] : vector<4x128xf32> to vector<128xf32>
    %297 = vector.shape_cast %296 : vector<128xf32> to vector<1x128xf32>
    %cst_202 = arith.constant 4.000000e+00 : f32
    %298 = vector.broadcast %cst_202 : f32 to vector<1x128xf32>
    %299 = arith.divf %297, %298 : vector<1x128xf32>
    %300 = arith.truncf %299 : vector<1x128xf32> to vector<1x128xbf16>
    %cst_203 = arith.constant dense<0.000000e+00> : vector<1x128xf32>
    %301 = tpu.matmul %300, %294, %cst_203 {dimension_numbers = #tpu.dot_dimension_numbers<[1], [0], [0], [1], [0, 0, 1, 1], [], []>} : vector<1x128xbf16>, vector<128x128xbf16>, vector<1x128xf32> -> vector<1x128xf32>
    %302 = arith.addf %301, %295 : vector<1x128xf32>
    %c0_204 = arith.constant 0 : index
    %c0_205 = arith.constant 0 : index
    %c0_206 = arith.constant 0 : index
    %303 = vector.load %arg17[%c0_204, %c0_205, %c0_206] : memref<2x1x128xf32, #tpu.memory_space<vmem>>, vector<1x1x128xf32>
    %304 = vector.shape_cast %303 : vector<1x1x128xf32> to vector<1x128xf32>
    %305 = vector.shape_cast %302 : vector<1x128xf32> to vector<1x1x128xf32>
    tpu.vector_store %arg17[%c0_204, %c0_205, %c0_206], %305 {strides = array<i32>} : memref<2x1x128xf32, #tpu.memory_space<vmem>>, vector<1x1x128xf32>,
    %cst_207 = arith.constant dense<0.000000e+00> : vector<128xf32>
    %306 = vector.multi_reduction <add>, %293, %cst_207 [0] : vector<4x128xf32> to vector<128xf32>
    %307 = vector.shape_cast %306 : vector<128xf32> to vector<1x128xf32>
    %cst_208 = arith.constant 4.000000e+00 : f32
    %308 = vector.broadcast %cst_208 : f32 to vector<1x128xf32>
    %309 = arith.divf %307, %308 : vector<1x128xf32>
    %310 = arith.truncf %309 : vector<1x128xf32> to vector<1x128xbf16>
    %cst_209 = arith.constant dense<0.000000e+00> : vector<1x128xf32>
    %311 = tpu.matmul %310, %294, %cst_209 {dimension_numbers = #tpu.dot_dimension_numbers<[1], [0], [0], [1], [0, 0, 1, 1], [], []>} : vector<1x128xbf16>, vector<128x128xbf16>, vector<1x128xf32> -> vector<1x128xf32>
    %312 = arith.addf %311, %295 : vector<1x128xf32>
    %c1_210 = arith.constant 1 : index
    %c0_211 = arith.constant 0 : index
    %c0_212 = arith.constant 0 : index
    %313 = vector.load %arg17[%c1_210, %c0_211, %c0_212] : memref<2x1x128xf32, #tpu.memory_space<vmem>>, vector<1x1x128xf32>
    %314 = vector.shape_cast %313 : vector<1x1x128xf32> to vector<1x128xf32>
    %315 = vector.shape_cast %312 : vector<1x128xf32> to vector<1x1x128xf32>
    tpu.vector_store %arg17[%c1_210, %c0_211, %c0_212], %315 {strides = array<i32>} : memref<2x1x128xf32, #tpu.memory_space<vmem>>, vector<1x1x128xf32>,
    return
  }
}

</mosaic_0001>

<llo_original>
// kernel: simple_cnn_forward.1
$region0: #{simple_cnn_forward.1}
  #allocation0 [shape = 'u32[]', space=smem, size = 0x4, offset = 0x4, fixed_abs, tag = 'smem constant byte address 0x4 - core index']
  #allocation1 [shape = 'u32[144,128]{1,0:T(1,128)}', space=vmem, size = 0x12000, scoped, tag = 'internal scratch']
  %s0 = inlined_call_operand.vmem [shape: bf16[2,225,27], index: 0, kind: input, shape index: {}]
  %s1 = inlined_call_operand.vmem [shape: bf16[27,128], index: 1, kind: input, shape index: {}]
  %s2 = inlined_call_operand.vmem [shape: f32[1,128], index: 2, kind: input, shape index: {}]
  %s3 = inlined_call_operand.vmem [shape: f32[1,128], index: 3, kind: input, shape index: {}]
  %s4 = inlined_call_operand.vmem [shape: f32[1,128], index: 4, kind: input, shape index: {}]
  %s5 = inlined_call_operand.vmem [shape: bf16[9,36,225], index: 5, kind: input, shape index: {}]
  %s6 = inlined_call_operand.vmem [shape: bf16[1152,128], index: 6, kind: input, shape index: {}]
  %s7 = inlined_call_operand.vmem [shape: f32[1,128], index: 7, kind: input, shape index: {}]
  %s8 = inlined_call_operand.vmem [shape: f32[1,128], index: 8, kind: input, shape index: {}]
  %s9 = inlined_call_operand.vmem [shape: f32[1,128], index: 9, kind: input, shape index: {}]
  %s10 = inlined_call_operand.vmem [shape: bf16[9,4,36], index: 10, kind: input, shape index: {}]
  %s11 = inlined_call_operand.vmem [shape: bf16[1152,128], index: 11, kind: input, shape index: {}]
  %s12 = inlined_call_operand.vmem [shape: f32[1,128], index: 12, kind: input, shape index: {}]
  %s13 = inlined_call_operand.vmem [shape: f32[1,128], index: 13, kind: input, shape index: {}]
  %s14 = inlined_call_operand.vmem [shape: f32[1,128], index: 14, kind: input, shape index: {}]
  %s15 = inlined_call_operand.vmem [shape: bf16[128,128], index: 15, kind: input, shape index: {}]
  %s16 = inlined_call_operand.vmem [shape: f32[1,128], index: 16, kind: input, shape index: {}]
  %s17 = inlined_call_operand.vmem [shape: f32[2,1,128], index: 17, kind: output, shape index: {}]
  %s18 = sld [smem:[#allocation0]]
  $region78: #{simple_cnn_forward.1} parent=0
    _
  %s20 = ssub.s32 1, %s18
  %s21 = scalar_select 0, %s20, %s18
  // Predicated region
  $region2: #{simple_cnn_forward.1} parent=0 // pred_check
    _
  $region3: #{simple_cnn_forward.1} parent=0 // pred_check_branch
    %23 = sbr.rel (0) target = $region5
  $region4: #{simple_cnn_forward.1} parent=0 // pred_region
    _
  $region5: #{simple_cnn_forward.1} parent=0 // pred_fallthru
    _
  // Predicated region
  $region6: #{simple_cnn_forward.1} parent=0 // pred_check
    _
  $region7: #{simple_cnn_forward.1} parent=0 // pred_check_branch
    %25 = sbr.rel (0) target = $region9
  $region8: #{simple_cnn_forward.1} parent=0 // pred_region
    _
  $region9: #{simple_cnn_forward.1} parent=0 // pred_fallthru
    _
  // Predicated region
  $region10: #{simple_cnn_forward.1} parent=0 // pred_check
    _
  $region11: #{simple_cnn_forward.1} parent=0 // pred_check_branch
    %27 = sbr.rel (0) target = $region13
  $region12: #{simple_cnn_forward.1} parent=0 // pred_region
    _
  $region13: #{simple_cnn_forward.1} parent=0 // pred_fallthru
    _
  // Predicated region
  $region14: #{simple_cnn_forward.1} parent=0 // pred_check
    _
  $region15: #{simple_cnn_forward.1} parent=0 // pred_check_branch
    %29 = sbr.rel (0) target = $region17
  $region16: #{simple_cnn_forward.1} parent=0 // pred_region
    _
  $region17: #{simple_cnn_forward.1} parent=0 // pred_fallthru
    _
  // Predicated region
  $region18: #{simple_cnn_forward.1} parent=0 // pred_check
    _
  $region19: #{simple_cnn_forward.1} parent=0 // pred_check_branch
    %31 = sbr.rel (0) target = $region21
  $region20: #{simple_cnn_forward.1} parent=0 // pred_region
    _
  $region21: #{simple_cnn_forward.1} parent=0 // pred_fallthru
    _
  // Predicated region
  $region22: #{simple_cnn_forward.1} parent=0 // pred_check
    _
  $region23: #{simple_cnn_forward.1} parent=0 // pred_check_branch
    %33 = sbr.rel (0) target = $region25
  $region24: #{simple_cnn_forward.1} parent=0 // pred_region
    _
  $region25: #{simple_cnn_forward.1} parent=0 // pred_fallthru
    _
  // Predicated region
  $region26: #{simple_cnn_forward.1} parent=0 // pred_check
    _
  $region27: #{simple_cnn_forward.1} parent=0 // pred_check_branch
    %35 = sbr.rel (0) target = $region29
  $region28: #{simple_cnn_forward.1} parent=0 // pred_region
    _
  $region29: #{simple_cnn_forward.1} parent=0 // pred_fallthru
    _
  // Predicated region
  $region30: #{simple_cnn_forward.1} parent=0 // pred_check
    _
  $region31: #{simple_cnn_forward.1} parent=0 // pred_check_branch
    %37 = sbr.rel (0) target = $region33
  $region32: #{simple_cnn_forward.1} parent=0 // pred_region
    _
  $region33: #{simple_cnn_forward.1} parent=0 // pred_fallthru
    _
  // Predicated region
  $region34: #{simple_cnn_forward.1} parent=0 // pred_check
    _
  $region35: #{simple_cnn_forward.1} parent=0 // pred_check_branch
    %39 = sbr.rel (0) target = $region37
  $region36: #{simple_cnn_forward.1} parent=0 // pred_region
    _
  $region37: #{simple_cnn_forward.1} parent=0 // pred_fallthru
    _
  // Predicated region
  $region38: #{simple_cnn_forward.1} parent=0 // pred_check
    _
  $region39: #{simple_cnn_forward.1} parent=0 // pred_check_branch
    %41 = sbr.rel (0) target = $region41
  $region40: #{simple_cnn_forward.1} parent=0 // pred_region
    _
  $region41: #{simple_cnn_forward.1} parent=0 // pred_fallthru
    _
  // Predicated region
  $region42: #{simple_cnn_forward.1} parent=0 // pred_check
    _
  $region43: #{simple_cnn_forward.1} parent=0 // pred_check_branch
    %43 = sbr.rel (0) target = $region45
  $region44: #{simple_cnn_forward.1} parent=0 // pred_region
    _
  $region45: #{simple_cnn_forward.1} parent=0 // pred_fallthru
    _
  // Predicated region
  $region46: #{simple_cnn_forward.1} parent=0 // pred_check
    _
  $region47: #{simple_cnn_forward.1} parent=0 // pred_check_branch
    %45 = sbr.rel (0) target = $region49
  $region48: #{simple_cnn_forward.1} parent=0 // pred_region
    _
  $region49: #{simple_cnn_forward.1} parent=0 // pred_fallthru
    _
  // Predicated region
  $region50: #{simple_cnn_forward.1} parent=0 // pred_check
    _
  $region51: #{simple_cnn_forward.1} parent=0 // pred_check_branch
    %47 = sbr.rel (0) target = $region53
  $region52: #{simple_cnn_forward.1} parent=0 // pred_region
    _
  $region53: #{simple_cnn_forward.1} parent=0 // pred_fallthru
    _
  // Predicated region
  $region54: #{simple_cnn_forward.1} parent=0 // pred_check
    _
  $region55: #{simple_cnn_forward.1} parent=0 // pred_check_branch
    %49 = sbr.rel (0) target = $region57
  $region56: #{simple_cnn_forward.1} parent=0 // pred_region
    _
  $region57: #{simple_cnn_forward.1} parent=0 // pred_fallthru
    _
  // Predicated region
  $region58: #{simple_cnn_forward.1} parent=0 // pred_check
    _
  $region59: #{simple_cnn_forward.1} parent=0 // pred_check_branch
    %51 = sbr.rel (0) target = $region61
  $region60: #{simple_cnn_forward.1} parent=0 // pred_region
    _
  $region61: #{simple_cnn_forward.1} parent=0 // pred_fallthru
    _
  // Predicated region
  $region62: #{simple_cnn_forward.1} parent=0 // pred_check
    _
  $region63: #{simple_cnn_forward.1} parent=0 // pred_check_branch
    %53 = sbr.rel (0) target = $region65
  $region64: #{simple_cnn_forward.1} parent=0 // pred_region
    _
  $region65: #{simple_cnn_forward.1} parent=0 // pred_fallthru
    _
  // Predicated region
  $region66: #{simple_cnn_forward.1} parent=0 // pred_check
    _
  $region67: #{simple_cnn_forward.1} parent=0 // pred_check_branch
    %55 = sbr.rel (0) target = $region69
  $region68: #{simple_cnn_forward.1} parent=0 // pred_region
    _
  $region69: #{simple_cnn_forward.1} parent=0 // pred_fallthru
    _
  %v57 = vld [vmem:[%s1] sm:$0xf]
  %v58 = vld [vmem:[%s1 + $0x4] sm:$0xf]
  %v59 = vld [vmem:[%s1 + $0x8] sm:$0xf]
  %v60 = vld [vmem:[%s1 + $0xc] sm:$0x3]
  %v61 = vld [vmem:[%s2] sm:$0x1]
  %v62 = vld [vmem:[%s0] sm:$0xf]
  %v63 = vld [vmem:[%s0 + $0x4] sm:$0xf]
  %v64 = vld [vmem:[%s0 + $0x8] sm:$0xf]
  %v65 = vld [vmem:[%s0 + $0xc] sm:$0xf]
  %v66 = vld [vmem:[%s0 + $0x10] sm:$0xf]
  %v67 = vld [vmem:[%s0 + $0x14] sm:$0xf]
  %v68 = vld [vmem:[%s0 + $0x18] sm:$0xf]
  %v69 = vld [vmem:[%s0 + $0x1c] sm:$0xf]
  %v70 = vld [vmem:[%s0 + $0x20] sm:$0xf]
  %v71 = vld [vmem:[%s0 + $0x24] sm:$0xf]
  %v72 = vld [vmem:[%s0 + $0x28] sm:$0xf]
  %v73 = vld [vmem:[%s0 + $0x2c] sm:$0xf]
  %v74 = vld [vmem:[%s0 + $0x30] sm:$0xf]
  %v75 = vld [vmem:[%s0 + $0x34] sm:$0xf]
  %v76 = vld [vmem:[%s0 + $0x38] sm:$0xf]
  %v77 = vld [vmem:[%s0 + $0x3c] sm:$0xf]
  %v78 = vld [vmem:[%s0 + $0x40] sm:$0xf]
  %v79 = vld [vmem:[%s0 + $0x44] sm:$0xf]
  %v80 = vld [vmem:[%s0 + $0x48] sm:$0xf]
  %v81 = vld [vmem:[%s0 + $0x4c] sm:$0xf]
  %v82 = vld [vmem:[%s0 + $0x50] sm:$0xf]
  %v83 = vld [vmem:[%s0 + $0x54] sm:$0xf]
  %v84 = vld [vmem:[%s0 + $0x58] sm:$0xf]
  %v85 = vld [vmem:[%s0 + $0x5c] sm:$0xf]
  %v86 = vld [vmem:[%s0 + $0x60] sm:$0xf]
  %v87 = vld [vmem:[%s0 + $0x64] sm:$0xf]
  %v88 = vld [vmem:[%s0 + $0x68] sm:$0xf]
  %v89 = vld [vmem:[%s0 + $0x6c] sm:$0xf]
  %v90 = vld [vmem:[%s0 + $0x70] sm:$0x1]
  %v92 = vlaneseq
  %v93 = vshrl.u32 %v92, 7
  %v94 = vsub.s32 0, %v93
  %v95 = vrot.slane %v61, %v94
  %v126 = vunpack.c.l.b16 %v62
  %v127 = vunpack.c.l.b16 %v63
  %v128 = vunpack.c.l.b16 %v64
  %v129 = vunpack.c.l.b16 %v65
  %v130 = vunpack.c.l.b16 %v66
  %v131 = vunpack.c.l.b16 %v67
  %v132 = vunpack.c.l.b16 %v68
  %v133 = vunpack.c.l.b16 %v69
  %v134 = vunpack.c.l.b16 %v70
  %v135 = vunpack.c.l.b16 %v71
  %v136 = vunpack.c.l.b16 %v72
  %v137 = vunpack.c.l.b16 %v73
  %v138 = vunpack.c.l.b16 %v74
  %v139 = vunpack.c.l.b16 %v75
  %v140 = vunpack.c.l.b16 %v76
  %v141 = vunpack.c.l.b16 %v77
  %v142 = vunpack.c.l.b16 %v78
  %v143 = vunpack.c.l.b16 %v79
  %v144 = vunpack.c.l.b16 %v80
  %v145 = vunpack.c.l.b16 %v81
  %v146 = vunpack.c.l.b16 %v82
  %v147 = vunpack.c.l.b16 %v83
  %v148 = vunpack.c.l.b16 %v84
  %v149 = vunpack.c.l.b16 %v85
  %v150 = vunpack.c.l.b16 %v86
  %v151 = vunpack.c.l.b16 %v87
  %v152 = vunpack.c.l.b16 %v88
  %v153 = vunpack.c.l.b16 %v89
  %v154 = vunpack.c.l.b16 %v90
  %v155 = vpack.c.b16 %v127, %v126
  %v156 = vpack.c.b16 %v129, %v128
  %v157 = vpack.c.b16 %v131, %v130
  %v158 = vpack.c.b16 %v133, %v132
  %v159 = vpack.c.b16 %v135, %v134
  %v160 = vpack.c.b16 %v137, %v136
  %v161 = vpack.c.b16 %v139, %v138
  %v162 = vpack.c.b16 %v141, %v140
  %v163 = vpack.c.b16 %v143, %v142
  %v164 = vpack.c.b16 %v145, %v144
  %v165 = vpack.c.b16 %v147, %v146
  %v166 = vpack.c.b16 %v149, %v148
  %v167 = vpack.c.b16 %v151, %v150
  %v168 = vpack.c.b16 %v153, %v152
  %v169 = vpack.c.b16 %v154, %v154
  %v174 = vunpack.c.l.b16 %v57
  %v175 = vunpack.c.l.b16 %v58
  %v176 = vunpack.c.l.b16 %v59
  %v177 = vunpack.c.l.b16 %v60
  %v178 = vpack.c.b16 %v175, %v174
  %v179 = vpack.c.b16 %v177, %v176
  %vm181 = vcmask 220160
  %v183 = vsel %vm181, %v155, 0
  %v186 = vsel %vm181, %v156, 0
  %v189 = vsel %vm181, %v157, 0
  %v192 = vsel %vm181, %v158, 0
  %v195 = vsel %vm181, %v159, 0
  %v198 = vsel %vm181, %v160, 0
  %v201 = vsel %vm181, %v161, 0
  %v204 = vsel %vm181, %v162, 0
  %v207 = vsel %vm181, %v163, 0
  %v210 = vsel %vm181, %v164, 0
  %v213 = vsel %vm181, %v165, 0
  %v216 = vsel %vm181, %v166, 0
  %v219 = vsel %vm181, %v167, 0
  %v222 = vsel %vm181, %v168, 0
  %v225 = vsel %vm181, %v169, 0
  %vm227 = vcmask 1044480
  %vm228 = vcmask 1045504
  %v229 = vsel %vm227, 4294967295, 65535
  %v230 = vsel %vm228, %v229, 0
  %v232 = vand.u32 %v179, %v230
  %234 = vmatprep.subr.bf16.mxu0 0
  %235 = vmatpush1.bf16.msra.mxu0 0
  %236 = vmatprep.subr.bf16.mxu0 0
  %237 = vmatpush1.bf16.msra.mxu0 0
  %238 = vmatprep.subr.bf16.mxu0 0
  %239 = vmatpush1.bf16.msra.mxu0 0
  %240 = vmatprep.subr.bf16.mxu0 0
  %241 = vmatpush1.bf16.msra.mxu0 0
  %242 = vmatprep.subr.bf16.mxu0 0
  %243 = vmatpush1.bf16.msra.mxu0 0
  %244 = vmatprep.subr.bf16.mxu0 0
  %245 = vmatpush1.bf16.msra.mxu0 0
  %246 = vmatprep.subr.bf16.mxu0 0
  %247 = vmatpush1.bf16.msra.mxu0 %v232
  %248 = vmatprep.subr.bf16.mxu0 0
  %249 = vmatpush1.bf16.msra.mxu0 %v178
  %250 = vmatprep.subr.bf16.mxu0 0
  %251 = vmatpush2.bf16.msra.mxu0 0
  %252 = vmatprep.subr.bf16.mxu0 0
  %253 = vmatpush2.bf16.msra.mxu0 0
  %254 = vmatprep.subr.bf16.mxu0 0
  %255 = vmatpush2.bf16.msra.mxu0 0
  %256 = vmatprep.subr.bf16.mxu0 0
  %257 = vmatpush2.bf16.msra.mxu0 0
  %258 = vmatprep.subr.bf16.mxu0 0
  %259 = vmatpush2.bf16.msra.mxu0 0
  %260 = vmatprep.subr.bf16.mxu0 0
  %261 = vmatpush2.bf16.msra.mxu0 0
  %262 = vmatprep.subr.bf16.mxu0 0
  %263 = vmatpush2.bf16.msra.mxu0 0
  %264 = vmatprep.subr.bf16.mxu0 0
  %265 = vmatpush2.bf16.msra.mxu0 0
  %266 = vmatprep.mubr.bf16.mxu0 0
  %267 = vmatmul.mubr.bf16.gmra.mxu0 %v183
  %v268 = vpop.f32.mrf.mxu0
  %v269 = vadd.f32 %v95, %v268
  %v270 = vpop.f32.mrf.mxu0
  %v271 = vpop.f32.mrf.mxu0
  %v272 = vadd.f32 %v95, %v271
  %v273 = vpop.f32.mrf.mxu0
  %274 = vmatprep.mubr.bf16.mxu0 0
  %275 = vmatmul.mubr.bf16.gmra.mxu0 %v186
  %v276 = vpop.f32.mrf.mxu0
  %v277 = vadd.f32 %v95, %v276
  %v278 = vpop.f32.mrf.mxu0
  %v279 = vpop.f32.mrf.mxu0
  %v280 = vadd.f32 %v95, %v279
  %v281 = vpop.f32.mrf.mxu0
  %282 = vmatprep.mubr.bf16.mxu0 0
  %283 = vmatmul.mubr.bf16.gmra.mxu0 %v189
  %v284 = vpop.f32.mrf.mxu0
  %v285 = vadd.f32 %v95, %v284
  %v286 = vpop.f32.mrf.mxu0
  %v287 = vpop.f32.mrf.mxu0
  %v288 = vadd.f32 %v95, %v287
  %v289 = vpop.f32.mrf.mxu0
  %290 = vmatprep.mubr.bf16.mxu0 0
  %291 = vmatmul.mubr.bf16.gmra.mxu0 %v192
  %v292 = vpop.f32.mrf.mxu0
  %v293 = vadd.f32 %v95, %v292
  %v294 = vpop.f32.mrf.mxu0
  %v295 = vpop.f32.mrf.mxu0
  %v296 = vadd.f32 %v95, %v295
  %v297 = vpop.f32.mrf.mxu0
  %298 = vmatprep.mubr.bf16.mxu0 0
  %299 = vmatmul.mubr.bf16.gmra.mxu0 %v195
  %v300 = vpop.f32.mrf.mxu0
  %v301 = vadd.f32 %v95, %v300
  %v302 = vpop.f32.mrf.mxu0
  %v303 = vpop.f32.mrf.mxu0
  %v304 = vadd.f32 %v95, %v303
  %v305 = vpop.f32.mrf.mxu0
  %306 = vmatprep.mubr.bf16.mxu0 0
  %307 = vmatmul.mubr.bf16.gmra.mxu0 %v198
  %v308 = vpop.f32.mrf.mxu0
  %v309 = vadd.f32 %v95, %v308
  %v310 = vpop.f32.mrf.mxu0
  %v311 = vpop.f32.mrf.mxu0
  %v312 = vadd.f32 %v95, %v311
  %v313 = vpop.f32.mrf.mxu0
  %314 = vmatprep.mubr.bf16.mxu0 0
  %315 = vmatmul.mubr.bf16.gmra.mxu0 %v201
  %v316 = vpop.f32.mrf.mxu0
  %v317 = vadd.f32 %v95, %v316
  %v318 = vpop.f32.mrf.mxu0
  %v319 = vpop.f32.mrf.mxu0
  %v320 = vadd.f32 %v95, %v319
  %v321 = vpop.f32.mrf.mxu0
  %322 = vmatprep.mubr.bf16.mxu0 0
  %323 = vmatmul.mubr.bf16.gmra.mxu0 %v204
  %v324 = vpop.f32.mrf.mxu0
  %v325 = vadd.f32 %v95, %v324
  %v326 = vpop.f32.mrf.mxu0
  %v327 = vpop.f32.mrf.mxu0
  %v328 = vadd.f32 %v95, %v327
  %v329 = vpop.f32.mrf.mxu0
  %330 = vmatprep.mubr.bf16.mxu0 0
  %331 = vmatmul.mubr.bf16.gmra.mxu0 %v207
  %v332 = vpop.f32.mrf.mxu0
  %v333 = vadd.f32 %v95, %v332
  %v334 = vpop.f32.mrf.mxu0
  %v335 = vpop.f32.mrf.mxu0
  %v336 = vadd.f32 %v95, %v335
  %v337 = vpop.f32.mrf.mxu0
  %338 = vmatprep.mubr.bf16.mxu0 0
  %339 = vmatmul.mubr.bf16.gmra.mxu0 %v210
  %v340 = vpop.f32.mrf.mxu0
  %v341 = vadd.f32 %v95, %v340
  %v342 = vpop.f32.mrf.mxu0
  %v343 = vpop.f32.mrf.mxu0
  %v344 = vadd.f32 %v95, %v343
  %v345 = vpop.f32.mrf.mxu0
  %346 = vmatprep.mubr.bf16.mxu0 0
  %347 = vmatmul.mubr.bf16.gmra.mxu0 %v213
  %v348 = vpop.f32.mrf.mxu0
  %v349 = vadd.f32 %v95, %v348
  %v350 = vpop.f32.mrf.mxu0
  %v351 = vpop.f32.mrf.mxu0
  %v352 = vadd.f32 %v95, %v351
  %v353 = vpop.f32.mrf.mxu0
  %354 = vmatprep.mubr.bf16.mxu0 0
  %355 = vmatmul.mubr.bf16.gmra.mxu0 %v216
  %v356 = vpop.f32.mrf.mxu0
  %v357 = vadd.f32 %v95, %v356
  %v358 = vpop.f32.mrf.mxu0
  %v359 = vpop.f32.mrf.mxu0
  %v360 = vadd.f32 %v95, %v359
  %v361 = vpop.f32.mrf.mxu0
  %362 = vmatprep.mubr.bf16.mxu0 0
  %363 = vmatmul.mubr.bf16.gmra.mxu0 %v219
  %v364 = vpop.f32.mrf.mxu0
  %v365 = vadd.f32 %v95, %v364
  %v366 = vpop.f32.mrf.mxu0
  %v367 = vpop.f32.mrf.mxu0
  %v368 = vadd.f32 %v95, %v367
  %v369 = vpop.f32.mrf.mxu0
  %370 = vmatprep.mubr.bf16.mxu0 0
  %371 = vmatmul.mubr.bf16.gmra.mxu0 %v222
  %v372 = vpop.f32.mrf.mxu0
  %v373 = vadd.f32 %v95, %v372
  %v374 = vpop.f32.mrf.mxu0
  %v375 = vpop.f32.mrf.mxu0
  %v376 = vadd.f32 %v95, %v375
  %v377 = vpop.f32.mrf.mxu0
  %378 = vmatprep.mubr.bf16.mxu0 0
  %379 = vmatmul.mubr.bf16.gmra.mxu0 %v225
  %v380 = vpop.f32.mrf.mxu0
  %v381 = vadd.f32 %v95, %v380
  %v382 = vpop.f32.mrf.mxu0
  %v383 = vpop.f32.mrf.mxu0
  %v384 = vpop.f32.mrf.mxu0
  %385 = vdwg.mxu0
  %s386 = scalar_lea.vmem %s0, 116
  %v387 = vld [vmem:[%s386] sm:$0xf]
  %v388 = vld [vmem:[%s386 + $0x4] sm:$0xf]
  %v389 = vld [vmem:[%s386 + $0x8] sm:$0xf]
  %v390 = vld [vmem:[%s386 + $0xc] sm:$0xf]
  %v391 = vld [vmem:[%s386 + $0x10] sm:$0xf]
  %v392 = vld [vmem:[%s386 + $0x14] sm:$0xf]
  %v393 = vld [vmem:[%s386 + $0x18] sm:$0xf]
  %v394 = vld [vmem:[%s386 + $0x1c] sm:$0xf]
  %v395 = vld [vmem:[%s386 + $0x20] sm:$0xf]
  %v396 = vld [vmem:[%s386 + $0x24] sm:$0xf]
  %v397 = vld [vmem:[%s386 + $0x28] sm:$0xf]
  %v398 = vld [vmem:[%s386 + $0x2c] sm:$0xf]
  %v399 = vld [vmem:[%s386 + $0x30] sm:$0xf]
  %v400 = vld [vmem:[%s386 + $0x34] sm:$0xf]
  %v401 = vld [vmem:[%s386 + $0x38] sm:$0xf]
  %v402 = vld [vmem:[%s386 + $0x3c] sm:$0xf]
  %v403 = vld [vmem:[%s386 + $0x40] sm:$0xf]
  %v404 = vld [vmem:[%s386 + $0x44] sm:$0xf]
  %v405 = vld [vmem:[%s386 + $0x48] sm:$0xf]
  %v406 = vld [vmem:[%s386 + $0x4c] sm:$0xf]
  %v407 = vld [vmem:[%s386 + $0x50] sm:$0xf]
  %v408 = vld [vmem:[%s386 + $0x54] sm:$0xf]
  %v409 = vld [vmem:[%s386 + $0x58] sm:$0xf]
  %v410 = vld [vmem:[%s386 + $0x5c] sm:$0xf]
  %v411 = vld [vmem:[%s386 + $0x60] sm:$0xf]
  %v412 = vld [vmem:[%s386 + $0x64] sm:$0xf]
  %v413 = vld [vmem:[%s386 + $0x68] sm:$0xf]
  %v414 = vld [vmem:[%s386 + $0x6c] sm:$0xf]
  %v415 = vld [vmem:[%s386 + $0x70] sm:$0x1]
  %v445 = vunpack.c.l.b16 %v387
  %v446 = vunpack.c.l.b16 %v388
  %v447 = vunpack.c.l.b16 %v389
  %v448 = vunpack.c.l.b16 %v390
  %v449 = vunpack.c.l.b16 %v391
  %v450 = vunpack.c.l.b16 %v392
  %v451 = vunpack.c.l.b16 %v393
  %v452 = vunpack.c.l.b16 %v394
  %v453 = vunpack.c.l.b16 %v395
  %v454 = vunpack.c.l.b16 %v396
  %v455 = vunpack.c.l.b16 %v397
  %v456 = vunpack.c.l.b16 %v398
  %v457 = vunpack.c.l.b16 %v399
  %v458 = vunpack.c.l.b16 %v400
  %v459 = vunpack.c.l.b16 %v401
  %v460 = vunpack.c.l.b16 %v402
  %v461 = vunpack.c.l.b16 %v403
  %v462 = vunpack.c.l.b16 %v404
  %v463 = vunpack.c.l.b16 %v405
  %v464 = vunpack.c.l.b16 %v406
  %v465 = vunpack.c.l.b16 %v407
  %v466 = vunpack.c.l.b16 %v408
  %v467 = vunpack.c.l.b16 %v409
  %v468 = vunpack.c.l.b16 %v410
  %v469 = vunpack.c.l.b16 %v411
  %v470 = vunpack.c.l.b16 %v412
  %v471 = vunpack.c.l.b16 %v413
  %v472 = vunpack.c.l.b16 %v414
  %v473 = vunpack.c.l.b16 %v415
  %v474 = vpack.c.b16 %v446, %v445
  %v475 = vpack.c.b16 %v448, %v447
  %v476 = vpack.c.b16 %v450, %v449
  %v477 = vpack.c.b16 %v452, %v451
  %v478 = vpack.c.b16 %v454, %v453
  %v479 = vpack.c.b16 %v456, %v455
  %v480 = vpack.c.b16 %v458, %v457
  %v481 = vpack.c.b16 %v460, %v459
  %v482 = vpack.c.b16 %v462, %v461
  %v483 = vpack.c.b16 %v464, %v463
  %v484 = vpack.c.b16 %v466, %v465
  %v485 = vpack.c.b16 %v468, %v467
  %v486 = vpack.c.b16 %v470, %v469
  %v487 = vpack.c.b16 %v472, %v471
  %v488 = vpack.c.b16 %v473, %v473
  %v490 = vsel %vm181, %v474, 0
  %v493 = vsel %vm181, %v475, 0
  %v496 = vsel %vm181, %v476, 0
  %v499 = vsel %vm181, %v477, 0
  %v502 = vsel %vm181, %v478, 0
  %v505 = vsel %vm181, %v479, 0
  %v508 = vsel %vm181, %v480, 0
  %v511 = vsel %vm181, %v481, 0
  %v514 = vsel %vm181, %v482, 0
  %v517 = vsel %vm181, %v483, 0
  %v520 = vsel %vm181, %v484, 0
  %v523 = vsel %vm181, %v485, 0
  %v526 = vsel %vm181, %v486, 0
  %v529 = vsel %vm181, %v487, 0
  %v532 = vsel %vm181, %v488, 0
  %534 = vmatprep.subr.bf16.mxu0 0
  %535 = vmatpush1.bf16.msra.mxu0 0
  %536 = vmatprep.subr.bf16.mxu0 0
  %537 = vmatpush1.bf16.msra.mxu0 0
  %538 = vmatprep.subr.bf16.mxu0 0
  %539 = vmatpush1.bf16.msra.mxu0 0
  %540 = vmatprep.subr.bf16.mxu0 0
  %541 = vmatpush1.bf16.msra.mxu0 0
  %542 = vmatprep.subr.bf16.mxu0 0
  %543 = vmatpush1.bf16.msra.mxu0 0
  %544 = vmatprep.subr.bf16.mxu0 0
  %545 = vmatpush1.bf16.msra.mxu0 0
  %546 = vmatprep.subr.bf16.mxu0 0
  %547 = vmatpush1.bf16.msra.mxu0 %v232
  %548 = vmatprep.subr.bf16.mxu0 0
  %549 = vmatpush1.bf16.msra.mxu0 %v178
  %550 = vmatprep.subr.bf16.mxu0 0
  %551 = vmatpush2.bf16.msra.mxu0 0
  %552 = vmatprep.subr.bf16.mxu0 0
  %553 = vmatpush2.bf16.msra.mxu0 0
  %554 = vmatprep.subr.bf16.mxu0 0
  %555 = vmatpush2.bf16.msra.mxu0 0
  %556 = vmatprep.subr.bf16.mxu0 0
  %557 = vmatpush2.bf16.msra.mxu0 0
  %558 = vmatprep.subr.bf16.mxu0 0
  %559 = vmatpush2.bf16.msra.mxu0 0
  %560 = vmatprep.subr.bf16.mxu0 0
  %561 = vmatpush2.bf16.msra.mxu0 0
  %562 = vmatprep.subr.bf16.mxu0 0
  %563 = vmatpush2.bf16.msra.mxu0 0
  %564 = vmatprep.subr.bf16.mxu0 0
  %565 = vmatpush2.bf16.msra.mxu0 0
  %566 = vmatprep.mubr.bf16.mxu0 0
  %567 = vmatmul.mubr.bf16.gmra.mxu0 %v490
  %v568 = vpop.f32.mrf.mxu0
  %v569 = vadd.f32 %v95, %v568
  %v570 = vpop.f32.mrf.mxu0
  %v571 = vpop.f32.mrf.mxu0
  %v572 = vadd.f32 %v95, %v571
  %v573 = vpop.f32.mrf.mxu0
  %574 = vmatprep.mubr.bf16.mxu0 0
  %575 = vmatmul.mubr.bf16.gmra.mxu0 %v493
  %v576 = vpop.f32.mrf.mxu0
  %v577 = vadd.f32 %v95, %v576
  %v578 = vpop.f32.mrf.mxu0
  %v579 = vpop.f32.mrf.mxu0
  %v580 = vadd.f32 %v95, %v579
  %v581 = vpop.f32.mrf.mxu0
  %582 = vmatprep.mubr.bf16.mxu0 0
  %583 = vmatmul.mubr.bf16.gmra.mxu0 %v496
  %v584 = vpop.f32.mrf.mxu0
  %v585 = vadd.f32 %v95, %v584
  %v586 = vpop.f32.mrf.mxu0
  %v587 = vpop.f32.mrf.mxu0
  %v588 = vadd.f32 %v95, %v587
  %v589 = vpop.f32.mrf.mxu0
  %590 = vmatprep.mubr.bf16.mxu0 0
  %591 = vmatmul.mubr.bf16.gmra.mxu0 %v499
  %v592 = vpop.f32.mrf.mxu0
  %v593 = vadd.f32 %v95, %v592
  %v594 = vpop.f32.mrf.mxu0
  %v595 = vpop.f32.mrf.mxu0
  %v596 = vadd.f32 %v95, %v595
  %v597 = vpop.f32.mrf.mxu0
  %598 = vmatprep.mubr.bf16.mxu0 0
  %599 = vmatmul.mubr.bf16.gmra.mxu0 %v502
  %v600 = vpop.f32.mrf.mxu0
  %v601 = vadd.f32 %v95, %v600
  %v602 = vpop.f32.mrf.mxu0
  %v603 = vpop.f32.mrf.mxu0
  %v604 = vadd.f32 %v95, %v603
  %v605 = vpop.f32.mrf.mxu0
  %606 = vmatprep.mubr.bf16.mxu0 0
  %607 = vmatmul.mubr.bf16.gmra.mxu0 %v505
  %v608 = vpop.f32.mrf.mxu0
  %v609 = vadd.f32 %v95, %v608
  %v610 = vpop.f32.mrf.mxu0
  %v611 = vpop.f32.mrf.mxu0
  %v612 = vadd.f32 %v95, %v611
  %v613 = vpop.f32.mrf.mxu0
  %614 = vmatprep.mubr.bf16.mxu0 0
  %615 = vmatmul.mubr.bf16.gmra.mxu0 %v508
  %v616 = vpop.f32.mrf.mxu0
  %v617 = vadd.f32 %v95, %v616
  %v618 = vpop.f32.mrf.mxu0
  %v619 = vpop.f32.mrf.mxu0
  %v620 = vadd.f32 %v95, %v619
  %v621 = vpop.f32.mrf.mxu0
  %622 = vmatprep.mubr.bf16.mxu0 0
  %623 = vmatmul.mubr.bf16.gmra.mxu0 %v511
  %v624 = vpop.f32.mrf.mxu0
  %v625 = vadd.f32 %v95, %v624
  %v626 = vpop.f32.mrf.mxu0
  %v627 = vpop.f32.mrf.mxu0
  %v628 = vadd.f32 %v95, %v627
  %v629 = vpop.f32.mrf.mxu0
  %630 = vmatprep.mubr.bf16.mxu0 0
  %631 = vmatmul.mubr.bf16.gmra.mxu0 %v514
  %v632 = vpop.f32.mrf.mxu0
  %v633 = vadd.f32 %v95, %v632
  %v634 = vpop.f32.mrf.mxu0
  %v635 = vpop.f32.mrf.mxu0
  %v636 = vadd.f32 %v95, %v635
  %v637 = vpop.f32.mrf.mxu0
  %638 = vmatprep.mubr.bf16.mxu0 0
  %639 = vmatmul.mubr.bf16.gmra.mxu0 %v517
  %v640 = vpop.f32.mrf.mxu0
  %v641 = vadd.f32 %v95, %v640
  %v642 = vpop.f32.mrf.mxu0
  %v643 = vpop.f32.mrf.mxu0
  %v644 = vadd.f32 %v95, %v643
  %v645 = vpop.f32.mrf.mxu0
  %646 = vmatprep.mubr.bf16.mxu0 0
  %647 = vmatmul.mubr.bf16.gmra.mxu0 %v520
  %v648 = vpop.f32.mrf.mxu0
  %v649 = vadd.f32 %v95, %v648
  %v650 = vpop.f32.mrf.mxu0
  %v651 = vpop.f32.mrf.mxu0
  %v652 = vadd.f32 %v95, %v651
  %v653 = vpop.f32.mrf.mxu0
  %654 = vmatprep.mubr.bf16.mxu0 0
  %655 = vmatmul.mubr.bf16.gmra.mxu0 %v523
  %v656 = vpop.f32.mrf.mxu0
  %v657 = vadd.f32 %v95, %v656
  %v658 = vpop.f32.mrf.mxu0
  %v659 = vpop.f32.mrf.mxu0
  %v660 = vadd.f32 %v95, %v659
  %v661 = vpop.f32.mrf.mxu0
  %662 = vmatprep.mubr.bf16.mxu0 0
  %663 = vmatmul.mubr.bf16.gmra.mxu0 %v526
  %v664 = vpop.f32.mrf.mxu0
  %v665 = vadd.f32 %v95, %v664
  %v666 = vpop.f32.mrf.mxu0
  %v667 = vpop.f32.mrf.mxu0
  %v668 = vadd.f32 %v95, %v667
  %v669 = vpop.f32.mrf.mxu0
  %670 = vmatprep.mubr.bf16.mxu0 0
  %671 = vmatmul.mubr.bf16.gmra.mxu0 %v529
  %v672 = vpop.f32.mrf.mxu0
  %v673 = vadd.f32 %v95, %v672
  %v674 = vpop.f32.mrf.mxu0
  %v675 = vpop.f32.mrf.mxu0
  %v676 = vadd.f32 %v95, %v675
  %v677 = vpop.f32.mrf.mxu0
  %678 = vmatprep.mubr.bf16.mxu0 0
  %679 = vmatmul.mubr.bf16.gmra.mxu0 %v532
  %v680 = vpop.f32.mrf.mxu0
  %v681 = vadd.f32 %v95, %v680
  %v682 = vpop.f32.mrf.mxu0
  %v683 = vpop.f32.mrf.mxu0
  %v684 = vpop.f32.mrf.mxu0
  %685 = vdwg.mxu0
  %v686 = vld [vmem:[%s3] sm:$0x1]
  %v687 = vld [vmem:[%s4] sm:$0x1]
  %v688 = vmax.f32 %v269, 0.0
  %v689 = vmax.f32 %v272, 0.0
  %v690 = vmax.f32 %v277, 0.0
  %v691 = vmax.f32 %v280, 0.0
  %v692 = vmax.f32 %v285, 0.0
  %v693 = vmax.f32 %v288, 0.0
  %v694 = vmax.f32 %v293, 0.0
  %v695 = vmax.f32 %v296, 0.0
  %v696 = vmax.f32 %v301, 0.0
  %v697 = vmax.f32 %v304, 0.0
  %v698 = vmax.f32 %v309, 0.0
  %v699 = vmax.f32 %v312, 0.0
  %v700 = vmax.f32 %v317, 0.0
  %v701 = vmax.f32 %v320, 0.0
  %v702 = vmax.f32 %v325, 0.0
  %v703 = vmax.f32 %v328, 0.0
  %v704 = vmax.f32 %v333, 0.0
  %v705 = vmax.f32 %v336, 0.0
  %v706 = vmax.f32 %v341, 0.0
  %v707 = vmax.f32 %v344, 0.0
  %v708 = vmax.f32 %v349, 0.0
  %v709 = vmax.f32 %v352, 0.0
  %v710 = vmax.f32 %v357, 0.0
  %v711 = vmax.f32 %v360, 0.0
  %v712 = vmax.f32 %v365, 0.0
  %v713 = vmax.f32 %v368, 0.0
  %v714 = vmax.f32 %v373, 0.0
  %v715 = vmax.f32 %v376, 0.0
  %v716 = vmax.f32 %v381, 0.0
  %v717 = vmax.f32 %v569, 0.0
  %v718 = vmax.f32 %v572, 0.0
  %v719 = vmax.f32 %v577, 0.0
  %v720 = vmax.f32 %v580, 0.0
  %v721 = vmax.f32 %v585, 0.0
  %v722 = vmax.f32 %v588, 0.0
  %v723 = vmax.f32 %v593, 0.0
  %v724 = vmax.f32 %v596, 0.0
  %v725 = vmax.f32 %v601, 0.0
  %v726 = vmax.f32 %v604, 0.0
  %v727 = vmax.f32 %v609, 0.0
  %v728 = vmax.f32 %v612, 0.0
  %v729 = vmax.f32 %v617, 0.0
  %v730 = vmax.f32 %v620, 0.0
  %v731 = vmax.f32 %v625, 0.0
  %v732 = vmax.f32 %v628, 0.0
  %v733 = vmax.f32 %v633, 0.0
  %v734 = vmax.f32 %v636, 0.0
  %v735 = vmax.f32 %v641, 0.0
  %v736 = vmax.f32 %v644, 0.0
  %v737 = vmax.f32 %v649, 0.0
  %v738 = vmax.f32 %v652, 0.0
  %v739 = vmax.f32 %v657, 0.0
  %v740 = vmax.f32 %v660, 0.0
  %v741 = vmax.f32 %v665, 0.0
  %v742 = vmax.f32 %v668, 0.0
  %v743 = vmax.f32 %v673, 0.0
  %v744 = vmax.f32 %v676, 0.0
  %v745 = vmax.f32 %v681, 0.0
  %v746 = vadd.f32 %v688, %v689
  %v747 = vadd.f32 %v746, %v690
  %v748 = vadd.f32 %v747, %v691
  %v749 = vadd.f32 %v748, %v692
  %v750 = vadd.f32 %v749, %v693
  %v751 = vadd.f32 %v750, %v694
  %v752 = vadd.f32 %v751, %v695
  %v753 = vadd.f32 %v752, %v696
  %v754 = vadd.f32 %v753, %v697
  %v755 = vadd.f32 %v754, %v698
  %v756 = vadd.f32 %v755, %v699
  %v757 = vadd.f32 %v756, %v700
  %v758 = vadd.f32 %v757, %v701
  %v759 = vadd.f32 %v758, %v702
  %v760 = vadd.f32 %v759, %v703
  %v761 = vadd.f32 %v760, %v704
  %v762 = vadd.f32 %v761, %v705
  %v763 = vadd.f32 %v762, %v706
  %v764 = vadd.f32 %v763, %v707
  %v765 = vadd.f32 %v764, %v708
  %v766 = vadd.f32 %v765, %v709
  %v767 = vadd.f32 %v766, %v710
  %v768 = vadd.f32 %v767, %v711
  %v769 = vadd.f32 %v768, %v712
  %v770 = vadd.f32 %v769, %v713
  %v771 = vadd.f32 %v770, %v714
  %v772 = vadd.f32 %v771, %v715
  %vm773 = vcmask 1040384
  %v774 = vsel %vm773, %v716, 0.0
  %v775 = vadd.f32 %v772, %v774
  %v776 = vrot.slane %v775, 4
  %v777 = vadd.f32 %v775, %v776
  %v778 = vrot.slane %v777, 2
  %v779 = vadd.f32 %v777, %v778
  %v780 = vrot.slane %v779, 1
  %v781 = vadd.f32 %v779, %v780
  %v782 = vadd.f32 %v717, %v718
  %v783 = vadd.f32 %v782, %v719
  %v784 = vadd.f32 %v783, %v720
  %v785 = vadd.f32 %v784, %v721
  %v786 = vadd.f32 %v785, %v722
  %v787 = vadd.f32 %v786, %v723
  %v788 = vadd.f32 %v787, %v724
  %v789 = vadd.f32 %v788, %v725
  %v790 = vadd.f32 %v789, %v726
  %v791 = vadd.f32 %v790, %v727
  %v792 = vadd.f32 %v791, %v728
  %v793 = vadd.f32 %v792, %v729
  %v794 = vadd.f32 %v793, %v730
  %v795 = vadd.f32 %v794, %v731
  %v796 = vadd.f32 %v795, %v732
  %v797 = vadd.f32 %v796, %v733
  %v798 = vadd.f32 %v797, %v734
  %v799 = vadd.f32 %v798, %v735
  %v800 = vadd.f32 %v799, %v736
  %v801 = vadd.f32 %v800, %v737
  %v802 = vadd.f32 %v801, %v738
  %v803 = vadd.f32 %v802, %v739
  %v804 = vadd.f32 %v803, %v740
  %v805 = vadd.f32 %v804, %v741
  %v806 = vadd.f32 %v805, %v742
  %v807 = vadd.f32 %v806, %v743
  %v808 = vadd.f32 %v807, %v744
  %v809 = vsel %vm773, %v745, 0.0
  %v810 = vadd.f32 %v808, %v809
  %v811 = vrot.slane %v810, 4
  %v812 = vadd.f32 %v810, %v811
  %v813 = vrot.slane %v812, 2
  %v814 = vadd.f32 %v812, %v813
  %v815 = vrot.slane %v814, 1
  %v816 = vadd.f32 %v814, %v815
  %v817 = vadd.f32 %v781, %v816
  %v818 = vmul.f32 %v817, 0.0022222223
  %v819 = vsub.f32 %v688, %v818
  %v820 = vsub.f32 %v689, %v818
  %v821 = vsub.f32 %v690, %v818
  %v822 = vsub.f32 %v691, %v818
  %v823 = vsub.f32 %v692, %v818
  %v824 = vsub.f32 %v693, %v818
  %v825 = vsub.f32 %v694, %v818
  %v826 = vsub.f32 %v695, %v818
  %v827 = vsub.f32 %v696, %v818
  %v828 = vsub.f32 %v697, %v818
  %v829 = vsub.f32 %v698, %v818
  %v830 = vsub.f32 %v699, %v818
  %v831 = vsub.f32 %v700, %v818
  %v832 = vsub.f32 %v701, %v818
  %v833 = vsub.f32 %v702, %v818
  %v834 = vsub.f32 %v703, %v818
  %v835 = vsub.f32 %v704, %v818
  %v836 = vsub.f32 %v705, %v818
  %v837 = vsub.f32 %v706, %v818
  %v838 = vsub.f32 %v707, %v818
  %v839 = vsub.f32 %v708, %v818
  %v840 = vsub.f32 %v709, %v818
  %v841 = vsub.f32 %v710, %v818
  %v842 = vsub.f32 %v711, %v818
  %v843 = vsub.f32 %v712, %v818
  %v844 = vsub.f32 %v713, %v818
  %v845 = vsub.f32 %v714, %v818
  %v846 = vsub.f32 %v715, %v818
  %v847 = vsub.f32 %v716, %v818
  %v848 = vsub.f32 %v717, %v818
  %v849 = vsub.f32 %v718, %v818
  %v850 = vsub.f32 %v719, %v818
  %v851 = vsub.f32 %v720, %v818
  %v852 = vsub.f32 %v721, %v818
  %v853 = vsub.f32 %v722, %v818
  %v854 = vsub.f32 %v723, %v818
  %v855 = vsub.f32 %v724, %v818
  %v856 = vsub.f32 %v725, %v818
  %v857 = vsub.f32 %v726, %v818
  %v858 = vsub.f32 %v727, %v818
  %v859 = vsub.f32 %v728, %v818
  %v860 = vsub.f32 %v729, %v818
  %v861 = vsub.f32 %v730, %v818
  %v862 = vsub.f32 %v731, %v818
  %v863 = vsub.f32 %v732, %v818
  %v864 = vsub.f32 %v733, %v818
  %v865 = vsub.f32 %v734, %v818
  %v866 = vsub.f32 %v735, %v818
  %v867 = vsub.f32 %v736, %v818
  %v868 = vsub.f32 %v737, %v818
  %v869 = vsub.f32 %v738, %v818
  %v870 = vsub.f32 %v739, %v818
  %v871 = vsub.f32 %v740, %v818
  %v872 = vsub.f32 %v741, %v818
  %v873 = vsub.f32 %v742, %v818
  %v874 = vsub.f32 %v743, %v818
  %v875 = vsub.f32 %v744, %v818
  %v876 = vsub.f32 %v745, %v818
  %v877 = vmul.f32 %v819, %v819
  %v878 = vmul.f32 %v820, %v820
  %v879 = vmul.f32 %v821, %v821
  %v880 = vmul.f32 %v822, %v822
  %v881 = vmul.f32 %v823, %v823
  %v882 = vmul.f32 %v824, %v824
  %v883 = vmul.f32 %v825, %v825
  %v884 = vmul.f32 %v826, %v826
  %v885 = vmul.f32 %v827, %v827
  %v886 = vmul.f32 %v828, %v828
  %v887 = vmul.f32 %v829, %v829
  %v888 = vmul.f32 %v830, %v830
  %v889 = vmul.f32 %v831, %v831
  %v890 = vmul.f32 %v832, %v832
  %v891 = vmul.f32 %v833, %v833
  %v892 = vmul.f32 %v834, %v834
  %v893 = vmul.f32 %v835, %v835
  %v894 = vmul.f32 %v836, %v836
  %v895 = vmul.f32 %v837, %v837
  %v896 = vmul.f32 %v838, %v838
  %v897 = vmul.f32 %v839, %v839
  %v898 = vmul.f32 %v840, %v840
  %v899 = vmul.f32 %v841, %v841
  %v900 = vmul.f32 %v842, %v842
  %v901 = vmul.f32 %v843, %v843
  %v902 = vmul.f32 %v844, %v844
  %v903 = vmul.f32 %v845, %v845
  %v904 = vmul.f32 %v846, %v846
  %v905 = vmul.f32 %v847, %v847
  %v906 = vadd.f32 %v877, %v878
  %v907 = vadd.f32 %v906, %v879
  %v908 = vadd.f32 %v907, %v880
  %v909 = vadd.f32 %v908, %v881
  %v910 = vadd.f32 %v909, %v882
  %v911 = vadd.f32 %v910, %v883
  %v912 = vadd.f32 %v911, %v884
  %v913 = vadd.f32 %v912, %v885
  %v914 = vadd.f32 %v913, %v886
  %v915 = vadd.f32 %v914, %v887
  %v916 = vadd.f32 %v915, %v888
  %v917 = vadd.f32 %v916, %v889
  %v918 = vadd.f32 %v917, %v890
  %v919 = vadd.f32 %v918, %v891
  %v920 = vadd.f32 %v919, %v892
  %v921 = vadd.f32 %v920, %v893
  %v922 = vadd.f32 %v921, %v894
  %v923 = vadd.f32 %v922, %v895
  %v924 = vadd.f32 %v923, %v896
  %v925 = vadd.f32 %v924, %v897
  %v926 = vadd.f32 %v925, %v898
  %v927 = vadd.f32 %v926, %v899
  %v928 = vadd.f32 %v927, %v900
  %v929 = vadd.f32 %v928, %v901
  %v930 = vadd.f32 %v929, %v902
  %v931 = vadd.f32 %v930, %v903
  %v932 = vadd.f32 %v931, %v904
  %v933 = vsel %vm773, %v905, 0.0
  %v934 = vadd.f32 %v932, %v933
  %v935 = vrot.slane %v934, 4
  %v936 = vadd.f32 %v934, %v935
  %v937 = vrot.slane %v936, 2
  %v938 = vadd.f32 %v936, %v937
  %v939 = vrot.slane %v938, 1
  %v940 = vadd.f32 %v938, %v939
  %v941 = vmul.f32 %v848, %v848
  %v942 = vmul.f32 %v849, %v849
  %v943 = vmul.f32 %v850, %v850
  %v944 = vmul.f32 %v851, %v851
  %v945 = vmul.f32 %v852, %v852
  %v946 = vmul.f32 %v853, %v853
  %v947 = vmul.f32 %v854, %v854
  %v948 = vmul.f32 %v855, %v855
  %v949 = vmul.f32 %v856, %v856
  %v950 = vmul.f32 %v857, %v857
  %v951 = vmul.f32 %v858, %v858
  %v952 = vmul.f32 %v859, %v859
  %v953 = vmul.f32 %v860, %v860
  %v954 = vmul.f32 %v861, %v861
  %v955 = vmul.f32 %v862, %v862
  %v956 = vmul.f32 %v863, %v863
  %v957 = vmul.f32 %v864, %v864
  %v958 = vmul.f32 %v865, %v865
  %v959 = vmul.f32 %v866, %v866
  %v960 = vmul.f32 %v867, %v867
  %v961 = vmul.f32 %v868, %v868
  %v962 = vmul.f32 %v869, %v869
  %v963 = vmul.f32 %v870, %v870
  %v964 = vmul.f32 %v871, %v871
  %v965 = vmul.f32 %v872, %v872
  %v966 = vmul.f32 %v873, %v873
  %v967 = vmul.f32 %v874, %v874
  %v968 = vmul.f32 %v875, %v875
  %v969 = vmul.f32 %v876, %v876
  %v970 = vadd.f32 %v941, %v942
  %v971 = vadd.f32 %v970, %v943
  %v972 = vadd.f32 %v971, %v944
  %v973 = vadd.f32 %v972, %v945
  %v974 = vadd.f32 %v973, %v946
  %v975 = vadd.f32 %v974, %v947
  %v976 = vadd.f32 %v975, %v948
  %v977 = vadd.f32 %v976, %v949
  %v978 = vadd.f32 %v977, %v950
  %v979 = vadd.f32 %v978, %v951
  %v980 = vadd.f32 %v979, %v952
  %v981 = vadd.f32 %v980, %v953
  %v982 = vadd.f32 %v981, %v954
  %v983 = vadd.f32 %v982, %v955
  %v984 = vadd.f32 %v983, %v956
  %v985 = vadd.f32 %v984, %v957
  %v986 = vadd.f32 %v985, %v958
  %v987 = vadd.f32 %v986, %v959
  %v988 = vadd.f32 %v987, %v960
  %v989 = vadd.f32 %v988, %v961
  %v990 = vadd.f32 %v989, %v962
  %v991 = vadd.f32 %v990, %v963
  %v992 = vadd.f32 %v991, %v964
  %v993 = vadd.f32 %v992, %v965
  %v994 = vadd.f32 %v993, %v966
  %v995 = vadd.f32 %v994, %v967
  %v996 = vadd.f32 %v995, %v968
  %v997 = vsel %vm773, %v969, 0.0
  %v998 = vadd.f32 %v996, %v997
  %v999 = vrot.slane %v998, 4
  %v1000 = vadd.f32 %v998, %v999
  %v1001 = vrot.slane %v1000, 2
  %v1002 = vadd.f32 %v1000, %v1001
  %v1003 = vrot.slane %v1002, 1
  %v1004 = vadd.f32 %v1002, %v1003
  %v1005 = vadd.f32 %v940, %v1004
  %v1006 = vmul.f32 %v1005, 0.0022222223
  %v1007 = vadd.f32 %v1006, 1e-05
  %v1008 = vrsqrt.pop %v1007
  %v1009 = vmul.f32 %v1008, %v686
  %v1010 = vlaneseq
  %v1011 = vshrl.u32 %v1010, 7
  %v1012 = vsub.s32 0, %v1011
  %v1013 = vrot.slane %v1009, %v1012
  %v1014 = vmul.f32 %v819, %v1013
  %v1015 = vmul.f32 %v820, %v1013
  %v1016 = vmul.f32 %v821, %v1013
  %v1017 = vmul.f32 %v822, %v1013
  %v1018 = vmul.f32 %v823, %v1013
  %v1019 = vmul.f32 %v824, %v1013
  %v1020 = vmul.f32 %v825, %v1013
  %v1021 = vmul.f32 %v826, %v1013
  %v1022 = vmul.f32 %v827, %v1013
  %v1023 = vmul.f32 %v828, %v1013
  %v1024 = vmul.f32 %v829, %v1013
  %v1025 = vmul.f32 %v830, %v1013
  %v1026 = vmul.f32 %v831, %v1013
  %v1027 = vmul.f32 %v832, %v1013
  %v1028 = vmul.f32 %v833, %v1013
  %v1029 = vmul.f32 %v834, %v1013
  %v1030 = vmul.f32 %v835, %v1013
  %v1031 = vmul.f32 %v836, %v1013
  %v1032 = vmul.f32 %v837, %v1013
  %v1033 = vmul.f32 %v838, %v1013
  %v1034 = vmul.f32 %v839, %v1013
  %v1035 = vmul.f32 %v840, %v1013
  %v1036 = vmul.f32 %v841, %v1013
  %v1037 = vmul.f32 %v842, %v1013
  %v1038 = vmul.f32 %v843, %v1013
  %v1039 = vmul.f32 %v844, %v1013
  %v1040 = vmul.f32 %v845, %v1013
  %v1041 = vmul.f32 %v846, %v1013
  %v1042 = vmul.f32 %v847, %v1013
  %v1044 = vlaneseq
  %v1045 = vshrl.u32 %v1044, 7
  %v1046 = vsub.s32 0, %v1045
  %v1047 = vrot.slane %v687, %v1046
  %v1049 = vadd.f32 %v1014, %v1047
  %v1050 = vadd.f32 %v1015, %v1047
  %v1051 = vadd.f32 %v1016, %v1047
  %v1052 = vadd.f32 %v1017, %v1047
  %v1053 = vadd.f32 %v1018, %v1047
  %v1054 = vadd.f32 %v1019, %v1047
  %v1055 = vadd.f32 %v1020, %v1047
  %v1056 = vadd.f32 %v1021, %v1047
  %v1057 = vadd.f32 %v1022, %v1047
  %v1058 = vadd.f32 %v1023, %v1047
  %v1059 = vadd.f32 %v1024, %v1047
  %v1060 = vadd.f32 %v1025, %v1047
  %v1061 = vadd.f32 %v1026, %v1047
  %v1062 = vadd.f32 %v1027, %v1047
  %v1063 = vadd.f32 %v1028, %v1047
  %v1064 = vadd.f32 %v1029, %v1047
  %v1065 = vadd.f32 %v1030, %v1047
  %v1066 = vadd.f32 %v1031, %v1047
  %v1067 = vadd.f32 %v1032, %v1047
  %v1068 = vadd.f32 %v1033, %v1047
  %v1069 = vadd.f32 %v1034, %v1047
  %v1070 = vadd.f32 %v1035, %v1047
  %v1071 = vadd.f32 %v1036, %v1047
  %v1072 = vadd.f32 %v1037, %v1047
  %v1073 = vadd.f32 %v1038, %v1047
  %v1074 = vadd.f32 %v1039, %v1047
  %v1075 = vadd.f32 %v1040, %v1047
  %v1076 = vadd.f32 %v1041, %v1047
  %v1077 = vadd.f32 %v1042, %v1047
  %v1078 = vmul.f32 %v848, %v1013
  %v1079 = vmul.f32 %v849, %v1013
  %v1080 = vmul.f32 %v850, %v1013
  %v1081 = vmul.f32 %v851, %v1013
  %v1082 = vmul.f32 %v852, %v1013
  %v1083 = vmul.f32 %v853, %v1013
  %v1084 = vmul.f32 %v854, %v1013
  %v1085 = vmul.f32 %v855, %v1013
  %v1086 = vmul.f32 %v856, %v1013
  %v1087 = vmul.f32 %v857, %v1013
  %v1088 = vmul.f32 %v858, %v1013
  %v1089 = vmul.f32 %v859, %v1013
  %v1090 = vmul.f32 %v860, %v1013
  %v1091 = vmul.f32 %v861, %v1013
  %v1092 = vmul.f32 %v862, %v1013
  %v1093 = vmul.f32 %v863, %v1013
  %v1094 = vmul.f32 %v864, %v1013
  %v1095 = vmul.f32 %v865, %v1013
  %v1096 = vmul.f32 %v866, %v1013
  %v1097 = vmul.f32 %v867, %v1013
  %v1098 = vmul.f32 %v868, %v1013
  %v1099 = vmul.f32 %v869, %v1013
  %v1100 = vmul.f32 %v870, %v1013
  %v1101 = vmul.f32 %v871, %v1013
  %v1102 = vmul.f32 %v872, %v1013
  %v1103 = vmul.f32 %v873, %v1013
  %v1104 = vmul.f32 %v874, %v1013
  %v1105 = vmul.f32 %v875, %v1013
  %v1106 = vmul.f32 %v876, %v1013
  %v1107 = vadd.f32 %v1078, %v1047
  %v1108 = vadd.f32 %v1079, %v1047
  %v1109 = vadd.f32 %v1080, %v1047
  %v1110 = vadd.f32 %v1081, %v1047
  %v1111 = vadd.f32 %v1082, %v1047
  %v1112 = vadd.f32 %v1083, %v1047
  %v1113 = vadd.f32 %v1084, %v1047
  %v1114 = vadd.f32 %v1085, %v1047
  %v1115 = vadd.f32 %v1086, %v1047
  %v1116 = vadd.f32 %v1087, %v1047
  %v1117 = vadd.f32 %v1088, %v1047
  %v1118 = vadd.f32 %v1089, %v1047
  %v1119 = vadd.f32 %v1090, %v1047
  %v1120 = vadd.f32 %v1091, %v1047
  %v1121 = vadd.f32 %v1092, %v1047
  %v1122 = vadd.f32 %v1093, %v1047
  %v1123 = vadd.f32 %v1094, %v1047
  %v1124 = vadd.f32 %v1095, %v1047
  %v1125 = vadd.f32 %v1096, %v1047
  %v1126 = vadd.f32 %v1097, %v1047
  %v1127 = vadd.f32 %v1098, %v1047
  %v1128 = vadd.f32 %v1099, %v1047
  %v1129 = vadd.f32 %v1100, %v1047
  %v1130 = vadd.f32 %v1101, %v1047
  %v1131 = vadd.f32 %v1102, %v1047
  %v1132 = vadd.f32 %v1103, %v1047
  %v1133 = vadd.f32 %v1104, %v1047
  %v1134 = vadd.f32 %v1105, %v1047
  %v1135 = vadd.f32 %v1106, %v1047
  %v1136 = vld [vmem:[%s6] sm:$0xf]
  %v1137 = vld [vmem:[%s6 + $0x4] sm:$0xf]
  %v1138 = vld [vmem:[%s6 + $0x8] sm:$0xf]
  %v1139 = vld [vmem:[%s6 + $0xc] sm:$0xf]
  %v1140 = vld [vmem:[%s6 + $0x10] sm:$0xf]
  %v1141 = vld [vmem:[%s6 + $0x14] sm:$0xf]
  %v1142 = vld [vmem:[%s6 + $0x18] sm:$0xf]
  %v1143 = vld [vmem:[%s6 + $0x1c] sm:$0xf]
  %v1144 = vld [vmem:[%s6 + $0x20] sm:$0xf]
  %v1145 = vld [vmem:[%s6 + $0x24] sm:$0xf]
  %v1146 = vld [vmem:[%s6 + $0x28] sm:$0xf]
  %v1147 = vld [vmem:[%s6 + $0x2c] sm:$0xf]
  %v1148 = vld [vmem:[%s6 + $0x30] sm:$0xf]
  %v1149 = vld [vmem:[%s6 + $0x34] sm:$0xf]
  %v1150 = vld [vmem:[%s6 + $0x38] sm:$0xf]
  %v1151 = vld [vmem:[%s6 + $0x3c] sm:$0xf]
  %v1152 = vld [vmem:[%s6 + $0x40] sm:$0xf]
  %v1153 = vld [vmem:[%s6 + $0x44] sm:$0xf]
  %v1154 = vld [vmem:[%s6 + $0x48] sm:$0xf]
  %v1155 = vld [vmem:[%s6 + $0x4c] sm:$0xf]
  %v1156 = vld [vmem:[%s6 + $0x50] sm:$0xf]
  %v1157 = vld [vmem:[%s6 + $0x54] sm:$0xf]
  %v1158 = vld [vmem:[%s6 + $0x58] sm:$0xf]
  %v1159 = vld [vmem:[%s6 + $0x5c] sm:$0xf]
  %v1160 = vld [vmem:[%s6 + $0x60] sm:$0xf]
  %v1161 = vld [vmem:[%s6 + $0x64] sm:$0xf]
  %v1162 = vld [vmem:[%s6 + $0x68] sm:$0xf]
  %v1163 = vld [vmem:[%s6 + $0x6c] sm:$0xf]
  %v1164 = vld [vmem:[%s6 + $0x70] sm:$0xf]
  %v1165 = vld [vmem:[%s6 + $0x74] sm:$0xf]
  %v1166 = vld [vmem:[%s6 + $0x78] sm:$0xf]
  %v1167 = vld [vmem:[%s6 + $0x7c] sm:$0xf]
  %v1168 = vld [vmem:[%s6 + $0x80] sm:$0xf]
  %v1169 = vld [vmem:[%s6 + $0x84] sm:$0xf]
  %v1170 = vld [vmem:[%s6 + $0x88] sm:$0xf]
  %v1171 = vld [vmem:[%s6 + $0x8c] sm:$0xf]
  %v1172 = vld [vmem:[%s6 + $0x90] sm:$0xf]
  %v1173 = vld [vmem:[%s6 + $0x94] sm:$0xf]
  %v1174 = vld [vmem:[%s6 + $0x98] sm:$0xf]
  %v1175 = vld [vmem:[%s6 + $0x9c] sm:$0xf]
  %v1176 = vld [vmem:[%s6 + $0xa0] sm:$0xf]
  %v1177 = vld [vmem:[%s6 + $0xa4] sm:$0xf]
  %v1178 = vld [vmem:[%s6 + $0xa8] sm:$0xf]
  %v1179 = vld [vmem:[%s6 + $0xac] sm:$0xf]
  %v1180 = vld [vmem:[%s6 + $0xb0] sm:$0xf]
  %v1181 = vld [vmem:[%s6 + $0xb4] sm:$0xf]
  %v1182 = vld [vmem:[%s6 + $0xb8] sm:$0xf]
  %v1183 = vld [vmem:[%s6 + $0xbc] sm:$0xf]
  %v1184 = vld [vmem:[%s6 + $0xc0] sm:$0xf]
  %v1185 = vld [vmem:[%s6 + $0xc4] sm:$0xf]
  %v1186 = vld [vmem:[%s6 + $0xc8] sm:$0xf]
  %v1187 = vld [vmem:[%s6 + $0xcc] sm:$0xf]
  %v1188 = vld [vmem:[%s6 + $0xd0] sm:$0xf]
  %v1189 = vld [vmem:[%s6 + $0xd4] sm:$0xf]
  %v1190 = vld [vmem:[%s6 + $0xd8] sm:$0xf]
  %v1191 = vld [vmem:[%s6 + $0xdc] sm:$0xf]
  %v1192 = vld [vmem:[%s6 + $0xe0] sm:$0xf]
  %v1193 = vld [vmem:[%s6 + $0xe4] sm:$0xf]
  %v1194 = vld [vmem:[%s6 + $0xe8] sm:$0xf]
  %v1195 = vld [vmem:[%s6 + $0xec] sm:$0xf]
  %v1196 = vld [vmem:[%s6 + $0xf0] sm:$0xf]
  %v1197 = vld [vmem:[%s6 + $0xf4] sm:$0xf]
  %v1198 = vld [vmem:[%s6 + $0xf8] sm:$0xf]
  %v1199 = vld [vmem:[%s6 + $0xfc] sm:$0xf]
  %v1200 = vld [vmem:[%s6 + $0x100] sm:$0xf]
  %v1201 = vld [vmem:[%s6 + $0x104] sm:$0xf]
  %v1202 = vld [vmem:[%s6 + $0x108] sm:$0xf]
  %v1203 = vld [vmem:[%s6 + $0x10c] sm:$0xf]
  %v1204 = vld [vmem:[%s6 + $0x110] sm:$0xf]
  %v1205 = vld [vmem:[%s6 + $0x114] sm:$0xf]
  %v1206 = vld [vmem:[%s6 + $0x118] sm:$0xf]
  %v1207 = vld [vmem:[%s6 + $0x11c] sm:$0xf]
  %v1208 = vld [vmem:[%s6 + $0x120] sm:$0xf]
  %v1209 = vld [vmem:[%s6 + $0x124] sm:$0xf]
  %v1210 = vld [vmem:[%s6 + $0x128] sm:$0xf]
  %v1211 = vld [vmem:[%s6 + $0x12c] sm:$0xf]
  %v1212 = vld [vmem:[%s6 + $0x130] sm:$0xf]
  %v1213 = vld [vmem:[%s6 + $0x134] sm:$0xf]
  %v1214 = vld [vmem:[%s6 + $0x138] sm:$0xf]
  %v1215 = vld [vmem:[%s6 + $0x13c] sm:$0xf]
  %v1216 = vld [vmem:[%s6 + $0x140] sm:$0xf]
  %v1217 = vld [vmem:[%s6 + $0x144] sm:$0xf]
  %v1218 = vld [vmem:[%s6 + $0x148] sm:$0xf]
  %v1219 = vld [vmem:[%s6 + $0x14c] sm:$0xf]
  %v1220 = vld [vmem:[%s6 + $0x150] sm:$0xf]
  %v1221 = vld [vmem:[%s6 + $0x154] sm:$0xf]
  %v1222 = vld [vmem:[%s6 + $0x158] sm:$0xf]
  %v1223 = vld [vmem:[%s6 + $0x15c] sm:$0xf]
  %v1224 = vld [vmem:[%s6 + $0x160] sm:$0xf]
  %v1225 = vld [vmem:[%s6 + $0x164] sm:$0xf]
  %v1226 = vld [vmem:[%s6 + $0x168] sm:$0xf]
  %v1227 = vld [vmem:[%s6 + $0x16c] sm:$0xf]
  %v1228 = vld [vmem:[%s6 + $0x170] sm:$0xf]
  %v1229 = vld [vmem:[%s6 + $0x174] sm:$0xf]
  %v1230 = vld [vmem:[%s6 + $0x178] sm:$0xf]
  %v1231 = vld [vmem:[%s6 + $0x17c] sm:$0xf]
  %v1232 = vld [vmem:[%s6 + $0x180] sm:$0xf]
  %v1233 = vld [vmem:[%s6 + $0x184] sm:$0xf]
  %v1234 = vld [vmem:[%s6 + $0x188] sm:$0xf]
  %v1235 = vld [vmem:[%s6 + $0x18c] sm:$0xf]
  %v1236 = vld [vmem:[%s6 + $0x190] sm:$0xf]
  %v1237 = vld [vmem:[%s6 + $0x194] sm:$0xf]
  %v1238 = vld [vmem:[%s6 + $0x198] sm:$0xf]
  %v1239 = vld [vmem:[%s6 + $0x19c] sm:$0xf]
  %v1240 = vld [vmem:[%s6 + $0x1a0] sm:$0xf]
  %v1241 = vld [vmem:[%s6 + $0x1a4] sm:$0xf]
  %v1242 = vld [vmem:[%s6 + $0x1a8] sm:$0xf]
  %v1243 = vld [vmem:[%s6 + $0x1ac] sm:$0xf]
  %v1244 = vld [vmem:[%s6 + $0x1b0] sm:$0xf]
  %v1245 = vld [vmem:[%s6 + $0x1b4] sm:$0xf]
  %v1246 = vld [vmem:[%s6 + $0x1b8] sm:$0xf]
  %v1247 = vld [vmem:[%s6 + $0x1bc] sm:$0xf]
  %v1248 = vld [vmem:[%s6 + $0x1c0] sm:$0xf]
  %v1249 = vld [vmem:[%s6 + $0x1c4] sm:$0xf]
  %v1250 = vld [vmem:[%s6 + $0x1c8] sm:$0xf]
  %v1251 = vld [vmem:[%s6 + $0x1cc] sm:$0xf]
  %v1252 = vld [vmem:[%s6 + $0x1d0] sm:$0xf]
  %v1253 = vld [vmem:[%s6 + $0x1d4] sm:$0xf]
  %v1254 = vld [vmem:[%s6 + $0x1d8] sm:$0xf]
  %v1255 = vld [vmem:[%s6 + $0x1dc] sm:$0xf]
  %v1256 = vld [vmem:[%s6 + $0x1e0] sm:$0xf]
  %v1257 = vld [vmem:[%s6 + $0x1e4] sm:$0xf]
  %v1258 = vld [vmem:[%s6 + $0x1e8] sm:$0xf]
  %v1259 = vld [vmem:[%s6 + $0x1ec] sm:$0xf]
  %v1260 = vld [vmem:[%s6 + $0x1f0] sm:$0xf]
  %v1261 = vld [vmem:[%s6 + $0x1f4] sm:$0xf]
  %v1262 = vld [vmem:[%s6 + $0x1f8] sm:$0xf]
  %v1263 = vld [vmem:[%s6 + $0x1fc] sm:$0xf]
  %v1264 = vld [vmem:[%s6 + $0x200] sm:$0xf]
  %v1265 = vld [vmem:[%s6 + $0x204] sm:$0xf]
  %v1266 = vld [vmem:[%s6 + $0x208] sm:$0xf]
  %v1267 = vld [vmem:[%s6 + $0x20c] sm:$0xf]
  %v1268 = vld [vmem:[%s6 + $0x210] sm:$0xf]
  %v1269 = vld [vmem:[%s6 + $0x214] sm:$0xf]
  %v1270 = vld [vmem:[%s6 + $0x218] sm:$0xf]
  %v1271 = vld [vmem:[%s6 + $0x21c] sm:$0xf]
  %v1272 = vld [vmem:[%s6 + $0x220] sm:$0xf]
  %v1273 = vld [vmem:[%s6 + $0x224] sm:$0xf]
  %v1274 = vld [vmem:[%s6 + $0x228] sm:$0xf]
  %v1275 = vld [vmem:[%s6 + $0x22c] sm:$0xf]
  %v1276 = vld [vmem:[%s6 + $0x230] sm:$0xf]
  %v1277 = vld [vmem:[%s6 + $0x234] sm:$0xf]
  %v1278 = vld [vmem:[%s6 + $0x238] sm:$0xf]
  %v1279 = vld [vmem:[%s6 + $0x23c] sm:$0xf]
  %v1280 = vld [vmem:[%s7] sm:$0x1]
  %v1281 = vpack.c.bf16 %v1050, %v1049
  %v1282 = vpack.c.bf16 %v1052, %v1051
  %v1283 = vpack.c.bf16 %v1054, %v1053
  %v1284 = vpack.c.bf16 %v1056, %v1055
  %v1285 = vpack.c.bf16 %v1058, %v1057
  %v1286 = vpack.c.bf16 %v1060, %v1059
  %v1287 = vpack.c.bf16 %v1062, %v1061
  %v1288 = vpack.c.bf16 %v1064, %v1063
  %v1289 = vpack.c.bf16 %v1066, %v1065
  %v1290 = vpack.c.bf16 %v1068, %v1067
  %v1291 = vpack.c.bf16 %v1070, %v1069
  %v1292 = vpack.c.bf16 %v1072, %v1071
  %v1293 = vpack.c.bf16 %v1074, %v1073
  %v1294 = vpack.c.bf16 %v1076, %v1075
  %v1295 = vpack.c.bf16 %v1077, %v1077
  %v1296 = vld [vmem:[%s5] sm:$0xff]
  %v1297 = vld [vmem:[%s5 + $0x8] sm:$0xff]
  %v1298 = vld [vmem:[%s5 + $0x10] sm:$0xff]
  %v1299 = vld [vmem:[%s5 + $0x18] sm:$0xff]
  %v1300 = vld [vmem:[%s5 + $0x20] sm:$0x33]
  %v1306 = vunpack.c.l.b16 %v1296
  %v1307 = vunpack.c.h.b16 %v1296
  %v1308 = vunpack.c.l.b16 %v1297
  %v1309 = vunpack.c.h.b16 %v1297
  %v1310 = vunpack.c.l.b16 %v1298
  %v1311 = vunpack.c.h.b16 %v1298
  %v1312 = vunpack.c.l.b16 %v1299
  %v1313 = vunpack.c.h.b16 %v1299
  %v1314 = vunpack.c.l.b16 %v1300
  %v1315 = vunpack.c.h.b16 %v1300
  %v1316 = vpack.c.b16 %v1308, %v1306
  %v1317 = vpack.c.b16 %v1309, %v1307
  %v1318 = vpack.c.b16 %v1312, %v1310
  %v1319 = vpack.c.b16 %v1313, %v1311
  %v1320 = vpack.c.b16 %v1314, %v1314
  %v1321 = vpack.c.b16 %v1315, %v1315
  %vm1325 = vcmask 793600
  %v1327 = vsel %vm1325, %v1317, 0
  %v1330 = vsel %vm1325, %v1319, 0
  %v1333 = vsel %vm1325, %v1321, 0
  %v1335 = vsel 0, 4294967295, 65535
  %v1336 = vsel %vm773, %v1335, 0
  %v1338 = vand.u32 %v1295, %v1336
  %1340 = vmatprep.subr.bf16.mxu0 0
  %1341 = vmatpush1.bf16.msra.mxu0 %v1288
  %1342 = vmatprep.subr.bf16.mxu0 0
  %1343 = vmatpush1.bf16.msra.mxu0 %v1287
  %1344 = vmatprep.subr.bf16.mxu0 0
  %1345 = vmatpush1.bf16.msra.mxu0 %v1286
  %1346 = vmatprep.subr.bf16.mxu0 0
  %1347 = vmatpush1.bf16.msra.mxu0 %v1285
  %1348 = vmatprep.subr.bf16.mxu0 0
  %1349 = vmatpush1.bf16.msra.mxu0 %v1284
  %1350 = vmatprep.subr.bf16.mxu0 0
  %1351 = vmatpush1.bf16.msra.mxu0 %v1283
  %1352 = vmatprep.subr.bf16.mxu0 0
  %1353 = vmatpush1.bf16.msra.mxu0 %v1282
  %1354 = vmatprep.subr.bf16.mxu0 0
  %1355 = vmatpush1.bf16.msra.mxu0 %v1281
  %1356 = vmatprep.subr.bf16.mxu0 0
  %1357 = vmatpush2.bf16.msra.mxu0 0
  %1358 = vmatprep.subr.bf16.mxu0 0
  %1359 = vmatpush2.bf16.msra.mxu0 %v1338
  %1360 = vmatprep.subr.bf16.mxu0 0
  %1361 = vmatpush2.bf16.msra.mxu0 %v1294
  %1362 = vmatprep.subr.bf16.mxu0 0
  %1363 = vmatpush2.bf16.msra.mxu0 %v1293
  %1364 = vmatprep.subr.bf16.mxu0 0
  %1365 = vmatpush2.bf16.msra.mxu0 %v1292
  %1366 = vmatprep.subr.bf16.mxu0 0
  %1367 = vmatpush2.bf16.msra.mxu0 %v1291
  %1368 = vmatprep.subr.bf16.mxu0 0
  %1369 = vmatpush2.bf16.msra.mxu0 %v1290
  %1370 = vmatprep.subr.bf16.mxu0 0
  %1371 = vmatpush2.bf16.msra.mxu0 %v1289
  %1372 = vmatprep.mubr.bf16.mxu0 %v1327
  %1373 = vmatmul.mubr.bf16.gmra.mxu0 %v1316
  %v1374 = vpop.f32.mrf.mxu0
  %v1375 = vadd.f32 0.0, %v1374
  %v1376 = vpop.f32.mrf.mxu0
  %v1377 = vpop.f32.mrf.mxu0
  %v1378 = vadd.f32 0.0, %v1377
  %v1379 = vpop.f32.mrf.mxu0
  %1380 = vmatprep.mubr.bf16.mxu0 %v1330
  %1381 = vmatmul.mubr.bf16.gmra.mxu0 %v1318
  %v1382 = vpop.f32.mrf.mxu0
  %v1383 = vadd.f32 0.0, %v1382
  %v1384 = vpop.f32.mrf.mxu0
  %v1385 = vpop.f32.mrf.mxu0
  %v1386 = vadd.f32 0.0, %v1385
  %v1387 = vpop.f32.mrf.mxu0
  %1388 = vmatprep.mubr.bf16.mxu0 %v1333
  %1389 = vmatmul.mubr.bf16.gmra.mxu0 %v1320
  %v1390 = vpop.f32.mrf.mxu0
  %v1391 = vadd.f32 0.0, %v1390
  %v1392 = vpop.f32.mrf.mxu0
  %v1393 = vpop.f32.mrf.mxu0
  %v1394 = vpop.f32.mrf.mxu0
  %1395 = vdwg.mxu0
  %v1396 = vpack.c.bf16 %v1378, %v1375
  %v1397 = vpack.c.bf16 %v1386, %v1383
  %v1398 = vpack.c.bf16 %v1391, %v1391
  %s1399 = scalar_lea.vmem %s5, 40
  %v1400 = vld [vmem:[%s1399] sm:$0xff]
  %v1401 = vld [vmem:[%s1399 + $0x8] sm:$0xff]
  %v1402 = vld [vmem:[%s1399 + $0x10] sm:$0xff]
  %v1403 = vld [vmem:[%s1399 + $0x18] sm:$0xff]
  %v1404 = vld [vmem:[%s1399 + $0x20] sm:$0x33]
  %v1410 = vunpack.c.l.b16 %v1400
  %v1411 = vunpack.c.h.b16 %v1400
  %v1412 = vunpack.c.l.b16 %v1401
  %v1413 = vunpack.c.h.b16 %v1401
  %v1414 = vunpack.c.l.b16 %v1402
  %v1415 = vunpack.c.h.b16 %v1402
  %v1416 = vunpack.c.l.b16 %v1403
  %v1417 = vunpack.c.h.b16 %v1403
  %v1418 = vunpack.c.l.b16 %v1404
  %v1419 = vunpack.c.h.b16 %v1404
  %v1420 = vpack.c.b16 %v1412, %v1410
  %v1421 = vpack.c.b16 %v1413, %v1411
  %v1422 = vpack.c.b16 %v1416, %v1414
  %v1423 = vpack.c.b16 %v1417, %v1415
  %v1424 = vpack.c.b16 %v1418, %v1418
  %v1425 = vpack.c.b16 %v1419, %v1419
  %v1430 = vsel %vm1325, %v1421, 0
  %v1433 = vsel %vm1325, %v1423, 0
  %v1436 = vsel %vm1325, %v1425, 0
  %1438 = vmatprep.subr.bf16.mxu0 0
  %1439 = vmatpush1.bf16.msra.mxu0 %v1288
  %1440 = vmatprep.subr.bf16.mxu0 0
  %1441 = vmatpush1.bf16.msra.mxu0 %v1287
  %1442 = vmatprep.subr.bf16.mxu0 0
  %1443 = vmatpush1.bf16.msra.mxu0 %v1286
  %1444 = vmatprep.subr.bf16.mxu0 0
  %1445 = vmatpush1.bf16.msra.mxu0 %v1285
  %1446 = vmatprep.subr.bf16.mxu0 0
  %1447 = vmatpush1.bf16.msra.mxu0 %v1284
  %1448 = vmatprep.subr.bf16.mxu0 0
  %1449 = vmatpush1.bf16.msra.mxu0 %v1283
  %1450 = vmatprep.subr.bf16.mxu0 0
  %1451 = vmatpush1.bf16.msra.mxu0 %v1282
  %1452 = vmatprep.subr.bf16.mxu0 0
  %1453 = vmatpush1.bf16.msra.mxu0 %v1281
  %1454 = vmatprep.subr.bf16.mxu0 0
  %1455 = vmatpush2.bf16.msra.mxu0 0
  %1456 = vmatprep.subr.bf16.mxu0 0
  %1457 = vmatpush2.bf16.msra.mxu0 %v1338
  %1458 = vmatprep.subr.bf16.mxu0 0
  %1459 = vmatpush2.bf16.msra.mxu0 %v1294
  %1460 = vmatprep.subr.bf16.mxu0 0
  %1461 = vmatpush2.bf16.msra.mxu0 %v1293
  %1462 = vmatprep.subr.bf16.mxu0 0
  %1463 = vmatpush2.bf16.msra.mxu0 %v1292
  %1464 = vmatprep.subr.bf16.mxu0 0
  %1465 = vmatpush2.bf16.msra.mxu0 %v1291
  %1466 = vmatprep.subr.bf16.mxu0 0
  %1467 = vmatpush2.bf16.msra.mxu0 %v1290
  %1468 = vmatprep.subr.bf16.mxu0 0
  %1469 = vmatpush2.bf16.msra.mxu0 %v1289
  %1470 = vmatprep.mubr.bf16.mxu0 %v1430
  %1471 = vmatmul.mubr.bf16.gmra.mxu0 %v1420
  %v1472 = vpop.f32.mrf.mxu0
  %v1473 = vadd.f32 0.0, %v1472
  %v1474 = vpop.f32.mrf.mxu0
  %v1475 = vpop.f32.mrf.mxu0
  %v1476 = vadd.f32 0.0, %v1475
  %v1477 = vpop.f32.mrf.mxu0
  %1478 = vmatprep.mubr.bf16.mxu0 %v1433
  %1479 = vmatmul.mubr.bf16.gmra.mxu0 %v1422
  %v1480 = vpop.f32.mrf.mxu0
  %v1481 = vadd.f32 0.0, %v1480
  %v1482 = vpop.f32.mrf.mxu0
  %v1483 = vpop.f32.mrf.mxu0
  %v1484 = vadd.f32 0.0, %v1483
  %v1485 = vpop.f32.mrf.mxu0
  %1486 = vmatprep.mubr.bf16.mxu0 %v1436
  %1487 = vmatmul.mubr.bf16.gmra.mxu0 %v1424
  %v1488 = vpop.f32.mrf.mxu0
  %v1489 = vadd.f32 0.0, %v1488
  %v1490 = vpop.f32.mrf.mxu0
  %v1491 = vpop.f32.mrf.mxu0
  %v1492 = vpop.f32.mrf.mxu0
  %1493 = vdwg.mxu0
  %v1494 = vpack.c.bf16 %v1476, %v1473
  %v1495 = vpack.c.bf16 %v1484, %v1481
  %v1496 = vpack.c.bf16 %v1489, %v1489
  %s1497 = scalar_lea.vmem %s5, 80
  %v1498 = vld [vmem:[%s1497] sm:$0xff]
  %v1499 = vld [vmem:[%s1497 + $0x8] sm:$0xff]
  %v1500 = vld [vmem:[%s1497 + $0x10] sm:$0xff]
  %v1501 = vld [vmem:[%s1497 + $0x18] sm:$0xff]
  %v1502 = vld [vmem:[%s1497 + $0x20] sm:$0x33]
  %v1508 = vunpack.c.l.b16 %v1498
  %v1509 = vunpack.c.h.b16 %v1498
  %v1510 = vunpack.c.l.b16 %v1499
  %v1511 = vunpack.c.h.b16 %v1499
  %v1512 = vunpack.c.l.b16 %v1500
  %v1513 = vunpack.c.h.b16 %v1500
  %v1514 = vunpack.c.l.b16 %v1501
  %v1515 = vunpack.c.h.b16 %v1501
  %v1516 = vunpack.c.l.b16 %v1502
  %v1517 = vunpack.c.h.b16 %v1502
  %v1518 = vpack.c.b16 %v1510, %v1508
  %v1519 = vpack.c.b16 %v1511, %v1509
  %v1520 = vpack.c.b16 %v1514, %v1512
  %v1521 = vpack.c.b16 %v1515, %v1513
  %v1522 = vpack.c.b16 %v1516, %v1516
  %v1523 = vpack.c.b16 %v1517, %v1517
  %v1528 = vsel %vm1325, %v1519, 0
  %v1531 = vsel %vm1325, %v1521, 0
  %v1534 = vsel %vm1325, %v1523, 0
  %1536 = vmatprep.subr.bf16.mxu0 0
  %1537 = vmatpush1.bf16.msra.mxu0 %v1288
  %1538 = vmatprep.subr.bf16.mxu0 0
  %1539 = vmatpush1.bf16.msra.mxu0 %v1287
  %1540 = vmatprep.subr.bf16.mxu0 0
  %1541 = vmatpush1.bf16.msra.mxu0 %v1286
  %1542 = vmatprep.subr.bf16.mxu0 0
  %1543 = vmatpush1.bf16.msra.mxu0 %v1285
  %1544 = vmatprep.subr.bf16.mxu0 0
  %1545 = vmatpush1.bf16.msra.mxu0 %v1284
  %1546 = vmatprep.subr.bf16.mxu0 0
  %1547 = vmatpush1.bf16.msra.mxu0 %v1283
  %1548 = vmatprep.subr.bf16.mxu0 0
  %1549 = vmatpush1.bf16.msra.mxu0 %v1282
  %1550 = vmatprep.subr.bf16.mxu0 0
  %1551 = vmatpush1.bf16.msra.mxu0 %v1281
  %1552 = vmatprep.subr.bf16.mxu0 0
  %1553 = vmatpush2.bf16.msra.mxu0 0
  %1554 = vmatprep.subr.bf16.mxu0 0
  %1555 = vmatpush2.bf16.msra.mxu0 %v1338
  %1556 = vmatprep.subr.bf16.mxu0 0
  %1557 = vmatpush2.bf16.msra.mxu0 %v1294
  %1558 = vmatprep.subr.bf16.mxu0 0
  %1559 = vmatpush2.bf16.msra.mxu0 %v1293
  %1560 = vmatprep.subr.bf16.mxu0 0
  %1561 = vmatpush2.bf16.msra.mxu0 %v1292
  %1562 = vmatprep.subr.bf16.mxu0 0
  %1563 = vmatpush2.bf16.msra.mxu0 %v1291
  %1564 = vmatprep.subr.bf16.mxu0 0
  %1565 = vmatpush2.bf16.msra.mxu0 %v1290
  %1566 = vmatprep.subr.bf16.mxu0 0
  %1567 = vmatpush2.bf16.msra.mxu0 %v1289
  %1568 = vmatprep.mubr.bf16.mxu0 %v1528
  %1569 = vmatmul.mubr.bf16.gmra.mxu0 %v1518
  %v1570 = vpop.f32.mrf.mxu0
  %v1571 = vadd.f32 0.0, %v1570
  %v1572 = vpop.f32.mrf.mxu0
  %v1573 = vpop.f32.mrf.mxu0
  %v1574 = vadd.f32 0.0, %v1573
  %v1575 = vpop.f32.mrf.mxu0
  %1576 = vmatprep.mubr.bf16.mxu0 %v1531
  %1577 = vmatmul.mubr.bf16.gmra.mxu0 %v1520
  %v1578 = vpop.f32.mrf.mxu0
  %v1579 = vadd.f32 0.0, %v1578
  %v1580 = vpop.f32.mrf.mxu0
  %v1581 = vpop.f32.mrf.mxu0
  %v1582 = vadd.f32 0.0, %v1581
  %v1583 = vpop.f32.mrf.mxu0
  %1584 = vmatprep.mubr.bf16.mxu0 %v1534
  %1585 = vmatmul.mubr.bf16.gmra.mxu0 %v1522
  %v1586 = vpop.f32.mrf.mxu0
  %v1587 = vadd.f32 0.0, %v1586
  %v1588 = vpop.f32.mrf.mxu0
  %v1589 = vpop.f32.mrf.mxu0
  %v1590 = vpop.f32.mrf.mxu0
  %1591 = vdwg.mxu0
  %v1592 = vpack.c.bf16 %v1574, %v1571
  %v1593 = vpack.c.bf16 %v1582, %v1579
  %v1594 = vpack.c.bf16 %v1587, %v1587
  %s1595 = scalar_lea.vmem %s5, 120
  %v1596 = vld [vmem:[%s1595] sm:$0xff]
  %v1597 = vld [vmem:[%s1595 + $0x8] sm:$0xff]
  %v1598 = vld [vmem:[%s1595 + $0x10] sm:$0xff]
  %v1599 = vld [vmem:[%s1595 + $0x18] sm:$0xff]
  %v1600 = vld [vmem:[%s1595 + $0x20] sm:$0x33]
  %v1606 = vunpack.c.l.b16 %v1596
  %v1607 = vunpack.c.h.b16 %v1596
  %v1608 = vunpack.c.l.b16 %v1597
  %v1609 = vunpack.c.h.b16 %v1597
  %v1610 = vunpack.c.l.b16 %v1598
  %v1611 = vunpack.c.h.b16 %v1598
  %v1612 = vunpack.c.l.b16 %v1599
  %v1613 = vunpack.c.h.b16 %v1599
  %v1614 = vunpack.c.l.b16 %v1600
  %v1615 = vunpack.c.h.b16 %v1600
  %v1616 = vpack.c.b16 %v1608, %v1606
  %v1617 = vpack.c.b16 %v1609, %v1607
  %v1618 = vpack.c.b16 %v1612, %v1610
  %v1619 = vpack.c.b16 %v1613, %v1611
  %v1620 = vpack.c.b16 %v1614, %v1614
  %v1621 = vpack.c.b16 %v1615, %v1615
  %v1626 = vsel %vm1325, %v1617, 0
  %v1629 = vsel %vm1325, %v1619, 0
  %v1632 = vsel %vm1325, %v1621, 0
  %1634 = vmatprep.subr.bf16.mxu0 0
  %1635 = vmatpush1.bf16.msra.mxu0 %v1288
  %1636 = vmatprep.subr.bf16.mxu0 0
  %1637 = vmatpush1.bf16.msra.mxu0 %v1287
  %1638 = vmatprep.subr.bf16.mxu0 0
  %1639 = vmatpush1.bf16.msra.mxu0 %v1286
  %1640 = vmatprep.subr.bf16.mxu0 0
  %1641 = vmatpush1.bf16.msra.mxu0 %v1285
  %1642 = vmatprep.subr.bf16.mxu0 0
  %1643 = vmatpush1.bf16.msra.mxu0 %v1284
  %1644 = vmatprep.subr.bf16.mxu0 0
  %1645 = vmatpush1.bf16.msra.mxu0 %v1283
  %1646 = vmatprep.subr.bf16.mxu0 0
  %1647 = vmatpush1.bf16.msra.mxu0 %v1282
  %1648 = vmatprep.subr.bf16.mxu0 0
  %1649 = vmatpush1.bf16.msra.mxu0 %v1281
  %1650 = vmatprep.subr.bf16.mxu0 0
  %1651 = vmatpush2.bf16.msra.mxu0 0
  %1652 = vmatprep.subr.bf16.mxu0 0
  %1653 = vmatpush2.bf16.msra.mxu0 %v1338
  %1654 = vmatprep.subr.bf16.mxu0 0
  %1655 = vmatpush2.bf16.msra.mxu0 %v1294
  %1656 = vmatprep.subr.bf16.mxu0 0
  %1657 = vmatpush2.bf16.msra.mxu0 %v1293
  %1658 = vmatprep.subr.bf16.mxu0 0
  %1659 = vmatpush2.bf16.msra.mxu0 %v1292
  %1660 = vmatprep.subr.bf16.mxu0 0
  %1661 = vmatpush2.bf16.msra.mxu0 %v1291
  %1662 = vmatprep.subr.bf16.mxu0 0
  %1663 = vmatpush2.bf16.msra.mxu0 %v1290
  %1664 = vmatprep.subr.bf16.mxu0 0
  %1665 = vmatpush2.bf16.msra.mxu0 %v1289
  %1666 = vmatprep.mubr.bf16.mxu0 %v1626
  %1667 = vmatmul.mubr.bf16.gmra.mxu0 %v1616
  %v1668 = vpop.f32.mrf.mxu0
  %v1669 = vadd.f32 0.0, %v1668
  %v1670 = vpop.f32.mrf.mxu0
  %v1671 = vpop.f32.mrf.mxu0
  %v1672 = vadd.f32 0.0, %v1671
  %v1673 = vpop.f32.mrf.mxu0
  %1674 = vmatprep.mubr.bf16.mxu0 %v1629
  %1675 = vmatmul.mubr.bf16.gmra.mxu0 %v1618
  %v1676 = vpop.f32.mrf.mxu0
  %v1677 = vadd.f32 0.0, %v1676
  %v1678 = vpop.f32.mrf.mxu0
  %v1679 = vpop.f32.mrf.mxu0
  %v1680 = vadd.f32 0.0, %v1679
  %v1681 = vpop.f32.mrf.mxu0
  %1682 = vmatprep.mubr.bf16.mxu0 %v1632
  %1683 = vmatmul.mubr.bf16.gmra.mxu0 %v1620
  %v1684 = vpop.f32.mrf.mxu0
  %v1685 = vadd.f32 0.0, %v1684
  %v1686 = vpop.f32.mrf.mxu0
  %v1687 = vpop.f32.mrf.mxu0
  %v1688 = vpop.f32.mrf.mxu0
  %1689 = vdwg.mxu0
  %v1690 = vpack.c.bf16 %v1672, %v1669
  %v1691 = vpack.c.bf16 %v1680, %v1677
  %v1692 = vpack.c.bf16 %v1685, %v1685
  %s1693 = scalar_lea.vmem %s5, 160
  %v1694 = vld [vmem:[%s1693] sm:$0xff]
  %v1695 = vld [vmem:[%s1693 + $0x8] sm:$0xff]
  %v1696 = vld [vmem:[%s1693 + $0x10] sm:$0xff]
  %v1697 = vld [vmem:[%s1693 + $0x18] sm:$0xff]
  %v1698 = vld [vmem:[%s1693 + $0x20] sm:$0x33]
  %v1704 = vunpack.c.l.b16 %v1694
  %v1705 = vunpack.c.h.b16 %v1694
  %v1706 = vunpack.c.l.b16 %v1695
  %v1707 = vunpack.c.h.b16 %v1695
  %v1708 = vunpack.c.l.b16 %v1696
  %v1709 = vunpack.c.h.b16 %v1696
  %v1710 = vunpack.c.l.b16 %v1697
  %v1711 = vunpack.c.h.b16 %v1697
  %v1712 = vunpack.c.l.b16 %v1698
  %v1713 = vunpack.c.h.b16 %v1698
  %v1714 = vpack.c.b16 %v1706, %v1704
  %v1715 = vpack.c.b16 %v1707, %v1705
  %v1716 = vpack.c.b16 %v1710, %v1708
  %v1717 = vpack.c.b16 %v1711, %v1709
  %v1718 = vpack.c.b16 %v1712, %v1712
  %v1719 = vpack.c.b16 %v1713, %v1713
  %v1724 = vsel %vm1325, %v1715, 0
  %v1727 = vsel %vm1325, %v1717, 0
  %v1730 = vsel %vm1325, %v1719, 0
  %1732 = vmatprep.subr.bf16.mxu0 0
  %1733 = vmatpush1.bf16.msra.mxu0 %v1288
  %1734 = vmatprep.subr.bf16.mxu0 0
  %1735 = vmatpush1.bf16.msra.mxu0 %v1287
  %1736 = vmatprep.subr.bf16.mxu0 0
  %1737 = vmatpush1.bf16.msra.mxu0 %v1286
  %1738 = vmatprep.subr.bf16.mxu0 0
  %1739 = vmatpush1.bf16.msra.mxu0 %v1285
  %1740 = vmatprep.subr.bf16.mxu0 0
  %1741 = vmatpush1.bf16.msra.mxu0 %v1284
  %1742 = vmatprep.subr.bf16.mxu0 0
  %1743 = vmatpush1.bf16.msra.mxu0 %v1283
  %1744 = vmatprep.subr.bf16.mxu0 0
  %1745 = vmatpush1.bf16.msra.mxu0 %v1282
  %1746 = vmatprep.subr.bf16.mxu0 0
  %1747 = vmatpush1.bf16.msra.mxu0 %v1281
  %1748 = vmatprep.subr.bf16.mxu0 0
  %1749 = vmatpush2.bf16.msra.mxu0 0
  %1750 = vmatprep.subr.bf16.mxu0 0
  %1751 = vmatpush2.bf16.msra.mxu0 %v1338
  %1752 = vmatprep.subr.bf16.mxu0 0
  %1753 = vmatpush2.bf16.msra.mxu0 %v1294
  %1754 = vmatprep.subr.bf16.mxu0 0
  %1755 = vmatpush2.bf16.msra.mxu0 %v1293
  %1756 = vmatprep.subr.bf16.mxu0 0
  %1757 = vmatpush2.bf16.msra.mxu0 %v1292
  %1758 = vmatprep.subr.bf16.mxu0 0
  %1759 = vmatpush2.bf16.msra.mxu0 %v1291
  %1760 = vmatprep.subr.bf16.mxu0 0
  %1761 = vmatpush2.bf16.msra.mxu0 %v1290
  %1762 = vmatprep.subr.bf16.mxu0 0
  %1763 = vmatpush2.bf16.msra.mxu0 %v1289
  %1764 = vmatprep.mubr.bf16.mxu0 %v1724
  %1765 = vmatmul.mubr.bf16.gmra.mxu0 %v1714
  %v1766 = vpop.f32.mrf.mxu0
  %v1767 = vadd.f32 0.0, %v1766
  %v1768 = vpop.f32.mrf.mxu0
  %v1769 = vpop.f32.mrf.mxu0
  %v1770 = vadd.f32 0.0, %v1769
  %v1771 = vpop.f32.mrf.mxu0
  %1772 = vmatprep.mubr.bf16.mxu0 %v1727
  %1773 = vmatmul.mubr.bf16.gmra.mxu0 %v1716
  %v1774 = vpop.f32.mrf.mxu0
  %v1775 = vadd.f32 0.0, %v1774
  %v1776 = vpop.f32.mrf.mxu0
  %v1777 = vpop.f32.mrf.mxu0
  %v1778 = vadd.f32 0.0, %v1777
  %v1779 = vpop.f32.mrf.mxu0
  %1780 = vmatprep.mubr.bf16.mxu0 %v1730
  %1781 = vmatmul.mubr.bf16.gmra.mxu0 %v1718
  %v1782 = vpop.f32.mrf.mxu0
  %v1783 = vadd.f32 0.0, %v1782
  %v1784 = vpop.f32.mrf.mxu0
  %v1785 = vpop.f32.mrf.mxu0
  %v1786 = vpop.f32.mrf.mxu0
  %1787 = vdwg.mxu0
  %v1788 = vpack.c.bf16 %v1770, %v1767
  %v1789 = vpack.c.bf16 %v1778, %v1775
  %v1790 = vpack.c.bf16 %v1783, %v1783
  %s1791 = scalar_lea.vmem %s5, 200
  %v1792 = vld [vmem:[%s1791] sm:$0xff]
  %v1793 = vld [vmem:[%s1791 + $0x8] sm:$0xff]
  %v1794 = vld [vmem:[%s1791 + $0x10] sm:$0xff]
  %v1795 = vld [vmem:[%s1791 + $0x18] sm:$0xff]
  %v1796 = vld [vmem:[%s1791 + $0x20] sm:$0x33]
  %v1802 = vunpack.c.l.b16 %v1792
  %v1803 = vunpack.c.h.b16 %v1792
  %v1804 = vunpack.c.l.b16 %v1793
  %v1805 = vunpack.c.h.b16 %v1793
  %v1806 = vunpack.c.l.b16 %v1794
  %v1807 = vunpack.c.h.b16 %v1794
  %v1808 = vunpack.c.l.b16 %v1795
  %v1809 = vunpack.c.h.b16 %v1795
  %v1810 = vunpack.c.l.b16 %v1796
  %v1811 = vunpack.c.h.b16 %v1796
  %v1812 = vpack.c.b16 %v1804, %v1802
  %v1813 = vpack.c.b16 %v1805, %v1803
  %v1814 = vpack.c.b16 %v1808, %v1806
  %v1815 = vpack.c.b16 %v1809, %v1807
  %v1816 = vpack.c.b16 %v1810, %v1810
  %v1817 = vpack.c.b16 %v1811, %v1811
  %v1822 = vsel %vm1325, %v1813, 0
  %v1825 = vsel %vm1325, %v1815, 0
  %v1828 = vsel %vm1325, %v1817, 0
  %1830 = vmatprep.subr.bf16.mxu0 0
  %1831 = vmatpush1.bf16.msra.mxu0 %v1288
  %1832 = vmatprep.subr.bf16.mxu0 0
  %1833 = vmatpush1.bf16.msra.mxu0 %v1287
  %1834 = vmatprep.subr.bf16.mxu0 0
  %1835 = vmatpush1.bf16.msra.mxu0 %v1286
  %1836 = vmatprep.subr.bf16.mxu0 0
  %1837 = vmatpush1.bf16.msra.mxu0 %v1285
  %1838 = vmatprep.subr.bf16.mxu0 0
  %1839 = vmatpush1.bf16.msra.mxu0 %v1284
  %1840 = vmatprep.subr.bf16.mxu0 0
  %1841 = vmatpush1.bf16.msra.mxu0 %v1283
  %1842 = vmatprep.subr.bf16.mxu0 0
  %1843 = vmatpush1.bf16.msra.mxu0 %v1282
  %1844 = vmatprep.subr.bf16.mxu0 0
  %1845 = vmatpush1.bf16.msra.mxu0 %v1281
  %1846 = vmatprep.subr.bf16.mxu0 0
  %1847 = vmatpush2.bf16.msra.mxu0 0
  %1848 = vmatprep.subr.bf16.mxu0 0
  %1849 = vmatpush2.bf16.msra.mxu0 %v1338
  %1850 = vmatprep.subr.bf16.mxu0 0
  %1851 = vmatpush2.bf16.msra.mxu0 %v1294
  %1852 = vmatprep.subr.bf16.mxu0 0
  %1853 = vmatpush2.bf16.msra.mxu0 %v1293
  %1854 = vmatprep.subr.bf16.mxu0 0
  %1855 = vmatpush2.bf16.msra.mxu0 %v1292
  %1856 = vmatprep.subr.bf16.mxu0 0
  %1857 = vmatpush2.bf16.msra.mxu0 %v1291
  %1858 = vmatprep.subr.bf16.mxu0 0
  %1859 = vmatpush2.bf16.msra.mxu0 %v1290
  %1860 = vmatprep.subr.bf16.mxu0 0
  %1861 = vmatpush2.bf16.msra.mxu0 %v1289
  %1862 = vmatprep.mubr.bf16.mxu0 %v1822
  %1863 = vmatmul.mubr.bf16.gmra.mxu0 %v1812
  %v1864 = vpop.f32.mrf.mxu0
  %v1865 = vadd.f32 0.0, %v1864
  %v1866 = vpop.f32.mrf.mxu0
  %v1867 = vpop.f32.mrf.mxu0
  %v1868 = vadd.f32 0.0, %v1867
  %v1869 = vpop.f32.mrf.mxu0
  %1870 = vmatprep.mubr.bf16.mxu0 %v1825
  %1871 = vmatmul.mubr.bf16.gmra.mxu0 %v1814
  %v1872 = vpop.f32.mrf.mxu0
  %v1873 = vadd.f32 0.0, %v1872
  %v1874 = vpop.f32.mrf.mxu0
  %v1875 = vpop.f32.mrf.mxu0
  %v1876 = vadd.f32 0.0, %v1875
  %v1877 = vpop.f32.mrf.mxu0
  %1878 = vmatprep.mubr.bf16.mxu0 %v1828
  %1879 = vmatmul.mubr.bf16.gmra.mxu0 %v1816
  %v1880 = vpop.f32.mrf.mxu0
  %v1881 = vadd.f32 0.0, %v1880
  %v1882 = vpop.f32.mrf.mxu0
  %v1883 = vpop.f32.mrf.mxu0
  %v1884 = vpop.f32.mrf.mxu0
  %1885 = vdwg.mxu0
  %v1886 = vpack.c.bf16 %v1868, %v1865
  %v1887 = vpack.c.bf16 %v1876, %v1873
  %v1888 = vpack.c.bf16 %v1881, %v1881
  %s1889 = scalar_lea.vmem %s5, 240
  %v1890 = vld [vmem:[%s1889] sm:$0xff]
  %v1891 = vld [vmem:[%s1889 + $0x8] sm:$0xff]
  %v1892 = vld [vmem:[%s1889 + $0x10] sm:$0xff]
  %v1893 = vld [vmem:[%s1889 + $0x18] sm:$0xff]
  %v1894 = vld [vmem:[%s1889 + $0x20] sm:$0x33]
  %v1900 = vunpack.c.l.b16 %v1890
  %v1901 = vunpack.c.h.b16 %v1890
  %v1902 = vunpack.c.l.b16 %v1891
  %v1903 = vunpack.c.h.b16 %v1891
  %v1904 = vunpack.c.l.b16 %v1892
  %v1905 = vunpack.c.h.b16 %v1892
  %v1906 = vunpack.c.l.b16 %v1893
  %v1907 = vunpack.c.h.b16 %v1893
  %v1908 = vunpack.c.l.b16 %v1894
  %v1909 = vunpack.c.h.b16 %v1894
  %v1910 = vpack.c.b16 %v1902, %v1900
  %v1911 = vpack.c.b16 %v1903, %v1901
  %v1912 = vpack.c.b16 %v1906, %v1904
  %v1913 = vpack.c.b16 %v1907, %v1905
  %v1914 = vpack.c.b16 %v1908, %v1908
  %v1915 = vpack.c.b16 %v1909, %v1909
  %v1920 = vsel %vm1325, %v1911, 0
  %v1923 = vsel %vm1325, %v1913, 0
  %v1926 = vsel %vm1325, %v1915, 0
  %1928 = vmatprep.subr.bf16.mxu0 0
  %1929 = vmatpush1.bf16.msra.mxu0 %v1288
  %1930 = vmatprep.subr.bf16.mxu0 0
  %1931 = vmatpush1.bf16.msra.mxu0 %v1287
  %1932 = vmatprep.subr.bf16.mxu0 0
  %1933 = vmatpush1.bf16.msra.mxu0 %v1286
  %1934 = vmatprep.subr.bf16.mxu0 0
  %1935 = vmatpush1.bf16.msra.mxu0 %v1285
  %1936 = vmatprep.subr.bf16.mxu0 0
  %1937 = vmatpush1.bf16.msra.mxu0 %v1284
  %1938 = vmatprep.subr.bf16.mxu0 0
  %1939 = vmatpush1.bf16.msra.mxu0 %v1283
  %1940 = vmatprep.subr.bf16.mxu0 0
  %1941 = vmatpush1.bf16.msra.mxu0 %v1282
  %1942 = vmatprep.subr.bf16.mxu0 0
  %1943 = vmatpush1.bf16.msra.mxu0 %v1281
  %1944 = vmatprep.subr.bf16.mxu0 0
  %1945 = vmatpush2.bf16.msra.mxu0 0
  %1946 = vmatprep.subr.bf16.mxu0 0
  %1947 = vmatpush2.bf16.msra.mxu0 %v1338
  %1948 = vmatprep.subr.bf16.mxu0 0
  %1949 = vmatpush2.bf16.msra.mxu0 %v1294
  %1950 = vmatprep.subr.bf16.mxu0 0
  %1951 = vmatpush2.bf16.msra.mxu0 %v1293
  %1952 = vmatprep.subr.bf16.mxu0 0
  %1953 = vmatpush2.bf16.msra.mxu0 %v1292
  %1954 = vmatprep.subr.bf16.mxu0 0
  %1955 = vmatpush2.bf16.msra.mxu0 %v1291
  %1956 = vmatprep.subr.bf16.mxu0 0
  %1957 = vmatpush2.bf16.msra.mxu0 %v1290
  %1958 = vmatprep.subr.bf16.mxu0 0
  %1959 = vmatpush2.bf16.msra.mxu0 %v1289
  %1960 = vmatprep.mubr.bf16.mxu0 %v1920
  %1961 = vmatmul.mubr.bf16.gmra.mxu0 %v1910
  %v1962 = vpop.f32.mrf.mxu0
  %v1963 = vadd.f32 0.0, %v1962
  %v1964 = vpop.f32.mrf.mxu0
  %v1965 = vpop.f32.mrf.mxu0
  %v1966 = vadd.f32 0.0, %v1965
  %v1967 = vpop.f32.mrf.mxu0
  %1968 = vmatprep.mubr.bf16.mxu0 %v1923
  %1969 = vmatmul.mubr.bf16.gmra.mxu0 %v1912
  %v1970 = vpop.f32.mrf.mxu0
  %v1971 = vadd.f32 0.0, %v1970
  %v1972 = vpop.f32.mrf.mxu0
  %v1973 = vpop.f32.mrf.mxu0
  %v1974 = vadd.f32 0.0, %v1973
  %v1975 = vpop.f32.mrf.mxu0
  %1976 = vmatprep.mubr.bf16.mxu0 %v1926
  %1977 = vmatmul.mubr.bf16.gmra.mxu0 %v1914
  %v1978 = vpop.f32.mrf.mxu0
  %v1979 = vadd.f32 0.0, %v1978
  %v1980 = vpop.f32.mrf.mxu0
  %v1981 = vpop.f32.mrf.mxu0
  %v1982 = vpop.f32.mrf.mxu0
  %1983 = vdwg.mxu0
  %v1984 = vpack.c.bf16 %v1966, %v1963
  %v1985 = vpack.c.bf16 %v1974, %v1971
  %v1986 = vpack.c.bf16 %v1979, %v1979
  %s1987 = scalar_lea.vmem %s5, 280
  %v1988 = vld [vmem:[%s1987] sm:$0xff]
  %v1989 = vld [vmem:[%s1987 + $0x8] sm:$0xff]
  %v1990 = vld [vmem:[%s1987 + $0x10] sm:$0xff]
  %v1991 = vld [vmem:[%s1987 + $0x18] sm:$0xff]
  %v1992 = vld [vmem:[%s1987 + $0x20] sm:$0x33]
  %v1998 = vunpack.c.l.b16 %v1988
  %v1999 = vunpack.c.h.b16 %v1988
  %v2000 = vunpack.c.l.b16 %v1989
  %v2001 = vunpack.c.h.b16 %v1989
  %v2002 = vunpack.c.l.b16 %v1990
  %v2003 = vunpack.c.h.b16 %v1990
  %v2004 = vunpack.c.l.b16 %v1991
  %v2005 = vunpack.c.h.b16 %v1991
  %v2006 = vunpack.c.l.b16 %v1992
  %v2007 = vunpack.c.h.b16 %v1992
  %v2008 = vpack.c.b16 %v2000, %v1998
  %v2009 = vpack.c.b16 %v2001, %v1999
  %v2010 = vpack.c.b16 %v2004, %v2002
  %v2011 = vpack.c.b16 %v2005, %v2003
  %v2012 = vpack.c.b16 %v2006, %v2006
  %v2013 = vpack.c.b16 %v2007, %v2007
  %v2018 = vsel %vm1325, %v2009, 0
  %v2021 = vsel %vm1325, %v2011, 0
  %v2024 = vsel %vm1325, %v2013, 0
  %2026 = vmatprep.subr.bf16.mxu0 0
  %2027 = vmatpush1.bf16.msra.mxu0 %v1288
  %2028 = vmatprep.subr.bf16.mxu0 0
  %2029 = vmatpush1.bf16.msra.mxu0 %v1287
  %2030 = vmatprep.subr.bf16.mxu0 0
  %2031 = vmatpush1.bf16.msra.mxu0 %v1286
  %2032 = vmatprep.subr.bf16.mxu0 0
  %2033 = vmatpush1.bf16.msra.mxu0 %v1285
  %2034 = vmatprep.subr.bf16.mxu0 0
  %2035 = vmatpush1.bf16.msra.mxu0 %v1284
  %2036 = vmatprep.subr.bf16.mxu0 0
  %2037 = vmatpush1.bf16.msra.mxu0 %v1283
  %2038 = vmatprep.subr.bf16.mxu0 0
  %2039 = vmatpush1.bf16.msra.mxu0 %v1282
  %2040 = vmatprep.subr.bf16.mxu0 0
  %2041 = vmatpush1.bf16.msra.mxu0 %v1281
  %2042 = vmatprep.subr.bf16.mxu0 0
  %2043 = vmatpush2.bf16.msra.mxu0 0
  %2044 = vmatprep.subr.bf16.mxu0 0
  %2045 = vmatpush2.bf16.msra.mxu0 %v1338
  %2046 = vmatprep.subr.bf16.mxu0 0
  %2047 = vmatpush2.bf16.msra.mxu0 %v1294
  %2048 = vmatprep.subr.bf16.mxu0 0
  %2049 = vmatpush2.bf16.msra.mxu0 %v1293
  %2050 = vmatprep.subr.bf16.mxu0 0
  %2051 = vmatpush2.bf16.msra.mxu0 %v1292
  %2052 = vmatprep.subr.bf16.mxu0 0
  %2053 = vmatpush2.bf16.msra.mxu0 %v1291
  %2054 = vmatprep.subr.bf16.mxu0 0
  %2055 = vmatpush2.bf16.msra.mxu0 %v1290
  %2056 = vmatprep.subr.bf16.mxu0 0
  %2057 = vmatpush2.bf16.msra.mxu0 %v1289
  %2058 = vmatprep.mubr.bf16.mxu0 %v2018
  %2059 = vmatmul.mubr.bf16.gmra.mxu0 %v2008
  %v2060 = vpop.f32.mrf.mxu0
  %v2061 = vadd.f32 0.0, %v2060
  %v2062 = vpop.f32.mrf.mxu0
  %v2063 = vpop.f32.mrf.mxu0
  %v2064 = vadd.f32 0.0, %v2063
  %v2065 = vpop.f32.mrf.mxu0
  %2066 = vmatprep.mubr.bf16.mxu0 %v2021
  %2067 = vmatmul.mubr.bf16.gmra.mxu0 %v2010
  %v2068 = vpop.f32.mrf.mxu0
  %v2069 = vadd.f32 0.0, %v2068
  %v2070 = vpop.f32.mrf.mxu0
  %v2071 = vpop.f32.mrf.mxu0
  %v2072 = vadd.f32 0.0, %v2071
  %v2073 = vpop.f32.mrf.mxu0
  %2074 = vmatprep.mubr.bf16.mxu0 %v2024
  %2075 = vmatmul.mubr.bf16.gmra.mxu0 %v2012
  %v2076 = vpop.f32.mrf.mxu0
  %v2077 = vadd.f32 0.0, %v2076
  %v2078 = vpop.f32.mrf.mxu0
  %v2079 = vpop.f32.mrf.mxu0
  %v2080 = vpop.f32.mrf.mxu0
  %2081 = vdwg.mxu0
  %v2082 = vpack.c.bf16 %v2064, %v2061
  %v2083 = vpack.c.bf16 %v2072, %v2069
  %v2084 = vpack.c.bf16 %v2077, %v2077
  %s2085 = scalar_lea.vmem %s5, 320
  %v2086 = vld [vmem:[%s2085] sm:$0xff]
  %v2087 = vld [vmem:[%s2085 + $0x8] sm:$0xff]
  %v2088 = vld [vmem:[%s2085 + $0x10] sm:$0xff]
  %v2089 = vld [vmem:[%s2085 + $0x18] sm:$0xff]
  %v2090 = vld [vmem:[%s2085 + $0x20] sm:$0x33]
  %v2096 = vunpack.c.l.b16 %v2086
  %v2097 = vunpack.c.h.b16 %v2086
  %v2098 = vunpack.c.l.b16 %v2087
  %v2099 = vunpack.c.h.b16 %v2087
  %v2100 = vunpack.c.l.b16 %v2088
  %v2101 = vunpack.c.h.b16 %v2088
  %v2102 = vunpack.c.l.b16 %v2089
  %v2103 = vunpack.c.h.b16 %v2089
  %v2104 = vunpack.c.l.b16 %v2090
  %v2105 = vunpack.c.h.b16 %v2090
  %v2106 = vpack.c.b16 %v2098, %v2096
  %v2107 = vpack.c.b16 %v2099, %v2097
  %v2108 = vpack.c.b16 %v2102, %v2100
  %v2109 = vpack.c.b16 %v2103, %v2101
  %v2110 = vpack.c.b16 %v2104, %v2104
  %v2111 = vpack.c.b16 %v2105, %v2105
  %v2116 = vsel %vm1325, %v2107, 0
  %v2119 = vsel %vm1325, %v2109, 0
  %v2122 = vsel %vm1325, %v2111, 0
  %2124 = vmatprep.subr.bf16.mxu0 0
  %2125 = vmatpush1.bf16.msra.mxu0 %v1288
  %2126 = vmatprep.subr.bf16.mxu0 0
  %2127 = vmatpush1.bf16.msra.mxu0 %v1287
  %2128 = vmatprep.subr.bf16.mxu0 0
  %2129 = vmatpush1.bf16.msra.mxu0 %v1286
  %2130 = vmatprep.subr.bf16.mxu0 0
  %2131 = vmatpush1.bf16.msra.mxu0 %v1285
  %2132 = vmatprep.subr.bf16.mxu0 0
  %2133 = vmatpush1.bf16.msra.mxu0 %v1284
  %2134 = vmatprep.subr.bf16.mxu0 0
  %2135 = vmatpush1.bf16.msra.mxu0 %v1283
  %2136 = vmatprep.subr.bf16.mxu0 0
  %2137 = vmatpush1.bf16.msra.mxu0 %v1282
  %2138 = vmatprep.subr.bf16.mxu0 0
  %2139 = vmatpush1.bf16.msra.mxu0 %v1281
  %2140 = vmatprep.subr.bf16.mxu0 0
  %2141 = vmatpush2.bf16.msra.mxu0 0
  %2142 = vmatprep.subr.bf16.mxu0 0
  %2143 = vmatpush2.bf16.msra.mxu0 %v1338
  %2144 = vmatprep.subr.bf16.mxu0 0
  %2145 = vmatpush2.bf16.msra.mxu0 %v1294
  %2146 = vmatprep.subr.bf16.mxu0 0
  %2147 = vmatpush2.bf16.msra.mxu0 %v1293
  %2148 = vmatprep.subr.bf16.mxu0 0
  %2149 = vmatpush2.bf16.msra.mxu0 %v1292
  %2150 = vmatprep.subr.bf16.mxu0 0
  %2151 = vmatpush2.bf16.msra.mxu0 %v1291
  %2152 = vmatprep.subr.bf16.mxu0 0
  %2153 = vmatpush2.bf16.msra.mxu0 %v1290
  %2154 = vmatprep.subr.bf16.mxu0 0
  %2155 = vmatpush2.bf16.msra.mxu0 %v1289
  %2156 = vmatprep.mubr.bf16.mxu0 %v2116
  %2157 = vmatmul.mubr.bf16.gmra.mxu0 %v2106
  %v2158 = vpop.f32.mrf.mxu0
  %v2159 = vadd.f32 0.0, %v2158
  %v2160 = vpop.f32.mrf.mxu0
  %v2161 = vpop.f32.mrf.mxu0
  %v2162 = vadd.f32 0.0, %v2161
  %v2163 = vpop.f32.mrf.mxu0
  %2164 = vmatprep.mubr.bf16.mxu0 %v2119
  %2165 = vmatmul.mubr.bf16.gmra.mxu0 %v2108
  %v2166 = vpop.f32.mrf.mxu0
  %v2167 = vadd.f32 0.0, %v2166
  %v2168 = vpop.f32.mrf.mxu0
  %v2169 = vpop.f32.mrf.mxu0
  %v2170 = vadd.f32 0.0, %v2169
  %v2171 = vpop.f32.mrf.mxu0
  %2172 = vmatprep.mubr.bf16.mxu0 %v2122
  %2173 = vmatmul.mubr.bf16.gmra.mxu0 %v2110
  %v2174 = vpop.f32.mrf.mxu0
  %v2175 = vadd.f32 0.0, %v2174
  %v2176 = vpop.f32.mrf.mxu0
  %v2177 = vpop.f32.mrf.mxu0
  %v2178 = vpop.f32.mrf.mxu0
  %2179 = vdwg.mxu0
  %v2180 = vpack.c.bf16 %v2162, %v2159
  %v2181 = vpack.c.bf16 %v2170, %v2167
  %v2182 = vpack.c.bf16 %v2175, %v2175
  %v2184 = vlaneseq
  %v2185 = vshrl.u32 %v2184, 7
  %v2186 = vsub.s32 0, %v2185
  %v2187 = vrot.slane %v1280, %v2186
  %v2333 = vunpack.c.l.b16 %v1136
  %v2334 = vunpack.c.l.b16 %v1137
  %v2335 = vunpack.c.l.b16 %v1138
  %v2336 = vunpack.c.l.b16 %v1139
  %v2337 = vunpack.c.l.b16 %v1140
  %v2338 = vunpack.c.l.b16 %v1141
  %v2339 = vunpack.c.l.b16 %v1142
  %v2340 = vunpack.c.l.b16 %v1143
  %v2341 = vunpack.c.l.b16 %v1144
  %v2342 = vunpack.c.l.b16 %v1145
  %v2343 = vunpack.c.l.b16 %v1146
  %v2344 = vunpack.c.l.b16 %v1147
  %v2345 = vunpack.c.l.b16 %v1148
  %v2346 = vunpack.c.l.b16 %v1149
  %v2347 = vunpack.c.l.b16 %v1150
  %v2348 = vunpack.c.l.b16 %v1151
  %v2349 = vunpack.c.l.b16 %v1152
  %v2350 = vunpack.c.l.b16 %v1153
  %v2351 = vunpack.c.l.b16 %v1154
  %v2352 = vunpack.c.l.b16 %v1155
  %v2353 = vunpack.c.l.b16 %v1156
  %v2354 = vunpack.c.l.b16 %v1157
  %v2355 = vunpack.c.l.b16 %v1158
  %v2356 = vunpack.c.l.b16 %v1159
  %v2357 = vunpack.c.l.b16 %v1160
  %v2358 = vunpack.c.l.b16 %v1161
  %v2359 = vunpack.c.l.b16 %v1162
  %v2360 = vunpack.c.l.b16 %v1163
  %v2361 = vunpack.c.l.b16 %v1164
  %v2362 = vunpack.c.l.b16 %v1165
  %v2363 = vunpack.c.l.b16 %v1166
  %v2364 = vunpack.c.l.b16 %v1167
  %v2365 = vunpack.c.l.b16 %v1168
  %v2366 = vunpack.c.l.b16 %v1169
  %v2367 = vunpack.c.l.b16 %v1170
  %v2368 = vunpack.c.l.b16 %v1171
  %v2369 = vunpack.c.l.b16 %v1172
  %v2370 = vunpack.c.l.b16 %v1173
  %v2371 = vunpack.c.l.b16 %v1174
  %v2372 = vunpack.c.l.b16 %v1175
  %v2373 = vunpack.c.l.b16 %v1176
  %v2374 = vunpack.c.l.b16 %v1177
  %v2375 = vunpack.c.l.b16 %v1178
  %v2376 = vunpack.c.l.b16 %v1179
  %v2377 = vunpack.c.l.b16 %v1180
  %v2378 = vunpack.c.l.b16 %v1181
  %v2379 = vunpack.c.l.b16 %v1182
  %v2380 = vunpack.c.l.b16 %v1183
  %v2381 = vunpack.c.l.b16 %v1184
  %v2382 = vunpack.c.l.b16 %v1185
  %v2383 = vunpack.c.l.b16 %v1186
  %v2384 = vunpack.c.l.b16 %v1187
  %v2385 = vunpack.c.l.b16 %v1188
  %v2386 = vunpack.c.l.b16 %v1189
  %v2387 = vunpack.c.l.b16 %v1190
  %v2388 = vunpack.c.l.b16 %v1191
  %v2389 = vunpack.c.l.b16 %v1192
  %v2390 = vunpack.c.l.b16 %v1193
  %v2391 = vunpack.c.l.b16 %v1194
  %v2392 = vunpack.c.l.b16 %v1195
  %v2393 = vunpack.c.l.b16 %v1196
  %v2394 = vunpack.c.l.b16 %v1197
  %v2395 = vunpack.c.l.b16 %v1198
  %v2396 = vunpack.c.l.b16 %v1199
  %v2397 = vunpack.c.l.b16 %v1200
  %v2398 = vunpack.c.l.b16 %v1201
  %v2399 = vunpack.c.l.b16 %v1202
  %v2400 = vunpack.c.l.b16 %v1203
  %v2401 = vunpack.c.l.b16 %v1204
  %v2402 = vunpack.c.l.b16 %v1205
  %v2403 = vunpack.c.l.b16 %v1206
  %v2404 = vunpack.c.l.b16 %v1207
  %v2405 = vunpack.c.l.b16 %v1208
  %v2406 = vunpack.c.l.b16 %v1209
  %v2407 = vunpack.c.l.b16 %v1210
  %v2408 = vunpack.c.l.b16 %v1211
  %v2409 = vunpack.c.l.b16 %v1212
  %v2410 = vunpack.c.l.b16 %v1213
  %v2411 = vunpack.c.l.b16 %v1214
  %v2412 = vunpack.c.l.b16 %v1215
  %v2413 = vunpack.c.l.b16 %v1216
  %v2414 = vunpack.c.l.b16 %v1217
  %v2415 = vunpack.c.l.b16 %v1218
  %v2416 = vunpack.c.l.b16 %v1219
  %v2417 = vunpack.c.l.b16 %v1220
  %v2418 = vunpack.c.l.b16 %v1221
  %v2419 = vunpack.c.l.b16 %v1222
  %v2420 = vunpack.c.l.b16 %v1223
  %v2421 = vunpack.c.l.b16 %v1224
  %v2422 = vunpack.c.l.b16 %v1225
  %v2423 = vunpack.c.l.b16 %v1226
  %v2424 = vunpack.c.l.b16 %v1227
  %v2425 = vunpack.c.l.b16 %v1228
  %v2426 = vunpack.c.l.b16 %v1229
  %v2427 = vunpack.c.l.b16 %v1230
  %v2428 = vunpack.c.l.b16 %v1231
  %v2429 = vunpack.c.l.b16 %v1232
  %v2430 = vunpack.c.l.b16 %v1233
  %v2431 = vunpack.c.l.b16 %v1234
  %v2432 = vunpack.c.l.b16 %v1235
  %v2433 = vunpack.c.l.b16 %v1236
  %v2434 = vunpack.c.l.b16 %v1237
  %v2435 = vunpack.c.l.b16 %v1238
  %v2436 = vunpack.c.l.b16 %v1239
  %v2437 = vunpack.c.l.b16 %v1240
  %v2438 = vunpack.c.l.b16 %v1241
  %v2439 = vunpack.c.l.b16 %v1242
  %v2440 = vunpack.c.l.b16 %v1243
  %v2441 = vunpack.c.l.b16 %v1244
  %v2442 = vunpack.c.l.b16 %v1245
  %v2443 = vunpack.c.l.b16 %v1246
  %v2444 = vunpack.c.l.b16 %v1247
  %v2445 = vunpack.c.l.b16 %v1248
  %v2446 = vunpack.c.l.b16 %v1249
  %v2447 = vunpack.c.l.b16 %v1250
  %v2448 = vunpack.c.l.b16 %v1251
  %v2449 = vunpack.c.l.b16 %v1252
  %v2450 = vunpack.c.l.b16 %v1253
  %v2451 = vunpack.c.l.b16 %v1254
  %v2452 = vunpack.c.l.b16 %v1255
  %v2453 = vunpack.c.l.b16 %v1256
  %v2454 = vunpack.c.l.b16 %v1257
  %v2455 = vunpack.c.l.b16 %v1258
  %v2456 = vunpack.c.l.b16 %v1259
  %v2457 = vunpack.c.l.b16 %v1260
  %v2458 = vunpack.c.l.b16 %v1261
  %v2459 = vunpack.c.l.b16 %v1262
  %v2460 = vunpack.c.l.b16 %v1263
  %v2461 = vunpack.c.l.b16 %v1264
  %v2462 = vunpack.c.l.b16 %v1265
  %v2463 = vunpack.c.l.b16 %v1266
  %v2464 = vunpack.c.l.b16 %v1267
  %v2465 = vunpack.c.l.b16 %v1268
  %v2466 = vunpack.c.l.b16 %v1269
  %v2467 = vunpack.c.l.b16 %v1270
  %v2468 = vunpack.c.l.b16 %v1271
  %v2469 = vunpack.c.l.b16 %v1272
  %v2470 = vunpack.c.l.b16 %v1273
  %v2471 = vunpack.c.l.b16 %v1274
  %v2472 = vunpack.c.l.b16 %v1275
  %v2473 = vunpack.c.l.b16 %v1276
  %v2474 = vunpack.c.l.b16 %v1277
  %v2475 = vunpack.c.l.b16 %v1278
  %v2476 = vunpack.c.l.b16 %v1279
  %v2477 = vpack.c.b16 %v2334, %v2333
  %v2478 = vpack.c.b16 %v2336, %v2335
  %v2479 = vpack.c.b16 %v2338, %v2337
  %v2480 = vpack.c.b16 %v2340, %v2339
  %v2481 = vpack.c.b16 %v2342, %v2341
  %v2482 = vpack.c.b16 %v2344, %v2343
  %v2483 = vpack.c.b16 %v2346, %v2345
  %v2484 = vpack.c.b16 %v2348, %v2347
  %v2485 = vpack.c.b16 %v2350, %v2349
  %v2486 = vpack.c.b16 %v2352, %v2351
  %v2487 = vpack.c.b16 %v2354, %v2353
  %v2488 = vpack.c.b16 %v2356, %v2355
  %v2489 = vpack.c.b16 %v2358, %v2357
  %v2490 = vpack.c.b16 %v2360, %v2359
  %v2491 = vpack.c.b16 %v2362, %v2361
  %v2492 = vpack.c.b16 %v2364, %v2363
  %v2493 = vpack.c.b16 %v2366, %v2365
  %v2494 = vpack.c.b16 %v2368, %v2367
  %v2495 = vpack.c.b16 %v2370, %v2369
  %v2496 = vpack.c.b16 %v2372, %v2371
  %v2497 = vpack.c.b16 %v2374, %v2373
  %v2498 = vpack.c.b16 %v2376, %v2375
  %v2499 = vpack.c.b16 %v2378, %v2377
  %v2500 = vpack.c.b16 %v2380, %v2379
  %v2501 = vpack.c.b16 %v2382, %v2381
  %v2502 = vpack.c.b16 %v2384, %v2383
  %v2503 = vpack.c.b16 %v2386, %v2385
  %v2504 = vpack.c.b16 %v2388, %v2387
  %v2505 = vpack.c.b16 %v2390, %v2389
  %v2506 = vpack.c.b16 %v2392, %v2391
  %v2507 = vpack.c.b16 %v2394, %v2393
  %v2508 = vpack.c.b16 %v2396, %v2395
  %v2509 = vpack.c.b16 %v2398, %v2397
  %v2510 = vpack.c.b16 %v2400, %v2399
  %v2511 = vpack.c.b16 %v2402, %v2401
  %v2512 = vpack.c.b16 %v2404, %v2403
  %v2513 = vpack.c.b16 %v2406, %v2405
  %v2514 = vpack.c.b16 %v2408, %v2407
  %v2515 = vpack.c.b16 %v2410, %v2409
  %v2516 = vpack.c.b16 %v2412, %v2411
  %v2517 = vpack.c.b16 %v2414, %v2413
  %v2518 = vpack.c.b16 %v2416, %v2415
  %v2519 = vpack.c.b16 %v2418, %v2417
  %v2520 = vpack.c.b16 %v2420, %v2419
  %v2521 = vpack.c.b16 %v2422, %v2421
  %v2522 = vpack.c.b16 %v2424, %v2423
  %v2523 = vpack.c.b16 %v2426, %v2425
  %v2524 = vpack.c.b16 %v2428, %v2427
  %v2525 = vpack.c.b16 %v2430, %v2429
  %v2526 = vpack.c.b16 %v2432, %v2431
  %v2527 = vpack.c.b16 %v2434, %v2433
  %v2528 = vpack.c.b16 %v2436, %v2435
  %v2529 = vpack.c.b16 %v2438, %v2437
  %v2530 = vpack.c.b16 %v2440, %v2439
  %v2531 = vpack.c.b16 %v2442, %v2441
  %v2532 = vpack.c.b16 %v2444, %v2443
  %v2533 = vpack.c.b16 %v2446, %v2445
  %v2534 = vpack.c.b16 %v2448, %v2447
  %v2535 = vpack.c.b16 %v2450, %v2449
  %v2536 = vpack.c.b16 %v2452, %v2451
  %v2537 = vpack.c.b16 %v2454, %v2453
  %v2538 = vpack.c.b16 %v2456, %v2455
  %v2539 = vpack.c.b16 %v2458, %v2457
  %v2540 = vpack.c.b16 %v2460, %v2459
  %v2541 = vpack.c.b16 %v2462, %v2461
  %v2542 = vpack.c.b16 %v2464, %v2463
  %v2543 = vpack.c.b16 %v2466, %v2465
  %v2544 = vpack.c.b16 %v2468, %v2467
  %v2545 = vpack.c.b16 %v2470, %v2469
  %v2546 = vpack.c.b16 %v2472, %v2471
  %v2547 = vpack.c.b16 %v2474, %v2473
  %v2548 = vpack.c.b16 %v2476, %v2475
  %2621 = vmatprep.subr.bf16.mxu0 0
  %2622 = vmatpush1.bf16.msra.mxu0 %v2484
  %2623 = vmatprep.subr.bf16.mxu0 0
  %2624 = vmatpush1.bf16.msra.mxu0 %v2483
  %2625 = vmatprep.subr.bf16.mxu0 0
  %2626 = vmatpush1.bf16.msra.mxu0 %v2482
  %2627 = vmatprep.subr.bf16.mxu0 0
  %2628 = vmatpush1.bf16.msra.mxu0 %v2481
  %2629 = vmatprep.subr.bf16.mxu0 0
  %2630 = vmatpush1.bf16.msra.mxu0 %v2480
  %2631 = vmatprep.subr.bf16.mxu0 0
  %2632 = vmatpush1.bf16.msra.mxu0 %v2479
  %2633 = vmatprep.subr.bf16.mxu0 0
  %2634 = vmatpush1.bf16.msra.mxu0 %v2478
  %2635 = vmatprep.subr.bf16.mxu0 0
  %2636 = vmatpush1.bf16.msra.mxu0 %v2477
  %2637 = vmatprep.subr.bf16.mxu0 0
  %2638 = vmatpush2.bf16.msra.mxu0 %v2492
  %2639 = vmatprep.subr.bf16.mxu0 0
  %2640 = vmatpush2.bf16.msra.mxu0 %v2491
  %2641 = vmatprep.subr.bf16.mxu0 0
  %2642 = vmatpush2.bf16.msra.mxu0 %v2490
  %2643 = vmatprep.subr.bf16.mxu0 0
  %2644 = vmatpush2.bf16.msra.mxu0 %v2489
  %2645 = vmatprep.subr.bf16.mxu0 0
  %2646 = vmatpush2.bf16.msra.mxu0 %v2488
  %2647 = vmatprep.subr.bf16.mxu0 0
  %2648 = vmatpush2.bf16.msra.mxu0 %v2487
  %2649 = vmatprep.subr.bf16.mxu0 0
  %2650 = vmatpush2.bf16.msra.mxu0 %v2486
  %2651 = vmatprep.subr.bf16.mxu0 0
  %2652 = vmatpush2.bf16.msra.mxu0 %v2485
  %2653 = vmatprep.mubr.bf16.mxu0 %v1494
  %2654 = vmatmul.mubr.bf16.gmra.mxu0 %v1396
  %v2655 = vpop.f32.mrf.mxu0
  %v2656 = vadd.f32 %v2187, %v2655
  %v2657 = vpop.f32.mrf.mxu0
  %v2658 = vpop.f32.mrf.mxu0
  %v2659 = vadd.f32 %v2187, %v2658
  %v2660 = vpop.f32.mrf.mxu0
  %2661 = vmatprep.mubr.bf16.mxu0 %v1495
  %2662 = vmatmul.mubr.bf16.gmra.mxu0 %v1397
  %v2663 = vpop.f32.mrf.mxu0
  %v2664 = vadd.f32 %v2187, %v2663
  %v2665 = vpop.f32.mrf.mxu0
  %v2666 = vpop.f32.mrf.mxu0
  %v2667 = vadd.f32 %v2187, %v2666
  %v2668 = vpop.f32.mrf.mxu0
  %2669 = vmatprep.mubr.bf16.mxu0 %v1496
  %2670 = vmatmul.mubr.bf16.gmra.mxu0 %v1398
  %v2671 = vpop.f32.mrf.mxu0
  %v2672 = vadd.f32 %v2187, %v2671
  %v2673 = vpop.f32.mrf.mxu0
  %v2674 = vpop.f32.mrf.mxu0
  %v2675 = vpop.f32.mrf.mxu0
  %2676 = vdwg.mxu0
  %2677 = vmatprep.subr.bf16.mxu0 0
  %2678 = vmatpush1.bf16.msra.mxu0 %v2500
  %2679 = vmatprep.subr.bf16.mxu0 0
  %2680 = vmatpush1.bf16.msra.mxu0 %v2499
  %2681 = vmatprep.subr.bf16.mxu0 0
  %2682 = vmatpush1.bf16.msra.mxu0 %v2498
  %2683 = vmatprep.subr.bf16.mxu0 0
  %2684 = vmatpush1.bf16.msra.mxu0 %v2497
  %2685 = vmatprep.subr.bf16.mxu0 0
  %2686 = vmatpush1.bf16.msra.mxu0 %v2496
  %2687 = vmatprep.subr.bf16.mxu0 0
  %2688 = vmatpush1.bf16.msra.mxu0 %v2495
  %2689 = vmatprep.subr.bf16.mxu0 0
  %2690 = vmatpush1.bf16.msra.mxu0 %v2494
  %2691 = vmatprep.subr.bf16.mxu0 0
  %2692 = vmatpush1.bf16.msra.mxu0 %v2493
  %2693 = vmatprep.subr.bf16.mxu0 0
  %2694 = vmatpush2.bf16.msra.mxu0 %v2508
  %2695 = vmatprep.subr.bf16.mxu0 0
  %2696 = vmatpush2.bf16.msra.mxu0 %v2507
  %2697 = vmatprep.subr.bf16.mxu0 0
  %2698 = vmatpush2.bf16.msra.mxu0 %v2506
  %2699 = vmatprep.subr.bf16.mxu0 0
  %2700 = vmatpush2.bf16.msra.mxu0 %v2505
  %2701 = vmatprep.subr.bf16.mxu0 0
  %2702 = vmatpush2.bf16.msra.mxu0 %v2504
  %2703 = vmatprep.subr.bf16.mxu0 0
  %2704 = vmatpush2.bf16.msra.mxu0 %v2503
  %2705 = vmatprep.subr.bf16.mxu0 0
  %2706 = vmatpush2.bf16.msra.mxu0 %v2502
  %2707 = vmatprep.subr.bf16.mxu0 0
  %2708 = vmatpush2.bf16.msra.mxu0 %v2501
  %2709 = vmatprep.mubr.bf16.mxu0 %v1690
  %2710 = vmatmul.mubr.bf16.gmra.mxu0 %v1592
  %v2711 = vpop.f32.mrf.mxu0
  %v2712 = vadd.f32 %v2656, %v2711
  %v2713 = vpop.f32.mrf.mxu0
  %v2714 = vpop.f32.mrf.mxu0
  %v2715 = vadd.f32 %v2659, %v2714
  %v2716 = vpop.f32.mrf.mxu0
  %2717 = vmatprep.mubr.bf16.mxu0 %v1691
  %2718 = vmatmul.mubr.bf16.gmra.mxu0 %v1593
  %v2719 = vpop.f32.mrf.mxu0
  %v2720 = vadd.f32 %v2664, %v2719
  %v2721 = vpop.f32.mrf.mxu0
  %v2722 = vpop.f32.mrf.mxu0
  %v2723 = vadd.f32 %v2667, %v2722
  %v2724 = vpop.f32.mrf.mxu0
  %2725 = vmatprep.mubr.bf16.mxu0 %v1692
  %2726 = vmatmul.mubr.bf16.gmra.mxu0 %v1594
  %v2727 = vpop.f32.mrf.mxu0
  %v2728 = vadd.f32 %v2672, %v2727
  %v2729 = vpop.f32.mrf.mxu0
  %v2730 = vpop.f32.mrf.mxu0
  %v2731 = vpop.f32.mrf.mxu0
  %2732 = vdwg.mxu0
  %2733 = vmatprep.subr.bf16.mxu0 0
  %2734 = vmatpush1.bf16.msra.mxu0 %v2516
  %2735 = vmatprep.subr.bf16.mxu0 0
  %2736 = vmatpush1.bf16.msra.mxu0 %v2515
  %2737 = vmatprep.subr.bf16.mxu0 0
  %2738 = vmatpush1.bf16.msra.mxu0 %v2514
  %2739 = vmatprep.subr.bf16.mxu0 0
  %2740 = vmatpush1.bf16.msra.mxu0 %v2513
  %2741 = vmatprep.subr.bf16.mxu0 0
  %2742 = vmatpush1.bf16.msra.mxu0 %v2512
  %2743 = vmatprep.subr.bf16.mxu0 0
  %2744 = vmatpush1.bf16.msra.mxu0 %v2511
  %2745 = vmatprep.subr.bf16.mxu0 0
  %2746 = vmatpush1.bf16.msra.mxu0 %v2510
  %2747 = vmatprep.subr.bf16.mxu0 0
  %2748 = vmatpush1.bf16.msra.mxu0 %v2509
  %2749 = vmatprep.subr.bf16.mxu0 0
  %2750 = vmatpush2.bf16.msra.mxu0 %v2524
  %2751 = vmatprep.subr.bf16.mxu0 0
  %2752 = vmatpush2.bf16.msra.mxu0 %v2523
  %2753 = vmatprep.subr.bf16.mxu0 0
  %2754 = vmatpush2.bf16.msra.mxu0 %v2522
  %2755 = vmatprep.subr.bf16.mxu0 0
  %2756 = vmatpush2.bf16.msra.mxu0 %v2521
  %2757 = vmatprep.subr.bf16.mxu0 0
  %2758 = vmatpush2.bf16.msra.mxu0 %v2520
  %2759 = vmatprep.subr.bf16.mxu0 0
  %2760 = vmatpush2.bf16.msra.mxu0 %v2519
  %2761 = vmatprep.subr.bf16.mxu0 0
  %2762 = vmatpush2.bf16.msra.mxu0 %v2518
  %2763 = vmatprep.subr.bf16.mxu0 0
  %2764 = vmatpush2.bf16.msra.mxu0 %v2517
  %2765 = vmatprep.mubr.bf16.mxu0 %v1886
  %2766 = vmatmul.mubr.bf16.gmra.mxu0 %v1788
  %v2767 = vpop.f32.mrf.mxu0
  %v2768 = vadd.f32 %v2712, %v2767
  %v2769 = vpop.f32.mrf.mxu0
  %v2770 = vpop.f32.mrf.mxu0
  %v2771 = vadd.f32 %v2715, %v2770
  %v2772 = vpop.f32.mrf.mxu0
  %2773 = vmatprep.mubr.bf16.mxu0 %v1887
  %2774 = vmatmul.mubr.bf16.gmra.mxu0 %v1789
  %v2775 = vpop.f32.mrf.mxu0
  %v2776 = vadd.f32 %v2720, %v2775
  %v2777 = vpop.f32.mrf.mxu0
  %v2778 = vpop.f32.mrf.mxu0
  %v2779 = vadd.f32 %v2723, %v2778
  %v2780 = vpop.f32.mrf.mxu0
  %2781 = vmatprep.mubr.bf16.mxu0 %v1888
  %2782 = vmatmul.mubr.bf16.gmra.mxu0 %v1790
  %v2783 = vpop.f32.mrf.mxu0
  %v2784 = vadd.f32 %v2728, %v2783
  %v2785 = vpop.f32.mrf.mxu0
  %v2786 = vpop.f32.mrf.mxu0
  %v2787 = vpop.f32.mrf.mxu0
  %2788 = vdwg.mxu0
  %2789 = vmatprep.subr.bf16.mxu0 0
  %2790 = vmatpush1.bf16.msra.mxu0 %v2532
  %2791 = vmatprep.subr.bf16.mxu0 0
  %2792 = vmatpush1.bf16.msra.mxu0 %v2531
  %2793 = vmatprep.subr.bf16.mxu0 0
  %2794 = vmatpush1.bf16.msra.mxu0 %v2530
  %2795 = vmatprep.subr.bf16.mxu0 0
  %2796 = vmatpush1.bf16.msra.mxu0 %v2529
  %2797 = vmatprep.subr.bf16.mxu0 0
  %2798 = vmatpush1.bf16.msra.mxu0 %v2528
  %2799 = vmatprep.subr.bf16.mxu0 0
  %2800 = vmatpush1.bf16.msra.mxu0 %v2527
  %2801 = vmatprep.subr.bf16.mxu0 0
  %2802 = vmatpush1.bf16.msra.mxu0 %v2526
  %2803 = vmatprep.subr.bf16.mxu0 0
  %2804 = vmatpush1.bf16.msra.mxu0 %v2525
  %2805 = vmatprep.subr.bf16.mxu0 0
  %2806 = vmatpush2.bf16.msra.mxu0 %v2540
  %2807 = vmatprep.subr.bf16.mxu0 0
  %2808 = vmatpush2.bf16.msra.mxu0 %v2539
  %2809 = vmatprep.subr.bf16.mxu0 0
  %2810 = vmatpush2.bf16.msra.mxu0 %v2538
  %2811 = vmatprep.subr.bf16.mxu0 0
  %2812 = vmatpush2.bf16.msra.mxu0 %v2537
  %2813 = vmatprep.subr.bf16.mxu0 0
  %2814 = vmatpush2.bf16.msra.mxu0 %v2536
  %2815 = vmatprep.subr.bf16.mxu0 0
  %2816 = vmatpush2.bf16.msra.mxu0 %v2535
  %2817 = vmatprep.subr.bf16.mxu0 0
  %2818 = vmatpush2.bf16.msra.mxu0 %v2534
  %2819 = vmatprep.subr.bf16.mxu0 0
  %2820 = vmatpush2.bf16.msra.mxu0 %v2533
  %2821 = vmatprep.mubr.bf16.mxu0 %v2082
  %2822 = vmatmul.mubr.bf16.gmra.mxu0 %v1984
  %v2823 = vpop.f32.mrf.mxu0
  %v2824 = vadd.f32 %v2768, %v2823
  %v2825 = vpop.f32.mrf.mxu0
  %v2826 = vpop.f32.mrf.mxu0
  %v2827 = vadd.f32 %v2771, %v2826
  %v2828 = vpop.f32.mrf.mxu0
  %2829 = vmatprep.mubr.bf16.mxu0 %v2083
  %2830 = vmatmul.mubr.bf16.gmra.mxu0 %v1985
  %v2831 = vpop.f32.mrf.mxu0
  %v2832 = vadd.f32 %v2776, %v2831
  %v2833 = vpop.f32.mrf.mxu0
  %v2834 = vpop.f32.mrf.mxu0
  %v2835 = vadd.f32 %v2779, %v2834
  %v2836 = vpop.f32.mrf.mxu0
  %2837 = vmatprep.mubr.bf16.mxu0 %v2084
  %2838 = vmatmul.mubr.bf16.gmra.mxu0 %v1986
  %v2839 = vpop.f32.mrf.mxu0
  %v2840 = vadd.f32 %v2784, %v2839
  %v2841 = vpop.f32.mrf.mxu0
  %v2842 = vpop.f32.mrf.mxu0
  %v2843 = vpop.f32.mrf.mxu0
  %2844 = vdwg.mxu0
  %2845 = vmatprep.subr.bf16.mxu0 0
  %2846 = vmatpush1.bf16.msra.mxu0 %v2548
  %2847 = vmatprep.subr.bf16.mxu0 0
  %2848 = vmatpush1.bf16.msra.mxu0 %v2547
  %2849 = vmatprep.subr.bf16.mxu0 0
  %2850 = vmatpush1.bf16.msra.mxu0 %v2546
  %2851 = vmatprep.subr.bf16.mxu0 0
  %2852 = vmatpush1.bf16.msra.mxu0 %v2545
  %2853 = vmatprep.subr.bf16.mxu0 0
  %2854 = vmatpush1.bf16.msra.mxu0 %v2544
  %2855 = vmatprep.subr.bf16.mxu0 0
  %2856 = vmatpush1.bf16.msra.mxu0 %v2543
  %2857 = vmatprep.subr.bf16.mxu0 0
  %2858 = vmatpush1.bf16.msra.mxu0 %v2542
  %2859 = vmatprep.subr.bf16.mxu0 0
  %2860 = vmatpush1.bf16.msra.mxu0 %v2541
  %2861 = vmatprep.subr.bf16.mxu0 0
  %2862 = vmatpush2.bf16.msra.mxu0 0
  %2863 = vmatprep.subr.bf16.mxu0 0
  %2864 = vmatpush2.bf16.msra.mxu0 0
  %2865 = vmatprep.subr.bf16.mxu0 0
  %2866 = vmatpush2.bf16.msra.mxu0 0
  %2867 = vmatprep.subr.bf16.mxu0 0
  %2868 = vmatpush2.bf16.msra.mxu0 0
  %2869 = vmatprep.subr.bf16.mxu0 0
  %2870 = vmatpush2.bf16.msra.mxu0 0
  %2871 = vmatprep.subr.bf16.mxu0 0
  %2872 = vmatpush2.bf16.msra.mxu0 0
  %2873 = vmatprep.subr.bf16.mxu0 0
  %2874 = vmatpush2.bf16.msra.mxu0 0
  %2875 = vmatprep.subr.bf16.mxu0 0
  %2876 = vmatpush2.bf16.msra.mxu0 0
  %2877 = vmatprep.mubr.bf16.mxu0 0
  %2878 = vmatmul.mubr.bf16.gmra.mxu0 %v2180
  %v2879 = vpop.f32.mrf.mxu0
  %v2880 = vadd.f32 %v2824, %v2879
  %v2881 = vpop.f32.mrf.mxu0
  %v2882 = vpop.f32.mrf.mxu0
  %v2883 = vadd.f32 %v2827, %v2882
  %v2884 = vpop.f32.mrf.mxu0
  %2885 = vmatprep.mubr.bf16.mxu0 0
  %2886 = vmatmul.mubr.bf16.gmra.mxu0 %v2181
  %v2887 = vpop.f32.mrf.mxu0
  %v2888 = vadd.f32 %v2832, %v2887
  %v2889 = vpop.f32.mrf.mxu0
  %v2890 = vpop.f32.mrf.mxu0
  %v2891 = vadd.f32 %v2835, %v2890
  %v2892 = vpop.f32.mrf.mxu0
  %2893 = vmatprep.mubr.bf16.mxu0 0
  %2894 = vmatmul.mubr.bf16.gmra.mxu0 %v2182
  %v2895 = vpop.f32.mrf.mxu0
  %v2896 = vadd.f32 %v2840, %v2895
  %v2897 = vpop.f32.mrf.mxu0
  %v2898 = vpop.f32.mrf.mxu0
  %v2899 = vpop.f32.mrf.mxu0
  %2900 = vdwg.mxu0
  %v2901 = vpack.c.bf16 %v1108, %v1107
  %v2902 = vpack.c.bf16 %v1110, %v1109
  %v2903 = vpack.c.bf16 %v1112, %v1111
  %v2904 = vpack.c.bf16 %v1114, %v1113
  %v2905 = vpack.c.bf16 %v1116, %v1115
  %v2906 = vpack.c.bf16 %v1118, %v1117
  %v2907 = vpack.c.bf16 %v1120, %v1119
  %v2908 = vpack.c.bf16 %v1122, %v1121
  %v2909 = vpack.c.bf16 %v1124, %v1123
  %v2910 = vpack.c.bf16 %v1126, %v1125
  %v2911 = vpack.c.bf16 %v1128, %v1127
  %v2912 = vpack.c.bf16 %v1130, %v1129
  %v2913 = vpack.c.bf16 %v1132, %v1131
  %v2914 = vpack.c.bf16 %v1134, %v1133
  %v2915 = vpack.c.bf16 %v1135, %v1135
  %v2917 = vand.u32 %v2915, %v1336
  %2919 = vmatprep.subr.bf16.mxu0 0
  %2920 = vmatpush1.bf16.msra.mxu0 %v2908
  %2921 = vmatprep.subr.bf16.mxu0 0
  %2922 = vmatpush1.bf16.msra.mxu0 %v2907
  %2923 = vmatprep.subr.bf16.mxu0 0
  %2924 = vmatpush1.bf16.msra.mxu0 %v2906
  %2925 = vmatprep.subr.bf16.mxu0 0
  %2926 = vmatpush1.bf16.msra.mxu0 %v2905
  %2927 = vmatprep.subr.bf16.mxu0 0
  %2928 = vmatpush1.bf16.msra.mxu0 %v2904
  %2929 = vmatprep.subr.bf16.mxu0 0
  %2930 = vmatpush1.bf16.msra.mxu0 %v2903
  %2931 = vmatprep.subr.bf16.mxu0 0
  %2932 = vmatpush1.bf16.msra.mxu0 %v2902
  %2933 = vmatprep.subr.bf16.mxu0 0
  %2934 = vmatpush1.bf16.msra.mxu0 %v2901
  %2935 = vmatprep.subr.bf16.mxu0 0
  %2936 = vmatpush2.bf16.msra.mxu0 0
  %2937 = vmatprep.subr.bf16.mxu0 0
  %2938 = vmatpush2.bf16.msra.mxu0 %v2917
  %2939 = vmatprep.subr.bf16.mxu0 0
  %2940 = vmatpush2.bf16.msra.mxu0 %v2914
  %2941 = vmatprep.subr.bf16.mxu0 0
  %2942 = vmatpush2.bf16.msra.mxu0 %v2913
  %2943 = vmatprep.subr.bf16.mxu0 0
  %2944 = vmatpush2.bf16.msra.mxu0 %v2912
  %2945 = vmatprep.subr.bf16.mxu0 0
  %2946 = vmatpush2.bf16.msra.mxu0 %v2911
  %2947 = vmatprep.subr.bf16.mxu0 0
  %2948 = vmatpush2.bf16.msra.mxu0 %v2910
  %2949 = vmatprep.subr.bf16.mxu0 0
  %2950 = vmatpush2.bf16.msra.mxu0 %v2909
  %2951 = vmatprep.mubr.bf16.mxu0 %v1327
  %2952 = vmatmul.mubr.bf16.gmra.mxu0 %v1316
  %v2953 = vpop.f32.mrf.mxu0
  %v2954 = vadd.f32 0.0, %v2953
  %v2955 = vpop.f32.mrf.mxu0
  %v2956 = vpop.f32.mrf.mxu0
  %v2957 = vadd.f32 0.0, %v2956
  %v2958 = vpop.f32.mrf.mxu0
  %2959 = vmatprep.mubr.bf16.mxu0 %v1330
  %2960 = vmatmul.mubr.bf16.gmra.mxu0 %v1318
  %v2961 = vpop.f32.mrf.mxu0
  %v2962 = vadd.f32 0.0, %v2961
  %v2963 = vpop.f32.mrf.mxu0
  %v2964 = vpop.f32.mrf.mxu0
  %v2965 = vadd.f32 0.0, %v2964
  %v2966 = vpop.f32.mrf.mxu0
  %2967 = vmatprep.mubr.bf16.mxu0 %v1333
  %2968 = vmatmul.mubr.bf16.gmra.mxu0 %v1320
  %v2969 = vpop.f32.mrf.mxu0
  %v2970 = vadd.f32 0.0, %v2969
  %v2971 = vpop.f32.mrf.mxu0
  %v2972 = vpop.f32.mrf.mxu0
  %v2973 = vpop.f32.mrf.mxu0
  %2974 = vdwg.mxu0
  %v2975 = vpack.c.bf16 %v2957, %v2954
  %v2976 = vpack.c.bf16 %v2965, %v2962
  %v2977 = vpack.c.bf16 %v2970, %v2970
  %2978 = vmatprep.subr.bf16.mxu0 0
  %2979 = vmatpush1.bf16.msra.mxu0 %v2908
  %2980 = vmatprep.subr.bf16.mxu0 0
  %2981 = vmatpush1.bf16.msra.mxu0 %v2907
  %2982 = vmatprep.subr.bf16.mxu0 0
  %2983 = vmatpush1.bf16.msra.mxu0 %v2906
  %2984 = vmatprep.subr.bf16.mxu0 0
  %2985 = vmatpush1.bf16.msra.mxu0 %v2905
  %2986 = vmatprep.subr.bf16.mxu0 0
  %2987 = vmatpush1.bf16.msra.mxu0 %v2904
  %2988 = vmatprep.subr.bf16.mxu0 0
  %2989 = vmatpush1.bf16.msra.mxu0 %v2903
  %2990 = vmatprep.subr.bf16.mxu0 0
  %2991 = vmatpush1.bf16.msra.mxu0 %v2902
  %2992 = vmatprep.subr.bf16.mxu0 0
  %2993 = vmatpush1.bf16.msra.mxu0 %v2901
  %2994 = vmatprep.subr.bf16.mxu0 0
  %2995 = vmatpush2.bf16.msra.mxu0 0
  %2996 = vmatprep.subr.bf16.mxu0 0
  %2997 = vmatpush2.bf16.msra.mxu0 %v2917
  %2998 = vmatprep.subr.bf16.mxu0 0
  %2999 = vmatpush2.bf16.msra.mxu0 %v2914
  %3000 = vmatprep.subr.bf16.mxu0 0
  %3001 = vmatpush2.bf16.msra.mxu0 %v2913
  %3002 = vmatprep.subr.bf16.mxu0 0
  %3003 = vmatpush2.bf16.msra.mxu0 %v2912
  %3004 = vmatprep.subr.bf16.mxu0 0
  %3005 = vmatpush2.bf16.msra.mxu0 %v2911
  %3006 = vmatprep.subr.bf16.mxu0 0
  %3007 = vmatpush2.bf16.msra.mxu0 %v2910
  %3008 = vmatprep.subr.bf16.mxu0 0
  %3009 = vmatpush2.bf16.msra.mxu0 %v2909
  %3010 = vmatprep.mubr.bf16.mxu0 %v1430
  %3011 = vmatmul.mubr.bf16.gmra.mxu0 %v1420
  %v3012 = vpop.f32.mrf.mxu0
  %v3013 = vadd.f32 0.0, %v3012
  %v3014 = vpop.f32.mrf.mxu0
  %v3015 = vpop.f32.mrf.mxu0
  %v3016 = vadd.f32 0.0, %v3015
  %v3017 = vpop.f32.mrf.mxu0
  %3018 = vmatprep.mubr.bf16.mxu0 %v1433
  %3019 = vmatmul.mubr.bf16.gmra.mxu0 %v1422
  %v3020 = vpop.f32.mrf.mxu0
  %v3021 = vadd.f32 0.0, %v3020
  %v3022 = vpop.f32.mrf.mxu0
  %v3023 = vpop.f32.mrf.mxu0
  %v3024 = vadd.f32 0.0, %v3023
  %v3025 = vpop.f32.mrf.mxu0
  %3026 = vmatprep.mubr.bf16.mxu0 %v1436
  %3027 = vmatmul.mubr.bf16.gmra.mxu0 %v1424
  %v3028 = vpop.f32.mrf.mxu0
  %v3029 = vadd.f32 0.0, %v3028
  %v3030 = vpop.f32.mrf.mxu0
  %v3031 = vpop.f32.mrf.mxu0
  %v3032 = vpop.f32.mrf.mxu0
  %3033 = vdwg.mxu0
  %v3034 = vpack.c.bf16 %v3016, %v3013
  %v3035 = vpack.c.bf16 %v3024, %v3021
  %v3036 = vpack.c.bf16 %v3029, %v3029
  %3037 = vmatprep.subr.bf16.mxu0 0
  %3038 = vmatpush1.bf16.msra.mxu0 %v2908
  %3039 = vmatprep.subr.bf16.mxu0 0
  %3040 = vmatpush1.bf16.msra.mxu0 %v2907
  %3041 = vmatprep.subr.bf16.mxu0 0
  %3042 = vmatpush1.bf16.msra.mxu0 %v2906
  %3043 = vmatprep.subr.bf16.mxu0 0
  %3044 = vmatpush1.bf16.msra.mxu0 %v2905
  %3045 = vmatprep.subr.bf16.mxu0 0
  %3046 = vmatpush1.bf16.msra.mxu0 %v2904
  %3047 = vmatprep.subr.bf16.mxu0 0
  %3048 = vmatpush1.bf16.msra.mxu0 %v2903
  %3049 = vmatprep.subr.bf16.mxu0 0
  %3050 = vmatpush1.bf16.msra.mxu0 %v2902
  %3051 = vmatprep.subr.bf16.mxu0 0
  %3052 = vmatpush1.bf16.msra.mxu0 %v2901
  %3053 = vmatprep.subr.bf16.mxu0 0
  %3054 = vmatpush2.bf16.msra.mxu0 0
  %3055 = vmatprep.subr.bf16.mxu0 0
  %3056 = vmatpush2.bf16.msra.mxu0 %v2917
  %3057 = vmatprep.subr.bf16.mxu0 0
  %3058 = vmatpush2.bf16.msra.mxu0 %v2914
  %3059 = vmatprep.subr.bf16.mxu0 0
  %3060 = vmatpush2.bf16.msra.mxu0 %v2913
  %3061 = vmatprep.subr.bf16.mxu0 0
  %3062 = vmatpush2.bf16.msra.mxu0 %v2912
  %3063 = vmatprep.subr.bf16.mxu0 0
  %3064 = vmatpush2.bf16.msra.mxu0 %v2911
  %3065 = vmatprep.subr.bf16.mxu0 0
  %3066 = vmatpush2.bf16.msra.mxu0 %v2910
  %3067 = vmatprep.subr.bf16.mxu0 0
  %3068 = vmatpush2.bf16.msra.mxu0 %v2909
  %3069 = vmatprep.mubr.bf16.mxu0 %v1528
  %3070 = vmatmul.mubr.bf16.gmra.mxu0 %v1518
  %v3071 = vpop.f32.mrf.mxu0
  %v3072 = vadd.f32 0.0, %v3071
  %v3073 = vpop.f32.mrf.mxu0
  %v3074 = vpop.f32.mrf.mxu0
  %v3075 = vadd.f32 0.0, %v3074
  %v3076 = vpop.f32.mrf.mxu0
  %3077 = vmatprep.mubr.bf16.mxu0 %v1531
  %3078 = vmatmul.mubr.bf16.gmra.mxu0 %v1520
  %v3079 = vpop.f32.mrf.mxu0
  %v3080 = vadd.f32 0.0, %v3079
  %v3081 = vpop.f32.mrf.mxu0
  %v3082 = vpop.f32.mrf.mxu0
  %v3083 = vadd.f32 0.0, %v3082
  %v3084 = vpop.f32.mrf.mxu0
  %3085 = vmatprep.mubr.bf16.mxu0 %v1534
  %3086 = vmatmul.mubr.bf16.gmra.mxu0 %v1522
  %v3087 = vpop.f32.mrf.mxu0
  %v3088 = vadd.f32 0.0, %v3087
  %v3089 = vpop.f32.mrf.mxu0
  %v3090 = vpop.f32.mrf.mxu0
  %v3091 = vpop.f32.mrf.mxu0
  %3092 = vdwg.mxu0
  %v3093 = vpack.c.bf16 %v3075, %v3072
  %v3094 = vpack.c.bf16 %v3083, %v3080
  %v3095 = vpack.c.bf16 %v3088, %v3088
  %3096 = vmatprep.subr.bf16.mxu0 0
  %3097 = vmatpush1.bf16.msra.mxu0 %v2908
  %3098 = vmatprep.subr.bf16.mxu0 0
  %3099 = vmatpush1.bf16.msra.mxu0 %v2907
  %3100 = vmatprep.subr.bf16.mxu0 0
  %3101 = vmatpush1.bf16.msra.mxu0 %v2906
  %3102 = vmatprep.subr.bf16.mxu0 0
  %3103 = vmatpush1.bf16.msra.mxu0 %v2905
  %3104 = vmatprep.subr.bf16.mxu0 0
  %3105 = vmatpush1.bf16.msra.mxu0 %v2904
  %3106 = vmatprep.subr.bf16.mxu0 0
  %3107 = vmatpush1.bf16.msra.mxu0 %v2903
  %3108 = vmatprep.subr.bf16.mxu0 0
  %3109 = vmatpush1.bf16.msra.mxu0 %v2902
  %3110 = vmatprep.subr.bf16.mxu0 0
  %3111 = vmatpush1.bf16.msra.mxu0 %v2901
  %3112 = vmatprep.subr.bf16.mxu0 0
  %3113 = vmatpush2.bf16.msra.mxu0 0
  %3114 = vmatprep.subr.bf16.mxu0 0
  %3115 = vmatpush2.bf16.msra.mxu0 %v2917
  %3116 = vmatprep.subr.bf16.mxu0 0
  %3117 = vmatpush2.bf16.msra.mxu0 %v2914
  %3118 = vmatprep.subr.bf16.mxu0 0
  %3119 = vmatpush2.bf16.msra.mxu0 %v2913
  %3120 = vmatprep.subr.bf16.mxu0 0
  %3121 = vmatpush2.bf16.msra.mxu0 %v2912
  %3122 = vmatprep.subr.bf16.mxu0 0
  %3123 = vmatpush2.bf16.msra.mxu0 %v2911
  %3124 = vmatprep.subr.bf16.mxu0 0
  %3125 = vmatpush2.bf16.msra.mxu0 %v2910
  %3126 = vmatprep.subr.bf16.mxu0 0
  %3127 = vmatpush2.bf16.msra.mxu0 %v2909
  %3128 = vmatprep.mubr.bf16.mxu0 %v1626
  %3129 = vmatmul.mubr.bf16.gmra.mxu0 %v1616
  %v3130 = vpop.f32.mrf.mxu0
  %v3131 = vadd.f32 0.0, %v3130
  %v3132 = vpop.f32.mrf.mxu0
  %v3133 = vpop.f32.mrf.mxu0
  %v3134 = vadd.f32 0.0, %v3133
  %v3135 = vpop.f32.mrf.mxu0
  %3136 = vmatprep.mubr.bf16.mxu0 %v1629
  %3137 = vmatmul.mubr.bf16.gmra.mxu0 %v1618
  %v3138 = vpop.f32.mrf.mxu0
  %v3139 = vadd.f32 0.0, %v3138
  %v3140 = vpop.f32.mrf.mxu0
  %v3141 = vpop.f32.mrf.mxu0
  %v3142 = vadd.f32 0.0, %v3141
  %v3143 = vpop.f32.mrf.mxu0
  %3144 = vmatprep.mubr.bf16.mxu0 %v1632
  %3145 = vmatmul.mubr.bf16.gmra.mxu0 %v1620
  %v3146 = vpop.f32.mrf.mxu0
  %v3147 = vadd.f32 0.0, %v3146
  %v3148 = vpop.f32.mrf.mxu0
  %v3149 = vpop.f32.mrf.mxu0
  %v3150 = vpop.f32.mrf.mxu0
  %3151 = vdwg.mxu0
  %v3152 = vpack.c.bf16 %v3134, %v3131
  %v3153 = vpack.c.bf16 %v3142, %v3139
  %v3154 = vpack.c.bf16 %v3147, %v3147
  %3155 = vmatprep.subr.bf16.mxu0 0
  %3156 = vmatpush1.bf16.msra.mxu0 %v2908
  %3157 = vmatprep.subr.bf16.mxu0 0
  %3158 = vmatpush1.bf16.msra.mxu0 %v2907
  %3159 = vmatprep.subr.bf16.mxu0 0
  %3160 = vmatpush1.bf16.msra.mxu0 %v2906
  %3161 = vmatprep.subr.bf16.mxu0 0
  %3162 = vmatpush1.bf16.msra.mxu0 %v2905
  %3163 = vmatprep.subr.bf16.mxu0 0
  %3164 = vmatpush1.bf16.msra.mxu0 %v2904
  %3165 = vmatprep.subr.bf16.mxu0 0
  %3166 = vmatpush1.bf16.msra.mxu0 %v2903
  %3167 = vmatprep.subr.bf16.mxu0 0
  %3168 = vmatpush1.bf16.msra.mxu0 %v2902
  %3169 = vmatprep.subr.bf16.mxu0 0
  %3170 = vmatpush1.bf16.msra.mxu0 %v2901
  %3171 = vmatprep.subr.bf16.mxu0 0
  %3172 = vmatpush2.bf16.msra.mxu0 0
  %3173 = vmatprep.subr.bf16.mxu0 0
  %3174 = vmatpush2.bf16.msra.mxu0 %v2917
  %3175 = vmatprep.subr.bf16.mxu0 0
  %3176 = vmatpush2.bf16.msra.mxu0 %v2914
  %3177 = vmatprep.subr.bf16.mxu0 0
  %3178 = vmatpush2.bf16.msra.mxu0 %v2913
  %3179 = vmatprep.subr.bf16.mxu0 0
  %3180 = vmatpush2.bf16.msra.mxu0 %v2912
  %3181 = vmatprep.subr.bf16.mxu0 0
  %3182 = vmatpush2.bf16.msra.mxu0 %v2911
  %3183 = vmatprep.subr.bf16.mxu0 0
  %3184 = vmatpush2.bf16.msra.mxu0 %v2910
  %3185 = vmatprep.subr.bf16.mxu0 0
  %3186 = vmatpush2.bf16.msra.mxu0 %v2909
  %3187 = vmatprep.mubr.bf16.mxu0 %v1724
  %3188 = vmatmul.mubr.bf16.gmra.mxu0 %v1714
  %v3189 = vpop.f32.mrf.mxu0
  %v3190 = vadd.f32 0.0, %v3189
  %v3191 = vpop.f32.mrf.mxu0
  %v3192 = vpop.f32.mrf.mxu0
  %v3193 = vadd.f32 0.0, %v3192
  %v3194 = vpop.f32.mrf.mxu0
  %3195 = vmatprep.mubr.bf16.mxu0 %v1727
  %3196 = vmatmul.mubr.bf16.gmra.mxu0 %v1716
  %v3197 = vpop.f32.mrf.mxu0
  %v3198 = vadd.f32 0.0, %v3197
  %v3199 = vpop.f32.mrf.mxu0
  %v3200 = vpop.f32.mrf.mxu0
  %v3201 = vadd.f32 0.0, %v3200
  %v3202 = vpop.f32.mrf.mxu0
  %3203 = vmatprep.mubr.bf16.mxu0 %v1730
  %3204 = vmatmul.mubr.bf16.gmra.mxu0 %v1718
  %v3205 = vpop.f32.mrf.mxu0
  %v3206 = vadd.f32 0.0, %v3205
  %v3207 = vpop.f32.mrf.mxu0
  %v3208 = vpop.f32.mrf.mxu0
  %v3209 = vpop.f32.mrf.mxu0
  %3210 = vdwg.mxu0
  %v3211 = vpack.c.bf16 %v3193, %v3190
  %v3212 = vpack.c.bf16 %v3201, %v3198
  %v3213 = vpack.c.bf16 %v3206, %v3206
  %3214 = vmatprep.subr.bf16.mxu0 0
  %3215 = vmatpush1.bf16.msra.mxu0 %v2908
  %3216 = vmatprep.subr.bf16.mxu0 0
  %3217 = vmatpush1.bf16.msra.mxu0 %v2907
  %3218 = vmatprep.subr.bf16.mxu0 0
  %3219 = vmatpush1.bf16.msra.mxu0 %v2906
  %3220 = vmatprep.subr.bf16.mxu0 0
  %3221 = vmatpush1.bf16.msra.mxu0 %v2905
  %3222 = vmatprep.subr.bf16.mxu0 0
  %3223 = vmatpush1.bf16.msra.mxu0 %v2904
  %3224 = vmatprep.subr.bf16.mxu0 0
  %3225 = vmatpush1.bf16.msra.mxu0 %v2903
  %3226 = vmatprep.subr.bf16.mxu0 0
  %3227 = vmatpush1.bf16.msra.mxu0 %v2902
  %3228 = vmatprep.subr.bf16.mxu0 0
  %3229 = vmatpush1.bf16.msra.mxu0 %v2901
  %3230 = vmatprep.subr.bf16.mxu0 0
  %3231 = vmatpush2.bf16.msra.mxu0 0
  %3232 = vmatprep.subr.bf16.mxu0 0
  %3233 = vmatpush2.bf16.msra.mxu0 %v2917
  %3234 = vmatprep.subr.bf16.mxu0 0
  %3235 = vmatpush2.bf16.msra.mxu0 %v2914
  %3236 = vmatprep.subr.bf16.mxu0 0
  %3237 = vmatpush2.bf16.msra.mxu0 %v2913
  %3238 = vmatprep.subr.bf16.mxu0 0
  %3239 = vmatpush2.bf16.msra.mxu0 %v2912
  %3240 = vmatprep.subr.bf16.mxu0 0
  %3241 = vmatpush2.bf16.msra.mxu0 %v2911
  %3242 = vmatprep.subr.bf16.mxu0 0
  %3243 = vmatpush2.bf16.msra.mxu0 %v2910
  %3244 = vmatprep.subr.bf16.mxu0 0
  %3245 = vmatpush2.bf16.msra.mxu0 %v2909
  %3246 = vmatprep.mubr.bf16.mxu0 %v1822
  %3247 = vmatmul.mubr.bf16.gmra.mxu0 %v1812
  %v3248 = vpop.f32.mrf.mxu0
  %v3249 = vadd.f32 0.0, %v3248
  %v3250 = vpop.f32.mrf.mxu0
  %v3251 = vpop.f32.mrf.mxu0
  %v3252 = vadd.f32 0.0, %v3251
  %v3253 = vpop.f32.mrf.mxu0
  %3254 = vmatprep.mubr.bf16.mxu0 %v1825
  %3255 = vmatmul.mubr.bf16.gmra.mxu0 %v1814
  %v3256 = vpop.f32.mrf.mxu0
  %v3257 = vadd.f32 0.0, %v3256
  %v3258 = vpop.f32.mrf.mxu0
  %v3259 = vpop.f32.mrf.mxu0
  %v3260 = vadd.f32 0.0, %v3259
  %v3261 = vpop.f32.mrf.mxu0
  %3262 = vmatprep.mubr.bf16.mxu0 %v1828
  %3263 = vmatmul.mubr.bf16.gmra.mxu0 %v1816
  %v3264 = vpop.f32.mrf.mxu0
  %v3265 = vadd.f32 0.0, %v3264
  %v3266 = vpop.f32.mrf.mxu0
  %v3267 = vpop.f32.mrf.mxu0
  %v3268 = vpop.f32.mrf.mxu0
  %3269 = vdwg.mxu0
  %v3270 = vpack.c.bf16 %v3252, %v3249
  %v3271 = vpack.c.bf16 %v3260, %v3257
  %v3272 = vpack.c.bf16 %v3265, %v3265
  %3273 = vmatprep.subr.bf16.mxu0 0
  %3274 = vmatpush1.bf16.msra.mxu0 %v2908
  %3275 = vmatprep.subr.bf16.mxu0 0
  %3276 = vmatpush1.bf16.msra.mxu0 %v2907
  %3277 = vmatprep.subr.bf16.mxu0 0
  %3278 = vmatpush1.bf16.msra.mxu0 %v2906
  %3279 = vmatprep.subr.bf16.mxu0 0
  %3280 = vmatpush1.bf16.msra.mxu0 %v2905
  %3281 = vmatprep.subr.bf16.mxu0 0
  %3282 = vmatpush1.bf16.msra.mxu0 %v2904
  %3283 = vmatprep.subr.bf16.mxu0 0
  %3284 = vmatpush1.bf16.msra.mxu0 %v2903
  %3285 = vmatprep.subr.bf16.mxu0 0
  %3286 = vmatpush1.bf16.msra.mxu0 %v2902
  %3287 = vmatprep.subr.bf16.mxu0 0
  %3288 = vmatpush1.bf16.msra.mxu0 %v2901
  %3289 = vmatprep.subr.bf16.mxu0 0
  %3290 = vmatpush2.bf16.msra.mxu0 0
  %3291 = vmatprep.subr.bf16.mxu0 0
  %3292 = vmatpush2.bf16.msra.mxu0 %v2917
  %3293 = vmatprep.subr.bf16.mxu0 0
  %3294 = vmatpush2.bf16.msra.mxu0 %v2914
  %3295 = vmatprep.subr.bf16.mxu0 0
  %3296 = vmatpush2.bf16.msra.mxu0 %v2913
  %3297 = vmatprep.subr.bf16.mxu0 0
  %3298 = vmatpush2.bf16.msra.mxu0 %v2912
  %3299 = vmatprep.subr.bf16.mxu0 0
  %3300 = vmatpush2.bf16.msra.mxu0 %v2911
  %3301 = vmatprep.subr.bf16.mxu0 0
  %3302 = vmatpush2.bf16.msra.mxu0 %v2910
  %3303 = vmatprep.subr.bf16.mxu0 0
  %3304 = vmatpush2.bf16.msra.mxu0 %v2909
  %3305 = vmatprep.mubr.bf16.mxu0 %v1920
  %3306 = vmatmul.mubr.bf16.gmra.mxu0 %v1910
  %v3307 = vpop.f32.mrf.mxu0
  %v3308 = vadd.f32 0.0, %v3307
  %v3309 = vpop.f32.mrf.mxu0
  %v3310 = vpop.f32.mrf.mxu0
  %v3311 = vadd.f32 0.0, %v3310
  %v3312 = vpop.f32.mrf.mxu0
  %3313 = vmatprep.mubr.bf16.mxu0 %v1923
  %3314 = vmatmul.mubr.bf16.gmra.mxu0 %v1912
  %v3315 = vpop.f32.mrf.mxu0
  %v3316 = vadd.f32 0.0, %v3315
  %v3317 = vpop.f32.mrf.mxu0
  %v3318 = vpop.f32.mrf.mxu0
  %v3319 = vadd.f32 0.0, %v3318
  %v3320 = vpop.f32.mrf.mxu0
  %3321 = vmatprep.mubr.bf16.mxu0 %v1926
  %3322 = vmatmul.mubr.bf16.gmra.mxu0 %v1914
  %v3323 = vpop.f32.mrf.mxu0
  %v3324 = vadd.f32 0.0, %v3323
  %v3325 = vpop.f32.mrf.mxu0
  %v3326 = vpop.f32.mrf.mxu0
  %v3327 = vpop.f32.mrf.mxu0
  %3328 = vdwg.mxu0
  %v3329 = vpack.c.bf16 %v3311, %v3308
  %v3330 = vpack.c.bf16 %v3319, %v3316
  %v3331 = vpack.c.bf16 %v3324, %v3324
  %3332 = vmatprep.subr.bf16.mxu0 0
  %3333 = vmatpush1.bf16.msra.mxu0 %v2908
  %3334 = vmatprep.subr.bf16.mxu0 0
  %3335 = vmatpush1.bf16.msra.mxu0 %v2907
  %3336 = vmatprep.subr.bf16.mxu0 0
  %3337 = vmatpush1.bf16.msra.mxu0 %v2906
  %3338 = vmatprep.subr.bf16.mxu0 0
  %3339 = vmatpush1.bf16.msra.mxu0 %v2905
  %3340 = vmatprep.subr.bf16.mxu0 0
  %3341 = vmatpush1.bf16.msra.mxu0 %v2904
  %3342 = vmatprep.subr.bf16.mxu0 0
  %3343 = vmatpush1.bf16.msra.mxu0 %v2903
  %3344 = vmatprep.subr.bf16.mxu0 0
  %3345 = vmatpush1.bf16.msra.mxu0 %v2902
  %3346 = vmatprep.subr.bf16.mxu0 0
  %3347 = vmatpush1.bf16.msra.mxu0 %v2901
  %3348 = vmatprep.subr.bf16.mxu0 0
  %3349 = vmatpush2.bf16.msra.mxu0 0
  %3350 = vmatprep.subr.bf16.mxu0 0
  %3351 = vmatpush2.bf16.msra.mxu0 %v2917
  %3352 = vmatprep.subr.bf16.mxu0 0
  %3353 = vmatpush2.bf16.msra.mxu0 %v2914
  %3354 = vmatprep.subr.bf16.mxu0 0
  %3355 = vmatpush2.bf16.msra.mxu0 %v2913
  %3356 = vmatprep.subr.bf16.mxu0 0
  %3357 = vmatpush2.bf16.msra.mxu0 %v2912
  %3358 = vmatprep.subr.bf16.mxu0 0
  %3359 = vmatpush2.bf16.msra.mxu0 %v2911
  %3360 = vmatprep.subr.bf16.mxu0 0
  %3361 = vmatpush2.bf16.msra.mxu0 %v2910
  %3362 = vmatprep.subr.bf16.mxu0 0
  %3363 = vmatpush2.bf16.msra.mxu0 %v2909
  %3364 = vmatprep.mubr.bf16.mxu0 %v2018
  %3365 = vmatmul.mubr.bf16.gmra.mxu0 %v2008
  %v3366 = vpop.f32.mrf.mxu0
  %v3367 = vadd.f32 0.0, %v3366
  %v3368 = vpop.f32.mrf.mxu0
  %v3369 = vpop.f32.mrf.mxu0
  %v3370 = vadd.f32 0.0, %v3369
  %v3371 = vpop.f32.mrf.mxu0
  %3372 = vmatprep.mubr.bf16.mxu0 %v2021
  %3373 = vmatmul.mubr.bf16.gmra.mxu0 %v2010
  %v3374 = vpop.f32.mrf.mxu0
  %v3375 = vadd.f32 0.0, %v3374
  %v3376 = vpop.f32.mrf.mxu0
  %v3377 = vpop.f32.mrf.mxu0
  %v3378 = vadd.f32 0.0, %v3377
  %v3379 = vpop.f32.mrf.mxu0
  %3380 = vmatprep.mubr.bf16.mxu0 %v2024
  %3381 = vmatmul.mubr.bf16.gmra.mxu0 %v2012
  %v3382 = vpop.f32.mrf.mxu0
  %v3383 = vadd.f32 0.0, %v3382
  %v3384 = vpop.f32.mrf.mxu0
  %v3385 = vpop.f32.mrf.mxu0
  %v3386 = vpop.f32.mrf.mxu0
  %3387 = vdwg.mxu0
  %v3388 = vpack.c.bf16 %v3370, %v3367
  %v3389 = vpack.c.bf16 %v3378, %v3375
  %v3390 = vpack.c.bf16 %v3383, %v3383
  %3391 = vmatprep.subr.bf16.mxu0 0
  %3392 = vmatpush1.bf16.msra.mxu0 %v2908
  %3393 = vmatprep.subr.bf16.mxu0 0
  %3394 = vmatpush1.bf16.msra.mxu0 %v2907
  %3395 = vmatprep.subr.bf16.mxu0 0
  %3396 = vmatpush1.bf16.msra.mxu0 %v2906
  %3397 = vmatprep.subr.bf16.mxu0 0
  %3398 = vmatpush1.bf16.msra.mxu0 %v2905
  %3399 = vmatprep.subr.bf16.mxu0 0
  %3400 = vmatpush1.bf16.msra.mxu0 %v2904
  %3401 = vmatprep.subr.bf16.mxu0 0
  %3402 = vmatpush1.bf16.msra.mxu0 %v2903
  %3403 = vmatprep.subr.bf16.mxu0 0
  %3404 = vmatpush1.bf16.msra.mxu0 %v2902
  %3405 = vmatprep.subr.bf16.mxu0 0
  %3406 = vmatpush1.bf16.msra.mxu0 %v2901
  %3407 = vmatprep.subr.bf16.mxu0 0
  %3408 = vmatpush2.bf16.msra.mxu0 0
  %3409 = vmatprep.subr.bf16.mxu0 0
  %3410 = vmatpush2.bf16.msra.mxu0 %v2917
  %3411 = vmatprep.subr.bf16.mxu0 0
  %3412 = vmatpush2.bf16.msra.mxu0 %v2914
  %3413 = vmatprep.subr.bf16.mxu0 0
  %3414 = vmatpush2.bf16.msra.mxu0 %v2913
  %3415 = vmatprep.subr.bf16.mxu0 0
  %3416 = vmatpush2.bf16.msra.mxu0 %v2912
  %3417 = vmatprep.subr.bf16.mxu0 0
  %3418 = vmatpush2.bf16.msra.mxu0 %v2911
  %3419 = vmatprep.subr.bf16.mxu0 0
  %3420 = vmatpush2.bf16.msra.mxu0 %v2910
  %3421 = vmatprep.subr.bf16.mxu0 0
  %3422 = vmatpush2.bf16.msra.mxu0 %v2909
  %3423 = vmatprep.mubr.bf16.mxu0 %v2116
  %3424 = vmatmul.mubr.bf16.gmra.mxu0 %v2106
  %v3425 = vpop.f32.mrf.mxu0
  %v3426 = vadd.f32 0.0, %v3425
  %v3427 = vpop.f32.mrf.mxu0
  %v3428 = vpop.f32.mrf.mxu0
  %v3429 = vadd.f32 0.0, %v3428
  %v3430 = vpop.f32.mrf.mxu0
  %3431 = vmatprep.mubr.bf16.mxu0 %v2119
  %3432 = vmatmul.mubr.bf16.gmra.mxu0 %v2108
  %v3433 = vpop.f32.mrf.mxu0
  %v3434 = vadd.f32 0.0, %v3433
  %v3435 = vpop.f32.mrf.mxu0
  %v3436 = vpop.f32.mrf.mxu0
  %v3437 = vadd.f32 0.0, %v3436
  %v3438 = vpop.f32.mrf.mxu0
  %3439 = vmatprep.mubr.bf16.mxu0 %v2122
  %3440 = vmatmul.mubr.bf16.gmra.mxu0 %v2110
  %v3441 = vpop.f32.mrf.mxu0
  %v3442 = vadd.f32 0.0, %v3441
  %v3443 = vpop.f32.mrf.mxu0
  %v3444 = vpop.f32.mrf.mxu0
  %v3445 = vpop.f32.mrf.mxu0
  %3446 = vdwg.mxu0
  %v3447 = vpack.c.bf16 %v3429, %v3426
  %v3448 = vpack.c.bf16 %v3437, %v3434
  %v3449 = vpack.c.bf16 %v3442, %v3442
  %3450 = vmatprep.subr.bf16.mxu0 0
  %3451 = vmatpush1.bf16.msra.mxu0 %v2484
  %3452 = vmatprep.subr.bf16.mxu0 0
  %3453 = vmatpush1.bf16.msra.mxu0 %v2483
  %3454 = vmatprep.subr.bf16.mxu0 0
  %3455 = vmatpush1.bf16.msra.mxu0 %v2482
  %3456 = vmatprep.subr.bf16.mxu0 0
  %3457 = vmatpush1.bf16.msra.mxu0 %v2481
  %3458 = vmatprep.subr.bf16.mxu0 0
  %3459 = vmatpush1.bf16.msra.mxu0 %v2480
  %3460 = vmatprep.subr.bf16.mxu0 0
  %3461 = vmatpush1.bf16.msra.mxu0 %v2479
  %3462 = vmatprep.subr.bf16.mxu0 0
  %3463 = vmatpush1.bf16.msra.mxu0 %v2478
  %3464 = vmatprep.subr.bf16.mxu0 0
  %3465 = vmatpush1.bf16.msra.mxu0 %v2477
  %3466 = vmatprep.subr.bf16.mxu0 0
  %3467 = vmatpush2.bf16.msra.mxu0 %v2492
  %3468 = vmatprep.subr.bf16.mxu0 0
  %3469 = vmatpush2.bf16.msra.mxu0 %v2491
  %3470 = vmatprep.subr.bf16.mxu0 0
  %3471 = vmatpush2.bf16.msra.mxu0 %v2490
  %3472 = vmatprep.subr.bf16.mxu0 0
  %3473 = vmatpush2.bf16.msra.mxu0 %v2489
  %3474 = vmatprep.subr.bf16.mxu0 0
  %3475 = vmatpush2.bf16.msra.mxu0 %v2488
  %3476 = vmatprep.subr.bf16.mxu0 0
  %3477 = vmatpush2.bf16.msra.mxu0 %v2487
  %3478 = vmatprep.subr.bf16.mxu0 0
  %3479 = vmatpush2.bf16.msra.mxu0 %v2486
  %3480 = vmatprep.subr.bf16.mxu0 0
  %3481 = vmatpush2.bf16.msra.mxu0 %v2485
  %3482 = vmatprep.mubr.bf16.mxu0 %v3034
  %3483 = vmatmul.mubr.bf16.gmra.mxu0 %v2975
  %v3484 = vpop.f32.mrf.mxu0
  %v3485 = vadd.f32 %v2187, %v3484
  %v3486 = vpop.f32.mrf.mxu0
  %v3487 = vpop.f32.mrf.mxu0
  %v3488 = vadd.f32 %v2187, %v3487
  %v3489 = vpop.f32.mrf.mxu0
  %3490 = vmatprep.mubr.bf16.mxu0 %v3035
  %3491 = vmatmul.mubr.bf16.gmra.mxu0 %v2976
  %v3492 = vpop.f32.mrf.mxu0
  %v3493 = vadd.f32 %v2187, %v3492
  %v3494 = vpop.f32.mrf.mxu0
  %v3495 = vpop.f32.mrf.mxu0
  %v3496 = vadd.f32 %v2187, %v3495
  %v3497 = vpop.f32.mrf.mxu0
  %3498 = vmatprep.mubr.bf16.mxu0 %v3036
  %3499 = vmatmul.mubr.bf16.gmra.mxu0 %v2977
  %v3500 = vpop.f32.mrf.mxu0
  %v3501 = vadd.f32 %v2187, %v3500
  %v3502 = vpop.f32.mrf.mxu0
  %v3503 = vpop.f32.mrf.mxu0
  %v3504 = vpop.f32.mrf.mxu0
  %3505 = vdwg.mxu0
  %3506 = vmatprep.subr.bf16.mxu0 0
  %3507 = vmatpush1.bf16.msra.mxu0 %v2500
  %3508 = vmatprep.subr.bf16.mxu0 0
  %3509 = vmatpush1.bf16.msra.mxu0 %v2499
  %3510 = vmatprep.subr.bf16.mxu0 0
  %3511 = vmatpush1.bf16.msra.mxu0 %v2498
  %3512 = vmatprep.subr.bf16.mxu0 0
  %3513 = vmatpush1.bf16.msra.mxu0 %v2497
  %3514 = vmatprep.subr.bf16.mxu0 0
  %3515 = vmatpush1.bf16.msra.mxu0 %v2496
  %3516 = vmatprep.subr.bf16.mxu0 0
  %3517 = vmatpush1.bf16.msra.mxu0 %v2495
  %3518 = vmatprep.subr.bf16.mxu0 0
  %3519 = vmatpush1.bf16.msra.mxu0 %v2494
  %3520 = vmatprep.subr.bf16.mxu0 0
  %3521 = vmatpush1.bf16.msra.mxu0 %v2493
  %3522 = vmatprep.subr.bf16.mxu0 0
  %3523 = vmatpush2.bf16.msra.mxu0 %v2508
  %3524 = vmatprep.subr.bf16.mxu0 0
  %3525 = vmatpush2.bf16.msra.mxu0 %v2507
  %3526 = vmatprep.subr.bf16.mxu0 0
  %3527 = vmatpush2.bf16.msra.mxu0 %v2506
  %3528 = vmatprep.subr.bf16.mxu0 0
  %3529 = vmatpush2.bf16.msra.mxu0 %v2505
  %3530 = vmatprep.subr.bf16.mxu0 0
  %3531 = vmatpush2.bf16.msra.mxu0 %v2504
  %3532 = vmatprep.subr.bf16.mxu0 0
  %3533 = vmatpush2.bf16.msra.mxu0 %v2503
  %3534 = vmatprep.subr.bf16.mxu0 0
  %3535 = vmatpush2.bf16.msra.mxu0 %v2502
  %3536 = vmatprep.subr.bf16.mxu0 0
  %3537 = vmatpush2.bf16.msra.mxu0 %v2501
  %3538 = vmatprep.mubr.bf16.mxu0 %v3152
  %3539 = vmatmul.mubr.bf16.gmra.mxu0 %v3093
  %v3540 = vpop.f32.mrf.mxu0
  %v3541 = vadd.f32 %v3485, %v3540
  %v3542 = vpop.f32.mrf.mxu0
  %v3543 = vpop.f32.mrf.mxu0
  %v3544 = vadd.f32 %v3488, %v3543
  %v3545 = vpop.f32.mrf.mxu0
  %3546 = vmatprep.mubr.bf16.mxu0 %v3153
  %3547 = vmatmul.mubr.bf16.gmra.mxu0 %v3094
  %v3548 = vpop.f32.mrf.mxu0
  %v3549 = vadd.f32 %v3493, %v3548
  %v3550 = vpop.f32.mrf.mxu0
  %v3551 = vpop.f32.mrf.mxu0
  %v3552 = vadd.f32 %v3496, %v3551
  %v3553 = vpop.f32.mrf.mxu0
  %3554 = vmatprep.mubr.bf16.mxu0 %v3154
  %3555 = vmatmul.mubr.bf16.gmra.mxu0 %v3095
  %v3556 = vpop.f32.mrf.mxu0
  %v3557 = vadd.f32 %v3501, %v3556
  %v3558 = vpop.f32.mrf.mxu0
  %v3559 = vpop.f32.mrf.mxu0
  %v3560 = vpop.f32.mrf.mxu0
  %3561 = vdwg.mxu0
  %3562 = vmatprep.subr.bf16.mxu0 0
  %3563 = vmatpush1.bf16.msra.mxu0 %v2516
  %3564 = vmatprep.subr.bf16.mxu0 0
  %3565 = vmatpush1.bf16.msra.mxu0 %v2515
  %3566 = vmatprep.subr.bf16.mxu0 0
  %3567 = vmatpush1.bf16.msra.mxu0 %v2514
  %3568 = vmatprep.subr.bf16.mxu0 0
  %3569 = vmatpush1.bf16.msra.mxu0 %v2513
  %3570 = vmatprep.subr.bf16.mxu0 0
  %3571 = vmatpush1.bf16.msra.mxu0 %v2512
  %3572 = vmatprep.subr.bf16.mxu0 0
  %3573 = vmatpush1.bf16.msra.mxu0 %v2511
  %3574 = vmatprep.subr.bf16.mxu0 0
  %3575 = vmatpush1.bf16.msra.mxu0 %v2510
  %3576 = vmatprep.subr.bf16.mxu0 0
  %3577 = vmatpush1.bf16.msra.mxu0 %v2509
  %3578 = vmatprep.subr.bf16.mxu0 0
  %3579 = vmatpush2.bf16.msra.mxu0 %v2524
  %3580 = vmatprep.subr.bf16.mxu0 0
  %3581 = vmatpush2.bf16.msra.mxu0 %v2523
  %3582 = vmatprep.subr.bf16.mxu0 0
  %3583 = vmatpush2.bf16.msra.mxu0 %v2522
  %3584 = vmatprep.subr.bf16.mxu0 0
  %3585 = vmatpush2.bf16.msra.mxu0 %v2521
  %3586 = vmatprep.subr.bf16.mxu0 0
  %3587 = vmatpush2.bf16.msra.mxu0 %v2520
  %3588 = vmatprep.subr.bf16.mxu0 0
  %3589 = vmatpush2.bf16.msra.mxu0 %v2519
  %3590 = vmatprep.subr.bf16.mxu0 0
  %3591 = vmatpush2.bf16.msra.mxu0 %v2518
  %3592 = vmatprep.subr.bf16.mxu0 0
  %3593 = vmatpush2.bf16.msra.mxu0 %v2517
  %3594 = vmatprep.mubr.bf16.mxu0 %v3270
  %3595 = vmatmul.mubr.bf16.gmra.mxu0 %v3211
  %v3596 = vpop.f32.mrf.mxu0
  %v3597 = vadd.f32 %v3541, %v3596
  %v3598 = vpop.f32.mrf.mxu0
  %v3599 = vpop.f32.mrf.mxu0
  %v3600 = vadd.f32 %v3544, %v3599
  %v3601 = vpop.f32.mrf.mxu0
  %3602 = vmatprep.mubr.bf16.mxu0 %v3271
  %3603 = vmatmul.mubr.bf16.gmra.mxu0 %v3212
  %v3604 = vpop.f32.mrf.mxu0
  %v3605 = vadd.f32 %v3549, %v3604
  %v3606 = vpop.f32.mrf.mxu0
  %v3607 = vpop.f32.mrf.mxu0
  %v3608 = vadd.f32 %v3552, %v3607
  %v3609 = vpop.f32.mrf.mxu0
  %3610 = vmatprep.mubr.bf16.mxu0 %v3272
  %3611 = vmatmul.mubr.bf16.gmra.mxu0 %v3213
  %v3612 = vpop.f32.mrf.mxu0
  %v3613 = vadd.f32 %v3557, %v3612
  %v3614 = vpop.f32.mrf.mxu0
  %v3615 = vpop.f32.mrf.mxu0
  %v3616 = vpop.f32.mrf.mxu0
  %3617 = vdwg.mxu0
  %3618 = vmatprep.subr.bf16.mxu0 0
  %3619 = vmatpush1.bf16.msra.mxu0 %v2532
  %3620 = vmatprep.subr.bf16.mxu0 0
  %3621 = vmatpush1.bf16.msra.mxu0 %v2531
  %3622 = vmatprep.subr.bf16.mxu0 0
  %3623 = vmatpush1.bf16.msra.mxu0 %v2530
  %3624 = vmatprep.subr.bf16.mxu0 0
  %3625 = vmatpush1.bf16.msra.mxu0 %v2529
  %3626 = vmatprep.subr.bf16.mxu0 0
  %3627 = vmatpush1.bf16.msra.mxu0 %v2528
  %3628 = vmatprep.subr.bf16.mxu0 0
  %3629 = vmatpush1.bf16.msra.mxu0 %v2527
  %3630 = vmatprep.subr.bf16.mxu0 0
  %3631 = vmatpush1.bf16.msra.mxu0 %v2526
  %3632 = vmatprep.subr.bf16.mxu0 0
  %3633 = vmatpush1.bf16.msra.mxu0 %v2525
  %3634 = vmatprep.subr.bf16.mxu0 0
  %3635 = vmatpush2.bf16.msra.mxu0 %v2540
  %3636 = vmatprep.subr.bf16.mxu0 0
  %3637 = vmatpush2.bf16.msra.mxu0 %v2539
  %3638 = vmatprep.subr.bf16.mxu0 0
  %3639 = vmatpush2.bf16.msra.mxu0 %v2538
  %3640 = vmatprep.subr.bf16.mxu0 0
  %3641 = vmatpush2.bf16.msra.mxu0 %v2537
  %3642 = vmatprep.subr.bf16.mxu0 0
  %3643 = vmatpush2.bf16.msra.mxu0 %v2536
  %3644 = vmatprep.subr.bf16.mxu0 0
  %3645 = vmatpush2.bf16.msra.mxu0 %v2535
  %3646 = vmatprep.subr.bf16.mxu0 0
  %3647 = vmatpush2.bf16.msra.mxu0 %v2534
  %3648 = vmatprep.subr.bf16.mxu0 0
  %3649 = vmatpush2.bf16.msra.mxu0 %v2533
  %3650 = vmatprep.mubr.bf16.mxu0 %v3388
  %3651 = vmatmul.mubr.bf16.gmra.mxu0 %v3329
  %v3652 = vpop.f32.mrf.mxu0
  %v3653 = vadd.f32 %v3597, %v3652
  %v3654 = vpop.f32.mrf.mxu0
  %v3655 = vpop.f32.mrf.mxu0
  %v3656 = vadd.f32 %v3600, %v3655
  %v3657 = vpop.f32.mrf.mxu0
  %3658 = vmatprep.mubr.bf16.mxu0 %v3389
  %3659 = vmatmul.mubr.bf16.gmra.mxu0 %v3330
  %v3660 = vpop.f32.mrf.mxu0
  %v3661 = vadd.f32 %v3605, %v3660
  %v3662 = vpop.f32.mrf.mxu0
  %v3663 = vpop.f32.mrf.mxu0
  %v3664 = vadd.f32 %v3608, %v3663
  %v3665 = vpop.f32.mrf.mxu0
  %3666 = vmatprep.mubr.bf16.mxu0 %v3390
  %3667 = vmatmul.mubr.bf16.gmra.mxu0 %v3331
  %v3668 = vpop.f32.mrf.mxu0
  %v3669 = vadd.f32 %v3613, %v3668
  %v3670 = vpop.f32.mrf.mxu0
  %v3671 = vpop.f32.mrf.mxu0
  %v3672 = vpop.f32.mrf.mxu0
  %3673 = vdwg.mxu0
  %3674 = vmatprep.subr.bf16.mxu0 0
  %3675 = vmatpush1.bf16.msra.mxu0 %v2548
  %3676 = vmatprep.subr.bf16.mxu0 0
  %3677 = vmatpush1.bf16.msra.mxu0 %v2547
  %3678 = vmatprep.subr.bf16.mxu0 0
  %3679 = vmatpush1.bf16.msra.mxu0 %v2546
  %3680 = vmatprep.subr.bf16.mxu0 0
  %3681 = vmatpush1.bf16.msra.mxu0 %v2545
  %3682 = vmatprep.subr.bf16.mxu0 0
  %3683 = vmatpush1.bf16.msra.mxu0 %v2544
  %3684 = vmatprep.subr.bf16.mxu0 0
  %3685 = vmatpush1.bf16.msra.mxu0 %v2543
  %3686 = vmatprep.subr.bf16.mxu0 0
  %3687 = vmatpush1.bf16.msra.mxu0 %v2542
  %3688 = vmatprep.subr.bf16.mxu0 0
  %3689 = vmatpush1.bf16.msra.mxu0 %v2541
  %3690 = vmatprep.subr.bf16.mxu0 0
  %3691 = vmatpush2.bf16.msra.mxu0 0
  %3692 = vmatprep.subr.bf16.mxu0 0
  %3693 = vmatpush2.bf16.msra.mxu0 0
  %3694 = vmatprep.subr.bf16.mxu0 0
  %3695 = vmatpush2.bf16.msra.mxu0 0
  %3696 = vmatprep.subr.bf16.mxu0 0
  %3697 = vmatpush2.bf16.msra.mxu0 0
  %3698 = vmatprep.subr.bf16.mxu0 0
  %3699 = vmatpush2.bf16.msra.mxu0 0
  %3700 = vmatprep.subr.bf16.mxu0 0
  %3701 = vmatpush2.bf16.msra.mxu0 0
  %3702 = vmatprep.subr.bf16.mxu0 0
  %3703 = vmatpush2.bf16.msra.mxu0 0
  %3704 = vmatprep.subr.bf16.mxu0 0
  %3705 = vmatpush2.bf16.msra.mxu0 0
  %3706 = vmatprep.mubr.bf16.mxu0 0
  %3707 = vmatmul.mubr.bf16.gmra.mxu0 %v3447
  %v3708 = vpop.f32.mrf.mxu0
  %v3709 = vadd.f32 %v3653, %v3708
  %v3710 = vpop.f32.mrf.mxu0
  %v3711 = vpop.f32.mrf.mxu0
  %v3712 = vadd.f32 %v3656, %v3711
  %v3713 = vpop.f32.mrf.mxu0
  %3714 = vmatprep.mubr.bf16.mxu0 0
  %3715 = vmatmul.mubr.bf16.gmra.mxu0 %v3448
  %v3716 = vpop.f32.mrf.mxu0
  %v3717 = vadd.f32 %v3661, %v3716
  %v3718 = vpop.f32.mrf.mxu0
  %v3719 = vpop.f32.mrf.mxu0
  %v3720 = vadd.f32 %v3664, %v3719
  %v3721 = vpop.f32.mrf.mxu0
  %3722 = vmatprep.mubr.bf16.mxu0 0
  %3723 = vmatmul.mubr.bf16.gmra.mxu0 %v3449
  %v3724 = vpop.f32.mrf.mxu0
  %v3725 = vadd.f32 %v3669, %v3724
  %v3726 = vpop.f32.mrf.mxu0
  %v3727 = vpop.f32.mrf.mxu0
  %v3728 = vpop.f32.mrf.mxu0
  %3729 = vdwg.mxu0
  %v3730 = vld [vmem:[%s8] sm:$0x1]
  %v3731 = vld [vmem:[%s9] sm:$0x1]
  %v3732 = vmax.f32 %v2880, 0.0
  %v3733 = vmax.f32 %v2883, 0.0
  %v3734 = vmax.f32 %v2888, 0.0
  %v3735 = vmax.f32 %v2891, 0.0
  %v3736 = vmax.f32 %v2896, 0.0
  %v3737 = vmax.f32 %v3709, 0.0
  %v3738 = vmax.f32 %v3712, 0.0
  %v3739 = vmax.f32 %v3717, 0.0
  %v3740 = vmax.f32 %v3720, 0.0
  %v3741 = vmax.f32 %v3725, 0.0
  %v3742 = vadd.f32 %v3732, %v3733
  %v3743 = vadd.f32 %v3742, %v3734
  %v3744 = vadd.f32 %v3743, %v3735
  %vm3745 = vcmask 1043456
  %v3746 = vsel %vm3745, %v3736, 0.0
  %v3747 = vadd.f32 %v3744, %v3746
  %v3748 = vrot.slane %v3747, 4
  %v3749 = vadd.f32 %v3747, %v3748
  %v3750 = vrot.slane %v3749, 2
  %v3751 = vadd.f32 %v3749, %v3750
  %v3752 = vrot.slane %v3751, 1
  %v3753 = vadd.f32 %v3751, %v3752
  %v3754 = vadd.f32 %v3737, %v3738
  %v3755 = vadd.f32 %v3754, %v3739
  %v3756 = vadd.f32 %v3755, %v3740
  %v3757 = vsel %vm3745, %v3741, 0.0
  %v3758 = vadd.f32 %v3756, %v3757
  %v3759 = vrot.slane %v3758, 4
  %v3760 = vadd.f32 %v3758, %v3759
  %v3761 = vrot.slane %v3760, 2
  %v3762 = vadd.f32 %v3760, %v3761
  %v3763 = vrot.slane %v3762, 1
  %v3764 = vadd.f32 %v3762, %v3763
  %v3765 = vadd.f32 %v3753, %v3764
  %v3766 = vmul.f32 %v3765, 0.013888889
  %v3767 = vsub.f32 %v3732, %v3766
  %v3768 = vsub.f32 %v3733, %v3766
  %v3769 = vsub.f32 %v3734, %v3766
  %v3770 = vsub.f32 %v3735, %v3766
  %v3771 = vsub.f32 %v3736, %v3766
  %v3772 = vsub.f32 %v3737, %v3766
  %v3773 = vsub.f32 %v3738, %v3766
  %v3774 = vsub.f32 %v3739, %v3766
  %v3775 = vsub.f32 %v3740, %v3766
  %v3776 = vsub.f32 %v3741, %v3766
  %v3777 = vmul.f32 %v3767, %v3767
  %v3778 = vmul.f32 %v3768, %v3768
  %v3779 = vmul.f32 %v3769, %v3769
  %v3780 = vmul.f32 %v3770, %v3770
  %v3781 = vmul.f32 %v3771, %v3771
  %v3782 = vadd.f32 %v3777, %v3778
  %v3783 = vadd.f32 %v3782, %v3779
  %v3784 = vadd.f32 %v3783, %v3780
  %v3785 = vsel %vm3745, %v3781, 0.0
  %v3786 = vadd.f32 %v3784, %v3785
  %v3787 = vrot.slane %v3786, 4
  %v3788 = vadd.f32 %v3786, %v3787
  %v3789 = vrot.slane %v3788, 2
  %v3790 = vadd.f32 %v3788, %v3789
  %v3791 = vrot.slane %v3790, 1
  %v3792 = vadd.f32 %v3790, %v3791
  %v3793 = vmul.f32 %v3772, %v3772
  %v3794 = vmul.f32 %v3773, %v3773
  %v3795 = vmul.f32 %v3774, %v3774
  %v3796 = vmul.f32 %v3775, %v3775
  %v3797 = vmul.f32 %v3776, %v3776
  %v3798 = vadd.f32 %v3793, %v3794
  %v3799 = vadd.f32 %v3798, %v3795
  %v3800 = vadd.f32 %v3799, %v3796
  %v3801 = vsel %vm3745, %v3797, 0.0
  %v3802 = vadd.f32 %v3800, %v3801
  %v3803 = vrot.slane %v3802, 4
  %v3804 = vadd.f32 %v3802, %v3803
  %v3805 = vrot.slane %v3804, 2
  %v3806 = vadd.f32 %v3804, %v3805
  %v3807 = vrot.slane %v3806, 1
  %v3808 = vadd.f32 %v3806, %v3807
  %v3809 = vadd.f32 %v3792, %v3808
  %v3810 = vmul.f32 %v3809, 0.013888889
  %v3811 = vadd.f32 %v3810, 1e-05
  %v3812 = vrsqrt.pop %v3811
  %v3813 = vmul.f32 %v3812, %v3730
  %v3814 = vlaneseq
  %v3815 = vshrl.u32 %v3814, 7
  %v3816 = vsub.s32 0, %v3815
  %v3817 = vrot.slane %v3813, %v3816
  %v3818 = vmul.f32 %v3767, %v3817
  %v3819 = vmul.f32 %v3768, %v3817
  %v3820 = vmul.f32 %v3769, %v3817
  %v3821 = vmul.f32 %v3770, %v3817
  %v3822 = vmul.f32 %v3771, %v3817
  %v3824 = vlaneseq
  %v3825 = vshrl.u32 %v3824, 7
  %v3826 = vsub.s32 0, %v3825
  %v3827 = vrot.slane %v3731, %v3826
  %v3829 = vadd.f32 %v3818, %v3827
  %v3830 = vadd.f32 %v3819, %v3827
  %v3831 = vadd.f32 %v3820, %v3827
  %v3832 = vadd.f32 %v3821, %v3827
  %v3833 = vadd.f32 %v3822, %v3827
  %v3834 = vmul.f32 %v3772, %v3817
  %v3835 = vmul.f32 %v3773, %v3817
  %v3836 = vmul.f32 %v3774, %v3817
  %v3837 = vmul.f32 %v3775, %v3817
  %v3838 = vmul.f32 %v3776, %v3817
  %v3839 = vadd.f32 %v3834, %v3827
  %v3840 = vadd.f32 %v3835, %v3827
  %v3841 = vadd.f32 %v3836, %v3827
  %v3842 = vadd.f32 %v3837, %v3827
  %v3843 = vadd.f32 %v3838, %v3827
  %v3844 = vld [vmem:[%s11] sm:$0xf]
  %v3845 = vld [vmem:[%s11 + $0x4] sm:$0xf]
  %v3846 = vld [vmem:[%s11 + $0x8] sm:$0xf]
  %v3847 = vld [vmem:[%s11 + $0xc] sm:$0xf]
  %v3848 = vld [vmem:[%s11 + $0x10] sm:$0xf]
  %v3849 = vld [vmem:[%s11 + $0x14] sm:$0xf]
  %v3850 = vld [vmem:[%s11 + $0x18] sm:$0xf]
  %v3851 = vld [vmem:[%s11 + $0x1c] sm:$0xf]
  %v3852 = vld [vmem:[%s11 + $0x20] sm:$0xf]
  %v3853 = vld [vmem:[%s11 + $0x24] sm:$0xf]
  %v3854 = vld [vmem:[%s11 + $0x28] sm:$0xf]
  %v3855 = vld [vmem:[%s11 + $0x2c] sm:$0xf]
  %v3856 = vld [vmem:[%s11 + $0x30] sm:$0xf]
  %v3857 = vld [vmem:[%s11 + $0x34] sm:$0xf]
  %v3858 = vld [vmem:[%s11 + $0x38] sm:$0xf]
  %v3859 = vld [vmem:[%s11 + $0x3c] sm:$0xf]
  %v3860 = vld [vmem:[%s11 + $0x40] sm:$0xf]
  %v3861 = vld [vmem:[%s11 + $0x44] sm:$0xf]
  %v3862 = vld [vmem:[%s11 + $0x48] sm:$0xf]
  %v3863 = vld [vmem:[%s11 + $0x4c] sm:$0xf]
  %v3864 = vld [vmem:[%s11 + $0x50] sm:$0xf]
  %v3865 = vld [vmem:[%s11 + $0x54] sm:$0xf]
  %v3866 = vld [vmem:[%s11 + $0x58] sm:$0xf]
  %v3867 = vld [vmem:[%s11 + $0x5c] sm:$0xf]
  %v3868 = vld [vmem:[%s11 + $0x60] sm:$0xf]
  %v3869 = vld [vmem:[%s11 + $0x64] sm:$0xf]
  %v3870 = vld [vmem:[%s11 + $0x68] sm:$0xf]
  %v3871 = vld [vmem:[%s11 + $0x6c] sm:$0xf]
  %v3872 = vld [vmem:[%s11 + $0x70] sm:$0xf]
  %v3873 = vld [vmem:[%s11 + $0x74] sm:$0xf]
  %v3874 = vld [vmem:[%s11 + $0x78] sm:$0xf]
  %v3875 = vld [vmem:[%s11 + $0x7c] sm:$0xf]
  %v3876 = vld [vmem:[%s11 + $0x80] sm:$0xf]
  %v3877 = vld [vmem:[%s11 + $0x84] sm:$0xf]
  %v3878 = vld [vmem:[%s11 + $0x88] sm:$0xf]
  %v3879 = vld [vmem:[%s11 + $0x8c] sm:$0xf]
  %v3880 = vld [vmem:[%s11 + $0x90] sm:$0xf]
  %v3881 = vld [vmem:[%s11 + $0x94] sm:$0xf]
  %v3882 = vld [vmem:[%s11 + $0x98] sm:$0xf]
  %v3883 = vld [vmem:[%s11 + $0x9c] sm:$0xf]
  %v3884 = vld [vmem:[%s11 + $0xa0] sm:$0xf]
  %v3885 = vld [vmem:[%s11 + $0xa4] sm:$0xf]
  %v3886 = vld [vmem:[%s11 + $0xa8] sm:$0xf]
  %v3887 = vld [vmem:[%s11 + $0xac] sm:$0xf]
  %v3888 = vld [vmem:[%s11 + $0xb0] sm:$0xf]
  %v3889 = vld [vmem:[%s11 + $0xb4] sm:$0xf]
  %v3890 = vld [vmem:[%s11 + $0xb8] sm:$0xf]
  %v3891 = vld [vmem:[%s11 + $0xbc] sm:$0xf]
  %v3892 = vld [vmem:[%s11 + $0xc0] sm:$0xf]
  %v3893 = vld [vmem:[%s11 + $0xc4] sm:$0xf]
  %v3894 = vld [vmem:[%s11 + $0xc8] sm:$0xf]
  %v3895 = vld [vmem:[%s11 + $0xcc] sm:$0xf]
  %v3896 = vld [vmem:[%s11 + $0xd0] sm:$0xf]
  %v3897 = vld [vmem:[%s11 + $0xd4] sm:$0xf]
  %v3898 = vld [vmem:[%s11 + $0xd8] sm:$0xf]
  %v3899 = vld [vmem:[%s11 + $0xdc] sm:$0xf]
  %v3900 = vld [vmem:[%s11 + $0xe0] sm:$0xf]
  %v3901 = vld [vmem:[%s11 + $0xe4] sm:$0xf]
  %v3902 = vld [vmem:[%s11 + $0xe8] sm:$0xf]
  %v3903 = vld [vmem:[%s11 + $0xec] sm:$0xf]
  %v3904 = vld [vmem:[%s11 + $0xf0] sm:$0xf]
  %v3905 = vld [vmem:[%s11 + $0xf4] sm:$0xf]
  %v3906 = vld [vmem:[%s11 + $0xf8] sm:$0xf]
  %v3907 = vld [vmem:[%s11 + $0xfc] sm:$0xf]
  %v3908 = vld [vmem:[%s11 + $0x100] sm:$0xf]
  %v3909 = vld [vmem:[%s11 + $0x104] sm:$0xf]
  %v3910 = vld [vmem:[%s11 + $0x108] sm:$0xf]
  %v3911 = vld [vmem:[%s11 + $0x10c] sm:$0xf]
  %v3912 = vld [vmem:[%s11 + $0x110] sm:$0xf]
  %v3913 = vld [vmem:[%s11 + $0x114] sm:$0xf]
  %v3914 = vld [vmem:[%s11 + $0x118] sm:$0xf]
  %v3915 = vld [vmem:[%s11 + $0x11c] sm:$0xf]
  %v3916 = vld [vmem:[%s11 + $0x120] sm:$0xf]
  %v3917 = vld [vmem:[%s11 + $0x124] sm:$0xf]
  %v3918 = vld [vmem:[%s11 + $0x128] sm:$0xf]
  %v3919 = vld [vmem:[%s11 + $0x12c] sm:$0xf]
  %v3920 = vld [vmem:[%s11 + $0x130] sm:$0xf]
  %v3921 = vld [vmem:[%s11 + $0x134] sm:$0xf]
  %v3922 = vld [vmem:[%s11 + $0x138] sm:$0xf]
  %v3923 = vld [vmem:[%s11 + $0x13c] sm:$0xf]
  %v3924 = vld [vmem:[%s11 + $0x140] sm:$0xf]
  %v3925 = vld [vmem:[%s11 + $0x144] sm:$0xf]
  %v3926 = vld [vmem:[%s11 + $0x148] sm:$0xf]
  %v3927 = vld [vmem:[%s11 + $0x14c] sm:$0xf]
  %v3928 = vld [vmem:[%s11 + $0x150] sm:$0xf]
  %v3929 = vld [vmem:[%s11 + $0x154] sm:$0xf]
  %v3930 = vld [vmem:[%s11 + $0x158] sm:$0xf]
  %v3931 = vld [vmem:[%s11 + $0x15c] sm:$0xf]
  %v3932 = vld [vmem:[%s11 + $0x160] sm:$0xf]
  %v3933 = vld [vmem:[%s11 + $0x164] sm:$0xf]
  %v3934 = vld [vmem:[%s11 + $0x168] sm:$0xf]
  %v3935 = vld [vmem:[%s11 + $0x16c] sm:$0xf]
  %v3936 = vld [vmem:[%s11 + $0x170] sm:$0xf]
  %v3937 = vld [vmem:[%s11 + $0x174] sm:$0xf]
  %v3938 = vld [vmem:[%s11 + $0x178] sm:$0xf]
  %v3939 = vld [vmem:[%s11 + $0x17c] sm:$0xf]
  %v3940 = vld [vmem:[%s11 + $0x180] sm:$0xf]
  %v3941 = vld [vmem:[%s11 + $0x184] sm:$0xf]
  %v3942 = vld [vmem:[%s11 + $0x188] sm:$0xf]
  %v3943 = vld [vmem:[%s11 + $0x18c] sm:$0xf]
  %v3944 = vld [vmem:[%s11 + $0x190] sm:$0xf]
  %v3945 = vld [vmem:[%s11 + $0x194] sm:$0xf]
  %v3946 = vld [vmem:[%s11 + $0x198] sm:$0xf]
  %v3947 = vld [vmem:[%s11 + $0x19c] sm:$0xf]
  %v3948 = vld [vmem:[%s11 + $0x1a0] sm:$0xf]
  %v3949 = vld [vmem:[%s11 + $0x1a4] sm:$0xf]
  %v3950 = vld [vmem:[%s11 + $0x1a8] sm:$0xf]
  %v3951 = vld [vmem:[%s11 + $0x1ac] sm:$0xf]
  %v3952 = vld [vmem:[%s11 + $0x1b0] sm:$0xf]
  %v3953 = vld [vmem:[%s11 + $0x1b4] sm:$0xf]
  %v3954 = vld [vmem:[%s11 + $0x1b8] sm:$0xf]
  %v3955 = vld [vmem:[%s11 + $0x1bc] sm:$0xf]
  %v3956 = vld [vmem:[%s11 + $0x1c0] sm:$0xf]
  %v3957 = vld [vmem:[%s11 + $0x1c4] sm:$0xf]
  %v3958 = vld [vmem:[%s11 + $0x1c8] sm:$0xf]
  %v3959 = vld [vmem:[%s11 + $0x1cc] sm:$0xf]
  %v3960 = vld [vmem:[%s11 + $0x1d0] sm:$0xf]
  %v3961 = vld [vmem:[%s11 + $0x1d4] sm:$0xf]
  %v3962 = vld [vmem:[%s11 + $0x1d8] sm:$0xf]
  %v3963 = vld [vmem:[%s11 + $0x1dc] sm:$0xf]
  %v3964 = vld [vmem:[%s11 + $0x1e0] sm:$0xf]
  %v3965 = vld [vmem:[%s11 + $0x1e4] sm:$0xf]
  %v3966 = vld [vmem:[%s11 + $0x1e8] sm:$0xf]
  %v3967 = vld [vmem:[%s11 + $0x1ec] sm:$0xf]
  %v3968 = vld [vmem:[%s11 + $0x1f0] sm:$0xf]
  %v3969 = vld [vmem:[%s11 + $0x1f4] sm:$0xf]
  %v3970 = vld [vmem:[%s11 + $0x1f8] sm:$0xf]
  %v3971 = vld [vmem:[%s11 + $0x1fc] sm:$0xf]
  %v3972 = vld [vmem:[%s11 + $0x200] sm:$0xf]
  %v3973 = vld [vmem:[%s11 + $0x204] sm:$0xf]
  %v3974 = vld [vmem:[%s11 + $0x208] sm:$0xf]
  %v3975 = vld [vmem:[%s11 + $0x20c] sm:$0xf]
  %v3976 = vld [vmem:[%s11 + $0x210] sm:$0xf]
  %v3977 = vld [vmem:[%s11 + $0x214] sm:$0xf]
  %v3978 = vld [vmem:[%s11 + $0x218] sm:$0xf]
  %v3979 = vld [vmem:[%s11 + $0x21c] sm:$0xf]
  %v3980 = vld [vmem:[%s11 + $0x220] sm:$0xf]
  %v3981 = vld [vmem:[%s11 + $0x224] sm:$0xf]
  %v3982 = vld [vmem:[%s11 + $0x228] sm:$0xf]
  %v3983 = vld [vmem:[%s11 + $0x22c] sm:$0xf]
  %v3984 = vld [vmem:[%s11 + $0x230] sm:$0xf]
  %v3985 = vld [vmem:[%s11 + $0x234] sm:$0xf]
  %v3986 = vld [vmem:[%s11 + $0x238] sm:$0xf]
  %v3987 = vld [vmem:[%s11 + $0x23c] sm:$0xf]
  %v3988 = vld [vmem:[%s12] sm:$0x1]
  %v3989 = vpack.c.bf16 %v3830, %v3829
  %v3990 = vpack.c.bf16 %v3832, %v3831
  %v3991 = vpack.c.bf16 %v3833, %v3833
  %v3992 = vld [vmem:[%s10] sm:$0x3]
  %vm3993 = vcmask 293888
  %v3995 = vsel %vm3993, %v3992, 0
  %vm3997 = vcmask 1041408
  %v3999 = vsel %vm3997, %v3991, 0
  %4001 = vmatprep.subr.bf16.mxu0 0
  %4002 = vmatpush1.bf16.msra.mxu0 0
  %4003 = vmatprep.subr.bf16.mxu0 0
  %4004 = vmatpush1.bf16.msra.mxu0 0
  %4005 = vmatprep.subr.bf16.mxu0 0
  %4006 = vmatpush1.bf16.msra.mxu0 0
  %4007 = vmatprep.subr.bf16.mxu0 0
  %4008 = vmatpush1.bf16.msra.mxu0 0
  %4009 = vmatprep.subr.bf16.mxu0 0
  %4010 = vmatpush1.bf16.msra.mxu0 0
  %4011 = vmatprep.subr.bf16.mxu0 0
  %4012 = vmatpush1.bf16.msra.mxu0 %v3999
  %4013 = vmatprep.subr.bf16.mxu0 0
  %4014 = vmatpush1.bf16.msra.mxu0 %v3990
  %4015 = vmatprep.subr.bf16.mxu0 0
  %4016 = vmatpush1.bf16.msra.mxu0 %v3989
  %4017 = vmatprep.subr.bf16.mxu0 0
  %4018 = vmatpush2.bf16.msra.mxu0 0
  %4019 = vmatprep.subr.bf16.mxu0 0
  %4020 = vmatpush2.bf16.msra.mxu0 0
  %4021 = vmatprep.subr.bf16.mxu0 0
  %4022 = vmatpush2.bf16.msra.mxu0 0
  %4023 = vmatprep.subr.bf16.mxu0 0
  %4024 = vmatpush2.bf16.msra.mxu0 0
  %4025 = vmatprep.subr.bf16.mxu0 0
  %4026 = vmatpush2.bf16.msra.mxu0 0
  %4027 = vmatprep.subr.bf16.mxu0 0
  %4028 = vmatpush2.bf16.msra.mxu0 0
  %4029 = vmatprep.subr.bf16.mxu0 0
  %4030 = vmatpush2.bf16.msra.mxu0 0
  %4031 = vmatprep.subr.bf16.mxu0 0
  %4032 = vmatpush2.bf16.msra.mxu0 0
  %4033 = vmatprep.mubr.bf16.mxu0 0
  %4034 = vmatmul.mubr.bf16.gmra.mxu0 %v3995
  %v4035 = vpop.f32.mrf.mxu0
  %v4036 = vadd.f32 0.0, %v4035
  %v4037 = vpop.f32.mrf.mxu0
  %v4038 = vpop.f32.mrf.mxu0
  %v4039 = vpop.f32.mrf.mxu0
  %4040 = vdwg.mxu0
  %v4041 = vpack.c.bf16 %v4036, %v4036
  %s4042 = scalar_lea.vmem %s10, 2
  %v4043 = vld [vmem:[%s4042] sm:$0x3]
  %v4045 = vsel %vm3993, %v4043, 0
  %4047 = vmatprep.subr.bf16.mxu0 0
  %4048 = vmatpush1.bf16.msra.mxu0 0
  %4049 = vmatprep.subr.bf16.mxu0 0
  %4050 = vmatpush1.bf16.msra.mxu0 0
  %4051 = vmatprep.subr.bf16.mxu0 0
  %4052 = vmatpush1.bf16.msra.mxu0 0
  %4053 = vmatprep.subr.bf16.mxu0 0
  %4054 = vmatpush1.bf16.msra.mxu0 0
  %4055 = vmatprep.subr.bf16.mxu0 0
  %4056 = vmatpush1.bf16.msra.mxu0 0
  %4057 = vmatprep.subr.bf16.mxu0 0
  %4058 = vmatpush1.bf16.msra.mxu0 %v3999
  %4059 = vmatprep.subr.bf16.mxu0 0
  %4060 = vmatpush1.bf16.msra.mxu0 %v3990
  %4061 = vmatprep.subr.bf16.mxu0 0
  %4062 = vmatpush1.bf16.msra.mxu0 %v3989
  %4063 = vmatprep.subr.bf16.mxu0 0
  %4064 = vmatpush2.bf16.msra.mxu0 0
  %4065 = vmatprep.subr.bf16.mxu0 0
  %4066 = vmatpush2.bf16.msra.mxu0 0
  %4067 = vmatprep.subr.bf16.mxu0 0
  %4068 = vmatpush2.bf16.msra.mxu0 0
  %4069 = vmatprep.subr.bf16.mxu0 0
  %4070 = vmatpush2.bf16.msra.mxu0 0
  %4071 = vmatprep.subr.bf16.mxu0 0
  %4072 = vmatpush2.bf16.msra.mxu0 0
  %4073 = vmatprep.subr.bf16.mxu0 0
  %4074 = vmatpush2.bf16.msra.mxu0 0
  %4075 = vmatprep.subr.bf16.mxu0 0
  %4076 = vmatpush2.bf16.msra.mxu0 0
  %4077 = vmatprep.subr.bf16.mxu0 0
  %4078 = vmatpush2.bf16.msra.mxu0 0
  %4079 = vmatprep.mubr.bf16.mxu0 0
  %4080 = vmatmul.mubr.bf16.gmra.mxu0 %v4045
  %v4081 = vpop.f32.mrf.mxu0
  %v4082 = vadd.f32 0.0, %v4081
  %v4083 = vpop.f32.mrf.mxu0
  %v4084 = vpop.f32.mrf.mxu0
  %v4085 = vpop.f32.mrf.mxu0
  %4086 = vdwg.mxu0
  %v4087 = vpack.c.bf16 %v4082, %v4082
  %s4088 = scalar_lea.vmem %s10, 4
  %v4089 = vld [vmem:[%s4088] sm:$0x3]
  %v4091 = vsel %vm3993, %v4089, 0
  %4093 = vmatprep.subr.bf16.mxu0 0
  %4094 = vmatpush1.bf16.msra.mxu0 0
  %4095 = vmatprep.subr.bf16.mxu0 0
  %4096 = vmatpush1.bf16.msra.mxu0 0
  %4097 = vmatprep.subr.bf16.mxu0 0
  %4098 = vmatpush1.bf16.msra.mxu0 0
  %4099 = vmatprep.subr.bf16.mxu0 0
  %4100 = vmatpush1.bf16.msra.mxu0 0
  %4101 = vmatprep.subr.bf16.mxu0 0
  %4102 = vmatpush1.bf16.msra.mxu0 0
  %4103 = vmatprep.subr.bf16.mxu0 0
  %4104 = vmatpush1.bf16.msra.mxu0 %v3999
  %4105 = vmatprep.subr.bf16.mxu0 0
  %4106 = vmatpush1.bf16.msra.mxu0 %v3990
  %4107 = vmatprep.subr.bf16.mxu0 0
  %4108 = vmatpush1.bf16.msra.mxu0 %v3989
  %4109 = vmatprep.subr.bf16.mxu0 0
  %4110 = vmatpush2.bf16.msra.mxu0 0
  %4111 = vmatprep.subr.bf16.mxu0 0
  %4112 = vmatpush2.bf16.msra.mxu0 0
  %4113 = vmatprep.subr.bf16.mxu0 0
  %4114 = vmatpush2.bf16.msra.mxu0 0
  %4115 = vmatprep.subr.bf16.mxu0 0
  %4116 = vmatpush2.bf16.msra.mxu0 0
  %4117 = vmatprep.subr.bf16.mxu0 0
  %4118 = vmatpush2.bf16.msra.mxu0 0
  %4119 = vmatprep.subr.bf16.mxu0 0
  %4120 = vmatpush2.bf16.msra.mxu0 0
  %4121 = vmatprep.subr.bf16.mxu0 0
  %4122 = vmatpush2.bf16.msra.mxu0 0
  %4123 = vmatprep.subr.bf16.mxu0 0
  %4124 = vmatpush2.bf16.msra.mxu0 0
  %4125 = vmatprep.mubr.bf16.mxu0 0
  %4126 = vmatmul.mubr.bf16.gmra.mxu0 %v4091
  %v4127 = vpop.f32.mrf.mxu0
  %v4128 = vadd.f32 0.0, %v4127
  %v4129 = vpop.f32.mrf.mxu0
  %v4130 = vpop.f32.mrf.mxu0
  %v4131 = vpop.f32.mrf.mxu0
  %4132 = vdwg.mxu0
  %v4133 = vpack.c.bf16 %v4128, %v4128
  %s4134 = scalar_lea.vmem %s10, 6
  %v4135 = vld [vmem:[%s4134] sm:$0x3]
  %v4137 = vsel %vm3993, %v4135, 0
  %4139 = vmatprep.subr.bf16.mxu0 0
  %4140 = vmatpush1.bf16.msra.mxu0 0
  %4141 = vmatprep.subr.bf16.mxu0 0
  %4142 = vmatpush1.bf16.msra.mxu0 0
  %4143 = vmatprep.subr.bf16.mxu0 0
  %4144 = vmatpush1.bf16.msra.mxu0 0
  %4145 = vmatprep.subr.bf16.mxu0 0
  %4146 = vmatpush1.bf16.msra.mxu0 0
  %4147 = vmatprep.subr.bf16.mxu0 0
  %4148 = vmatpush1.bf16.msra.mxu0 0
  %4149 = vmatprep.subr.bf16.mxu0 0
  %4150 = vmatpush1.bf16.msra.mxu0 %v3999
  %4151 = vmatprep.subr.bf16.mxu0 0
  %4152 = vmatpush1.bf16.msra.mxu0 %v3990
  %4153 = vmatprep.subr.bf16.mxu0 0
  %4154 = vmatpush1.bf16.msra.mxu0 %v3989
  %4155 = vmatprep.subr.bf16.mxu0 0
  %4156 = vmatpush2.bf16.msra.mxu0 0
  %4157 = vmatprep.subr.bf16.mxu0 0
  %4158 = vmatpush2.bf16.msra.mxu0 0
  %4159 = vmatprep.subr.bf16.mxu0 0
  %4160 = vmatpush2.bf16.msra.mxu0 0
  %4161 = vmatprep.subr.bf16.mxu0 0
  %4162 = vmatpush2.bf16.msra.mxu0 0
  %4163 = vmatprep.subr.bf16.mxu0 0
  %4164 = vmatpush2.bf16.msra.mxu0 0
  %4165 = vmatprep.subr.bf16.mxu0 0
  %4166 = vmatpush2.bf16.msra.mxu0 0
  %4167 = vmatprep.subr.bf16.mxu0 0
  %4168 = vmatpush2.bf16.msra.mxu0 0
  %4169 = vmatprep.subr.bf16.mxu0 0
  %4170 = vmatpush2.bf16.msra.mxu0 0
  %4171 = vmatprep.mubr.bf16.mxu0 0
  %4172 = vmatmul.mubr.bf16.gmra.mxu0 %v4137
  %v4173 = vpop.f32.mrf.mxu0
  %v4174 = vadd.f32 0.0, %v4173
  %v4175 = vpop.f32.mrf.mxu0
  %v4176 = vpop.f32.mrf.mxu0
  %v4177 = vpop.f32.mrf.mxu0
  %4178 = vdwg.mxu0
  %v4179 = vpack.c.bf16 %v4174, %v4174
  %s4180 = scalar_lea.vmem %s10, 8
  %v4181 = vld [vmem:[%s4180] sm:$0x3]
  %v4183 = vsel %vm3993, %v4181, 0
  %4185 = vmatprep.subr.bf16.mxu0 0
  %4186 = vmatpush1.bf16.msra.mxu0 0
  %4187 = vmatprep.subr.bf16.mxu0 0
  %4188 = vmatpush1.bf16.msra.mxu0 0
  %4189 = vmatprep.subr.bf16.mxu0 0
  %4190 = vmatpush1.bf16.msra.mxu0 0
  %4191 = vmatprep.subr.bf16.mxu0 0
  %4192 = vmatpush1.bf16.msra.mxu0 0
  %4193 = vmatprep.subr.bf16.mxu0 0
  %4194 = vmatpush1.bf16.msra.mxu0 0
  %4195 = vmatprep.subr.bf16.mxu0 0
  %4196 = vmatpush1.bf16.msra.mxu0 %v3999
  %4197 = vmatprep.subr.bf16.mxu0 0
  %4198 = vmatpush1.bf16.msra.mxu0 %v3990
  %4199 = vmatprep.subr.bf16.mxu0 0
  %4200 = vmatpush1.bf16.msra.mxu0 %v3989
  %4201 = vmatprep.subr.bf16.mxu0 0
  %4202 = vmatpush2.bf16.msra.mxu0 0
  %4203 = vmatprep.subr.bf16.mxu0 0
  %4204 = vmatpush2.bf16.msra.mxu0 0
  %4205 = vmatprep.subr.bf16.mxu0 0
  %4206 = vmatpush2.bf16.msra.mxu0 0
  %4207 = vmatprep.subr.bf16.mxu0 0
  %4208 = vmatpush2.bf16.msra.mxu0 0
  %4209 = vmatprep.subr.bf16.mxu0 0
  %4210 = vmatpush2.bf16.msra.mxu0 0
  %4211 = vmatprep.subr.bf16.mxu0 0
  %4212 = vmatpush2.bf16.msra.mxu0 0
  %4213 = vmatprep.subr.bf16.mxu0 0
  %4214 = vmatpush2.bf16.msra.mxu0 0
  %4215 = vmatprep.subr.bf16.mxu0 0
  %4216 = vmatpush2.bf16.msra.mxu0 0
  %4217 = vmatprep.mubr.bf16.mxu0 0
  %4218 = vmatmul.mubr.bf16.gmra.mxu0 %v4183
  %v4219 = vpop.f32.mrf.mxu0
  %v4220 = vadd.f32 0.0, %v4219
  %v4221 = vpop.f32.mrf.mxu0
  %v4222 = vpop.f32.mrf.mxu0
  %v4223 = vpop.f32.mrf.mxu0
  %4224 = vdwg.mxu0
  %v4225 = vpack.c.bf16 %v4220, %v4220
  %s4226 = scalar_lea.vmem %s10, 10
  %v4227 = vld [vmem:[%s4226] sm:$0x3]
  %v4229 = vsel %vm3993, %v4227, 0
  %4231 = vmatprep.subr.bf16.mxu0 0
  %4232 = vmatpush1.bf16.msra.mxu0 0
  %4233 = vmatprep.subr.bf16.mxu0 0
  %4234 = vmatpush1.bf16.msra.mxu0 0
  %4235 = vmatprep.subr.bf16.mxu0 0
  %4236 = vmatpush1.bf16.msra.mxu0 0
  %4237 = vmatprep.subr.bf16.mxu0 0
  %4238 = vmatpush1.bf16.msra.mxu0 0
  %4239 = vmatprep.subr.bf16.mxu0 0
  %4240 = vmatpush1.bf16.msra.mxu0 0
  %4241 = vmatprep.subr.bf16.mxu0 0
  %4242 = vmatpush1.bf16.msra.mxu0 %v3999
  %4243 = vmatprep.subr.bf16.mxu0 0
  %4244 = vmatpush1.bf16.msra.mxu0 %v3990
  %4245 = vmatprep.subr.bf16.mxu0 0
  %4246 = vmatpush1.bf16.msra.mxu0 %v3989
  %4247 = vmatprep.subr.bf16.mxu0 0
  %4248 = vmatpush2.bf16.msra.mxu0 0
  %4249 = vmatprep.subr.bf16.mxu0 0
  %4250 = vmatpush2.bf16.msra.mxu0 0
  %4251 = vmatprep.subr.bf16.mxu0 0
  %4252 = vmatpush2.bf16.msra.mxu0 0
  %4253 = vmatprep.subr.bf16.mxu0 0
  %4254 = vmatpush2.bf16.msra.mxu0 0
  %4255 = vmatprep.subr.bf16.mxu0 0
  %4256 = vmatpush2.bf16.msra.mxu0 0
  %4257 = vmatprep.subr.bf16.mxu0 0
  %4258 = vmatpush2.bf16.msra.mxu0 0
  %4259 = vmatprep.subr.bf16.mxu0 0
  %4260 = vmatpush2.bf16.msra.mxu0 0
  %4261 = vmatprep.subr.bf16.mxu0 0
  %4262 = vmatpush2.bf16.msra.mxu0 0
  %4263 = vmatprep.mubr.bf16.mxu0 0
  %4264 = vmatmul.mubr.bf16.gmra.mxu0 %v4229
  %v4265 = vpop.f32.mrf.mxu0
  %v4266 = vadd.f32 0.0, %v4265
  %v4267 = vpop.f32.mrf.mxu0
  %v4268 = vpop.f32.mrf.mxu0
  %v4269 = vpop.f32.mrf.mxu0
  %4270 = vdwg.mxu0
  %v4271 = vpack.c.bf16 %v4266, %v4266
  %s4272 = scalar_lea.vmem %s10, 12
  %v4273 = vld [vmem:[%s4272] sm:$0x3]
  %v4275 = vsel %vm3993, %v4273, 0
  %4277 = vmatprep.subr.bf16.mxu0 0
  %4278 = vmatpush1.bf16.msra.mxu0 0
  %4279 = vmatprep.subr.bf16.mxu0 0
  %4280 = vmatpush1.bf16.msra.mxu0 0
  %4281 = vmatprep.subr.bf16.mxu0 0
  %4282 = vmatpush1.bf16.msra.mxu0 0
  %4283 = vmatprep.subr.bf16.mxu0 0
  %4284 = vmatpush1.bf16.msra.mxu0 0
  %4285 = vmatprep.subr.bf16.mxu0 0
  %4286 = vmatpush1.bf16.msra.mxu0 0
  %4287 = vmatprep.subr.bf16.mxu0 0
  %4288 = vmatpush1.bf16.msra.mxu0 %v3999
  %4289 = vmatprep.subr.bf16.mxu0 0
  %4290 = vmatpush1.bf16.msra.mxu0 %v3990
  %4291 = vmatprep.subr.bf16.mxu0 0
  %4292 = vmatpush1.bf16.msra.mxu0 %v3989
  %4293 = vmatprep.subr.bf16.mxu0 0
  %4294 = vmatpush2.bf16.msra.mxu0 0
  %4295 = vmatprep.subr.bf16.mxu0 0
  %4296 = vmatpush2.bf16.msra.mxu0 0
  %4297 = vmatprep.subr.bf16.mxu0 0
  %4298 = vmatpush2.bf16.msra.mxu0 0
  %4299 = vmatprep.subr.bf16.mxu0 0
  %4300 = vmatpush2.bf16.msra.mxu0 0
  %4301 = vmatprep.subr.bf16.mxu0 0
  %4302 = vmatpush2.bf16.msra.mxu0 0
  %4303 = vmatprep.subr.bf16.mxu0 0
  %4304 = vmatpush2.bf16.msra.mxu0 0
  %4305 = vmatprep.subr.bf16.mxu0 0
  %4306 = vmatpush2.bf16.msra.mxu0 0
  %4307 = vmatprep.subr.bf16.mxu0 0
  %4308 = vmatpush2.bf16.msra.mxu0 0
  %4309 = vmatprep.mubr.bf16.mxu0 0
  %4310 = vmatmul.mubr.bf16.gmra.mxu0 %v4275
  %v4311 = vpop.f32.mrf.mxu0
  %v4312 = vadd.f32 0.0, %v4311
  %v4313 = vpop.f32.mrf.mxu0
  %v4314 = vpop.f32.mrf.mxu0
  %v4315 = vpop.f32.mrf.mxu0
  %4316 = vdwg.mxu0
  %v4317 = vpack.c.bf16 %v4312, %v4312
  %s4318 = scalar_lea.vmem %s10, 14
  %v4319 = vld [vmem:[%s4318] sm:$0x3]
  %v4321 = vsel %vm3993, %v4319, 0
  %4323 = vmatprep.subr.bf16.mxu0 0
  %4324 = vmatpush1.bf16.msra.mxu0 0
  %4325 = vmatprep.subr.bf16.mxu0 0
  %4326 = vmatpush1.bf16.msra.mxu0 0
  %4327 = vmatprep.subr.bf16.mxu0 0
  %4328 = vmatpush1.bf16.msra.mxu0 0
  %4329 = vmatprep.subr.bf16.mxu0 0
  %4330 = vmatpush1.bf16.msra.mxu0 0
  %4331 = vmatprep.subr.bf16.mxu0 0
  %4332 = vmatpush1.bf16.msra.mxu0 0
  %4333 = vmatprep.subr.bf16.mxu0 0
  %4334 = vmatpush1.bf16.msra.mxu0 %v3999
  %4335 = vmatprep.subr.bf16.mxu0 0
  %4336 = vmatpush1.bf16.msra.mxu0 %v3990
  %4337 = vmatprep.subr.bf16.mxu0 0
  %4338 = vmatpush1.bf16.msra.mxu0 %v3989
  %4339 = vmatprep.subr.bf16.mxu0 0
  %4340 = vmatpush2.bf16.msra.mxu0 0
  %4341 = vmatprep.subr.bf16.mxu0 0
  %4342 = vmatpush2.bf16.msra.mxu0 0
  %4343 = vmatprep.subr.bf16.mxu0 0
  %4344 = vmatpush2.bf16.msra.mxu0 0
  %4345 = vmatprep.subr.bf16.mxu0 0
  %4346 = vmatpush2.bf16.msra.mxu0 0
  %4347 = vmatprep.subr.bf16.mxu0 0
  %4348 = vmatpush2.bf16.msra.mxu0 0
  %4349 = vmatprep.subr.bf16.mxu0 0
  %4350 = vmatpush2.bf16.msra.mxu0 0
  %4351 = vmatprep.subr.bf16.mxu0 0
  %4352 = vmatpush2.bf16.msra.mxu0 0
  %4353 = vmatprep.subr.bf16.mxu0 0
  %4354 = vmatpush2.bf16.msra.mxu0 0
  %4355 = vmatprep.mubr.bf16.mxu0 0
  %4356 = vmatmul.mubr.bf16.gmra.mxu0 %v4321
  %v4357 = vpop.f32.mrf.mxu0
  %v4358 = vadd.f32 0.0, %v4357
  %v4359 = vpop.f32.mrf.mxu0
  %v4360 = vpop.f32.mrf.mxu0
  %v4361 = vpop.f32.mrf.mxu0
  %4362 = vdwg.mxu0
  %v4363 = vpack.c.bf16 %v4358, %v4358
  %s4364 = scalar_lea.vmem %s10, 16
  %v4365 = vld [vmem:[%s4364] sm:$0x3]
  %v4367 = vsel %vm3993, %v4365, 0
  %4369 = vmatprep.subr.bf16.mxu0 0
  %4370 = vmatpush1.bf16.msra.mxu0 0
  %4371 = vmatprep.subr.bf16.mxu0 0
  %4372 = vmatpush1.bf16.msra.mxu0 0
  %4373 = vmatprep.subr.bf16.mxu0 0
  %4374 = vmatpush1.bf16.msra.mxu0 0
  %4375 = vmatprep.subr.bf16.mxu0 0
  %4376 = vmatpush1.bf16.msra.mxu0 0
  %4377 = vmatprep.subr.bf16.mxu0 0
  %4378 = vmatpush1.bf16.msra.mxu0 0
  %4379 = vmatprep.subr.bf16.mxu0 0
  %4380 = vmatpush1.bf16.msra.mxu0 %v3999
  %4381 = vmatprep.subr.bf16.mxu0 0
  %4382 = vmatpush1.bf16.msra.mxu0 %v3990
  %4383 = vmatprep.subr.bf16.mxu0 0
  %4384 = vmatpush1.bf16.msra.mxu0 %v3989
  %4385 = vmatprep.subr.bf16.mxu0 0
  %4386 = vmatpush2.bf16.msra.mxu0 0
  %4387 = vmatprep.subr.bf16.mxu0 0
  %4388 = vmatpush2.bf16.msra.mxu0 0
  %4389 = vmatprep.subr.bf16.mxu0 0
  %4390 = vmatpush2.bf16.msra.mxu0 0
  %4391 = vmatprep.subr.bf16.mxu0 0
  %4392 = vmatpush2.bf16.msra.mxu0 0
  %4393 = vmatprep.subr.bf16.mxu0 0
  %4394 = vmatpush2.bf16.msra.mxu0 0
  %4395 = vmatprep.subr.bf16.mxu0 0
  %4396 = vmatpush2.bf16.msra.mxu0 0
  %4397 = vmatprep.subr.bf16.mxu0 0
  %4398 = vmatpush2.bf16.msra.mxu0 0
  %4399 = vmatprep.subr.bf16.mxu0 0
  %4400 = vmatpush2.bf16.msra.mxu0 0
  %4401 = vmatprep.mubr.bf16.mxu0 0
  %4402 = vmatmul.mubr.bf16.gmra.mxu0 %v4367
  %v4403 = vpop.f32.mrf.mxu0
  %v4404 = vadd.f32 0.0, %v4403
  %v4405 = vpop.f32.mrf.mxu0
  %v4406 = vpop.f32.mrf.mxu0
  %v4407 = vpop.f32.mrf.mxu0
  %4408 = vdwg.mxu0
  %v4409 = vpack.c.bf16 %v4404, %v4404
  %v4411 = vlaneseq
  %v4412 = vshrl.u32 %v4411, 7
  %v4413 = vsub.s32 0, %v4412
  %v4414 = vrot.slane %v3988, %v4413
  %v4560 = vunpack.c.l.b16 %v3844
  %v4561 = vunpack.c.l.b16 %v3845
  %v4562 = vunpack.c.l.b16 %v3846
  %v4563 = vunpack.c.l.b16 %v3847
  %v4564 = vunpack.c.l.b16 %v3848
  %v4565 = vunpack.c.l.b16 %v3849
  %v4566 = vunpack.c.l.b16 %v3850
  %v4567 = vunpack.c.l.b16 %v3851
  %v4568 = vunpack.c.l.b16 %v3852
  %v4569 = vunpack.c.l.b16 %v3853
  %v4570 = vunpack.c.l.b16 %v3854
  %v4571 = vunpack.c.l.b16 %v3855
  %v4572 = vunpack.c.l.b16 %v3856
  %v4573 = vunpack.c.l.b16 %v3857
  %v4574 = vunpack.c.l.b16 %v3858
  %v4575 = vunpack.c.l.b16 %v3859
  %v4576 = vunpack.c.l.b16 %v3860
  %v4577 = vunpack.c.l.b16 %v3861
  %v4578 = vunpack.c.l.b16 %v3862
  %v4579 = vunpack.c.l.b16 %v3863
  %v4580 = vunpack.c.l.b16 %v3864
  %v4581 = vunpack.c.l.b16 %v3865
  %v4582 = vunpack.c.l.b16 %v3866
  %v4583 = vunpack.c.l.b16 %v3867
  %v4584 = vunpack.c.l.b16 %v3868
  %v4585 = vunpack.c.l.b16 %v3869
  %v4586 = vunpack.c.l.b16 %v3870
  %v4587 = vunpack.c.l.b16 %v3871
  %v4588 = vunpack.c.l.b16 %v3872
  %v4589 = vunpack.c.l.b16 %v3873
  %v4590 = vunpack.c.l.b16 %v3874
  %v4591 = vunpack.c.l.b16 %v3875
  %v4592 = vunpack.c.l.b16 %v3876
  %v4593 = vunpack.c.l.b16 %v3877
  %v4594 = vunpack.c.l.b16 %v3878
  %v4595 = vunpack.c.l.b16 %v3879
  %v4596 = vunpack.c.l.b16 %v3880
  %v4597 = vunpack.c.l.b16 %v3881
  %v4598 = vunpack.c.l.b16 %v3882
  %v4599 = vunpack.c.l.b16 %v3883
  %v4600 = vunpack.c.l.b16 %v3884
  %v4601 = vunpack.c.l.b16 %v3885
  %v4602 = vunpack.c.l.b16 %v3886
  %v4603 = vunpack.c.l.b16 %v3887
  %v4604 = vunpack.c.l.b16 %v3888
  %v4605 = vunpack.c.l.b16 %v3889
  %v4606 = vunpack.c.l.b16 %v3890
  %v4607 = vunpack.c.l.b16 %v3891
  %v4608 = vunpack.c.l.b16 %v3892
  %v4609 = vunpack.c.l.b16 %v3893
  %v4610 = vunpack.c.l.b16 %v3894
  %v4611 = vunpack.c.l.b16 %v3895
  %v4612 = vunpack.c.l.b16 %v3896
  %v4613 = vunpack.c.l.b16 %v3897
  %v4614 = vunpack.c.l.b16 %v3898
  %v4615 = vunpack.c.l.b16 %v3899
  %v4616 = vunpack.c.l.b16 %v3900
  %v4617 = vunpack.c.l.b16 %v3901
  %v4618 = vunpack.c.l.b16 %v3902
  %v4619 = vunpack.c.l.b16 %v3903
  %v4620 = vunpack.c.l.b16 %v3904
  %v4621 = vunpack.c.l.b16 %v3905
  %v4622 = vunpack.c.l.b16 %v3906
  %v4623 = vunpack.c.l.b16 %v3907
  %v4624 = vunpack.c.l.b16 %v3908
  %v4625 = vunpack.c.l.b16 %v3909
  %v4626 = vunpack.c.l.b16 %v3910
  %v4627 = vunpack.c.l.b16 %v3911
  %v4628 = vunpack.c.l.b16 %v3912
  %v4629 = vunpack.c.l.b16 %v3913
  %v4630 = vunpack.c.l.b16 %v3914
  %v4631 = vunpack.c.l.b16 %v3915
  %v4632 = vunpack.c.l.b16 %v3916
  %v4633 = vunpack.c.l.b16 %v3917
  %v4634 = vunpack.c.l.b16 %v3918
  %v4635 = vunpack.c.l.b16 %v3919
  %v4636 = vunpack.c.l.b16 %v3920
  %v4637 = vunpack.c.l.b16 %v3921
  %v4638 = vunpack.c.l.b16 %v3922
  %v4639 = vunpack.c.l.b16 %v3923
  %v4640 = vunpack.c.l.b16 %v3924
  %v4641 = vunpack.c.l.b16 %v3925
  %v4642 = vunpack.c.l.b16 %v3926
  %v4643 = vunpack.c.l.b16 %v3927
  %v4644 = vunpack.c.l.b16 %v3928
  %v4645 = vunpack.c.l.b16 %v3929
  %v4646 = vunpack.c.l.b16 %v3930
  %v4647 = vunpack.c.l.b16 %v3931
  %v4648 = vunpack.c.l.b16 %v3932
  %v4649 = vunpack.c.l.b16 %v3933
  %v4650 = vunpack.c.l.b16 %v3934
  %v4651 = vunpack.c.l.b16 %v3935
  %v4652 = vunpack.c.l.b16 %v3936
  %v4653 = vunpack.c.l.b16 %v3937
  %v4654 = vunpack.c.l.b16 %v3938
  %v4655 = vunpack.c.l.b16 %v3939
  %v4656 = vunpack.c.l.b16 %v3940
  %v4657 = vunpack.c.l.b16 %v3941
  %v4658 = vunpack.c.l.b16 %v3942
  %v4659 = vunpack.c.l.b16 %v3943
  %v4660 = vunpack.c.l.b16 %v3944
  %v4661 = vunpack.c.l.b16 %v3945
  %v4662 = vunpack.c.l.b16 %v3946
  %v4663 = vunpack.c.l.b16 %v3947
  %v4664 = vunpack.c.l.b16 %v3948
  %v4665 = vunpack.c.l.b16 %v3949
  %v4666 = vunpack.c.l.b16 %v3950
  %v4667 = vunpack.c.l.b16 %v3951
  %v4668 = vunpack.c.l.b16 %v3952
  %v4669 = vunpack.c.l.b16 %v3953
  %v4670 = vunpack.c.l.b16 %v3954
  %v4671 = vunpack.c.l.b16 %v3955
  %v4672 = vunpack.c.l.b16 %v3956
  %v4673 = vunpack.c.l.b16 %v3957
  %v4674 = vunpack.c.l.b16 %v3958
  %v4675 = vunpack.c.l.b16 %v3959
  %v4676 = vunpack.c.l.b16 %v3960
  %v4677 = vunpack.c.l.b16 %v3961
  %v4678 = vunpack.c.l.b16 %v3962
  %v4679 = vunpack.c.l.b16 %v3963
  %v4680 = vunpack.c.l.b16 %v3964
  %v4681 = vunpack.c.l.b16 %v3965
  %v4682 = vunpack.c.l.b16 %v3966
  %v4683 = vunpack.c.l.b16 %v3967
  %v4684 = vunpack.c.l.b16 %v3968
  %v4685 = vunpack.c.l.b16 %v3969
  %v4686 = vunpack.c.l.b16 %v3970
  %v4687 = vunpack.c.l.b16 %v3971
  %v4688 = vunpack.c.l.b16 %v3972
  %v4689 = vunpack.c.l.b16 %v3973
  %v4690 = vunpack.c.l.b16 %v3974
  %v4691 = vunpack.c.l.b16 %v3975
  %v4692 = vunpack.c.l.b16 %v3976
  %v4693 = vunpack.c.l.b16 %v3977
  %v4694 = vunpack.c.l.b16 %v3978
  %v4695 = vunpack.c.l.b16 %v3979
  %v4696 = vunpack.c.l.b16 %v3980
  %v4697 = vunpack.c.l.b16 %v3981
  %v4698 = vunpack.c.l.b16 %v3982
  %v4699 = vunpack.c.l.b16 %v3983
  %v4700 = vunpack.c.l.b16 %v3984
  %v4701 = vunpack.c.l.b16 %v3985
  %v4702 = vunpack.c.l.b16 %v3986
  %v4703 = vunpack.c.l.b16 %v3987
  %v4704 = vpack.c.b16 %v4561, %v4560
  %v4705 = vpack.c.b16 %v4563, %v4562
  %v4706 = vpack.c.b16 %v4565, %v4564
  %v4707 = vpack.c.b16 %v4567, %v4566
  %v4708 = vpack.c.b16 %v4569, %v4568
  %v4709 = vpack.c.b16 %v4571, %v4570
  %v4710 = vpack.c.b16 %v4573, %v4572
  %v4711 = vpack.c.b16 %v4575, %v4574
  %v4712 = vpack.c.b16 %v4577, %v4576
  %v4713 = vpack.c.b16 %v4579, %v4578
  %v4714 = vpack.c.b16 %v4581, %v4580
  %v4715 = vpack.c.b16 %v4583, %v4582
  %v4716 = vpack.c.b16 %v4585, %v4584
  %v4717 = vpack.c.b16 %v4587, %v4586
  %v4718 = vpack.c.b16 %v4589, %v4588
  %v4719 = vpack.c.b16 %v4591, %v4590
  %v4720 = vpack.c.b16 %v4593, %v4592
  %v4721 = vpack.c.b16 %v4595, %v4594
  %v4722 = vpack.c.b16 %v4597, %v4596
  %v4723 = vpack.c.b16 %v4599, %v4598
  %v4724 = vpack.c.b16 %v4601, %v4600
  %v4725 = vpack.c.b16 %v4603, %v4602
  %v4726 = vpack.c.b16 %v4605, %v4604
  %v4727 = vpack.c.b16 %v4607, %v4606
  %v4728 = vpack.c.b16 %v4609, %v4608
  %v4729 = vpack.c.b16 %v4611, %v4610
  %v4730 = vpack.c.b16 %v4613, %v4612
  %v4731 = vpack.c.b16 %v4615, %v4614
  %v4732 = vpack.c.b16 %v4617, %v4616
  %v4733 = vpack.c.b16 %v4619, %v4618
  %v4734 = vpack.c.b16 %v4621, %v4620
  %v4735 = vpack.c.b16 %v4623, %v4622
  %v4736 = vpack.c.b16 %v4625, %v4624
  %v4737 = vpack.c.b16 %v4627, %v4626
  %v4738 = vpack.c.b16 %v4629, %v4628
  %v4739 = vpack.c.b16 %v4631, %v4630
  %v4740 = vpack.c.b16 %v4633, %v4632
  %v4741 = vpack.c.b16 %v4635, %v4634
  %v4742 = vpack.c.b16 %v4637, %v4636
  %v4743 = vpack.c.b16 %v4639, %v4638
  %v4744 = vpack.c.b16 %v4641, %v4640
  %v4745 = vpack.c.b16 %v4643, %v4642
  %v4746 = vpack.c.b16 %v4645, %v4644
  %v4747 = vpack.c.b16 %v4647, %v4646
  %v4748 = vpack.c.b16 %v4649, %v4648
  %v4749 = vpack.c.b16 %v4651, %v4650
  %v4750 = vpack.c.b16 %v4653, %v4652
  %v4751 = vpack.c.b16 %v4655, %v4654
  %v4752 = vpack.c.b16 %v4657, %v4656
  %v4753 = vpack.c.b16 %v4659, %v4658
  %v4754 = vpack.c.b16 %v4661, %v4660
  %v4755 = vpack.c.b16 %v4663, %v4662
  %v4756 = vpack.c.b16 %v4665, %v4664
  %v4757 = vpack.c.b16 %v4667, %v4666
  %v4758 = vpack.c.b16 %v4669, %v4668
  %v4759 = vpack.c.b16 %v4671, %v4670
  %v4760 = vpack.c.b16 %v4673, %v4672
  %v4761 = vpack.c.b16 %v4675, %v4674
  %v4762 = vpack.c.b16 %v4677, %v4676
  %v4763 = vpack.c.b16 %v4679, %v4678
  %v4764 = vpack.c.b16 %v4681, %v4680
  %v4765 = vpack.c.b16 %v4683, %v4682
  %v4766 = vpack.c.b16 %v4685, %v4684
  %v4767 = vpack.c.b16 %v4687, %v4686
  %v4768 = vpack.c.b16 %v4689, %v4688
  %v4769 = vpack.c.b16 %v4691, %v4690
  %v4770 = vpack.c.b16 %v4693, %v4692
  %v4771 = vpack.c.b16 %v4695, %v4694
  %v4772 = vpack.c.b16 %v4697, %v4696
  %v4773 = vpack.c.b16 %v4699, %v4698
  %v4774 = vpack.c.b16 %v4701, %v4700
  %v4775 = vpack.c.b16 %v4703, %v4702
  %4848 = vmatprep.subr.bf16.mxu0 0
  %4849 = vmatpush1.bf16.msra.mxu0 %v4711
  %4850 = vmatprep.subr.bf16.mxu0 0
  %4851 = vmatpush1.bf16.msra.mxu0 %v4710
  %4852 = vmatprep.subr.bf16.mxu0 0
  %4853 = vmatpush1.bf16.msra.mxu0 %v4709
  %4854 = vmatprep.subr.bf16.mxu0 0
  %4855 = vmatpush1.bf16.msra.mxu0 %v4708
  %4856 = vmatprep.subr.bf16.mxu0 0
  %4857 = vmatpush1.bf16.msra.mxu0 %v4707
  %4858 = vmatprep.subr.bf16.mxu0 0
  %4859 = vmatpush1.bf16.msra.mxu0 %v4706
  %4860 = vmatprep.subr.bf16.mxu0 0
  %4861 = vmatpush1.bf16.msra.mxu0 %v4705
  %4862 = vmatprep.subr.bf16.mxu0 0
  %4863 = vmatpush1.bf16.msra.mxu0 %v4704
  %4864 = vmatprep.subr.bf16.mxu0 0
  %4865 = vmatpush2.bf16.msra.mxu0 %v4719
  %4866 = vmatprep.subr.bf16.mxu0 0
  %4867 = vmatpush2.bf16.msra.mxu0 %v4718
  %4868 = vmatprep.subr.bf16.mxu0 0
  %4869 = vmatpush2.bf16.msra.mxu0 %v4717
  %4870 = vmatprep.subr.bf16.mxu0 0
  %4871 = vmatpush2.bf16.msra.mxu0 %v4716
  %4872 = vmatprep.subr.bf16.mxu0 0
  %4873 = vmatpush2.bf16.msra.mxu0 %v4715
  %4874 = vmatprep.subr.bf16.mxu0 0
  %4875 = vmatpush2.bf16.msra.mxu0 %v4714
  %4876 = vmatprep.subr.bf16.mxu0 0
  %4877 = vmatpush2.bf16.msra.mxu0 %v4713
  %4878 = vmatprep.subr.bf16.mxu0 0
  %4879 = vmatpush2.bf16.msra.mxu0 %v4712
  %4880 = vmatprep.mubr.bf16.mxu0 %v4087
  %4881 = vmatmul.mubr.bf16.gmra.mxu0 %v4041
  %v4882 = vpop.f32.mrf.mxu0
  %v4883 = vadd.f32 %v4414, %v4882
  %v4884 = vpop.f32.mrf.mxu0
  %v4885 = vpop.f32.mrf.mxu0
  %v4886 = vpop.f32.mrf.mxu0
  %4887 = vdwg.mxu0
  %4888 = vmatprep.subr.bf16.mxu0 0
  %4889 = vmatpush1.bf16.msra.mxu0 %v4727
  %4890 = vmatprep.subr.bf16.mxu0 0
  %4891 = vmatpush1.bf16.msra.mxu0 %v4726
  %4892 = vmatprep.subr.bf16.mxu0 0
  %4893 = vmatpush1.bf16.msra.mxu0 %v4725
  %4894 = vmatprep.subr.bf16.mxu0 0
  %4895 = vmatpush1.bf16.msra.mxu0 %v4724
  %4896 = vmatprep.subr.bf16.mxu0 0
  %4897 = vmatpush1.bf16.msra.mxu0 %v4723
  %4898 = vmatprep.subr.bf16.mxu0 0
  %4899 = vmatpush1.bf16.msra.mxu0 %v4722
  %4900 = vmatprep.subr.bf16.mxu0 0
  %4901 = vmatpush1.bf16.msra.mxu0 %v4721
  %4902 = vmatprep.subr.bf16.mxu0 0
  %4903 = vmatpush1.bf16.msra.mxu0 %v4720
  %4904 = vmatprep.subr.bf16.mxu0 0
  %4905 = vmatpush2.bf16.msra.mxu0 %v4735
  %4906 = vmatprep.subr.bf16.mxu0 0
  %4907 = vmatpush2.bf16.msra.mxu0 %v4734
  %4908 = vmatprep.subr.bf16.mxu0 0
  %4909 = vmatpush2.bf16.msra.mxu0 %v4733
  %4910 = vmatprep.subr.bf16.mxu0 0
  %4911 = vmatpush2.bf16.msra.mxu0 %v4732
  %4912 = vmatprep.subr.bf16.mxu0 0
  %4913 = vmatpush2.bf16.msra.mxu0 %v4731
  %4914 = vmatprep.subr.bf16.mxu0 0
  %4915 = vmatpush2.bf16.msra.mxu0 %v4730
  %4916 = vmatprep.subr.bf16.mxu0 0
  %4917 = vmatpush2.bf16.msra.mxu0 %v4729
  %4918 = vmatprep.subr.bf16.mxu0 0
  %4919 = vmatpush2.bf16.msra.mxu0 %v4728
  %4920 = vmatprep.mubr.bf16.mxu0 %v4179
  %4921 = vmatmul.mubr.bf16.gmra.mxu0 %v4133
  %v4922 = vpop.f32.mrf.mxu0
  %v4923 = vadd.f32 %v4883, %v4922
  %v4924 = vpop.f32.mrf.mxu0
  %v4925 = vpop.f32.mrf.mxu0
  %v4926 = vpop.f32.mrf.mxu0
  %4927 = vdwg.mxu0
  %4928 = vmatprep.subr.bf16.mxu0 0
  %4929 = vmatpush1.bf16.msra.mxu0 %v4743
  %4930 = vmatprep.subr.bf16.mxu0 0
  %4931 = vmatpush1.bf16.msra.mxu0 %v4742
  %4932 = vmatprep.subr.bf16.mxu0 0
  %4933 = vmatpush1.bf16.msra.mxu0 %v4741
  %4934 = vmatprep.subr.bf16.mxu0 0
  %4935 = vmatpush1.bf16.msra.mxu0 %v4740
  %4936 = vmatprep.subr.bf16.mxu0 0
  %4937 = vmatpush1.bf16.msra.mxu0 %v4739
  %4938 = vmatprep.subr.bf16.mxu0 0
  %4939 = vmatpush1.bf16.msra.mxu0 %v4738
  %4940 = vmatprep.subr.bf16.mxu0 0
  %4941 = vmatpush1.bf16.msra.mxu0 %v4737
  %4942 = vmatprep.subr.bf16.mxu0 0
  %4943 = vmatpush1.bf16.msra.mxu0 %v4736
  %4944 = vmatprep.subr.bf16.mxu0 0
  %4945 = vmatpush2.bf16.msra.mxu0 %v4751
  %4946 = vmatprep.subr.bf16.mxu0 0
  %4947 = vmatpush2.bf16.msra.mxu0 %v4750
  %4948 = vmatprep.subr.bf16.mxu0 0
  %4949 = vmatpush2.bf16.msra.mxu0 %v4749
  %4950 = vmatprep.subr.bf16.mxu0 0
  %4951 = vmatpush2.bf16.msra.mxu0 %v4748
  %4952 = vmatprep.subr.bf16.mxu0 0
  %4953 = vmatpush2.bf16.msra.mxu0 %v4747
  %4954 = vmatprep.subr.bf16.mxu0 0
  %4955 = vmatpush2.bf16.msra.mxu0 %v4746
  %4956 = vmatprep.subr.bf16.mxu0 0
  %4957 = vmatpush2.bf16.msra.mxu0 %v4745
  %4958 = vmatprep.subr.bf16.mxu0 0
  %4959 = vmatpush2.bf16.msra.mxu0 %v4744
  %4960 = vmatprep.mubr.bf16.mxu0 %v4271
  %4961 = vmatmul.mubr.bf16.gmra.mxu0 %v4225
  %v4962 = vpop.f32.mrf.mxu0
  %v4963 = vadd.f32 %v4923, %v4962
  %v4964 = vpop.f32.mrf.mxu0
  %v4965 = vpop.f32.mrf.mxu0
  %v4966 = vpop.f32.mrf.mxu0
  %4967 = vdwg.mxu0
  %4968 = vmatprep.subr.bf16.mxu0 0
  %4969 = vmatpush1.bf16.msra.mxu0 %v4759
  %4970 = vmatprep.subr.bf16.mxu0 0
  %4971 = vmatpush1.bf16.msra.mxu0 %v4758
  %4972 = vmatprep.subr.bf16.mxu0 0
  %4973 = vmatpush1.bf16.msra.mxu0 %v4757
  %4974 = vmatprep.subr.bf16.mxu0 0
  %4975 = vmatpush1.bf16.msra.mxu0 %v4756
  %4976 = vmatprep.subr.bf16.mxu0 0
  %4977 = vmatpush1.bf16.msra.mxu0 %v4755
  %4978 = vmatprep.subr.bf16.mxu0 0
  %4979 = vmatpush1.bf16.msra.mxu0 %v4754
  %4980 = vmatprep.subr.bf16.mxu0 0
  %4981 = vmatpush1.bf16.msra.mxu0 %v4753
  %4982 = vmatprep.subr.bf16.mxu0 0
  %4983 = vmatpush1.bf16.msra.mxu0 %v4752
  %4984 = vmatprep.subr.bf16.mxu0 0
  %4985 = vmatpush2.bf16.msra.mxu0 %v4767
  %4986 = vmatprep.subr.bf16.mxu0 0
  %4987 = vmatpush2.bf16.msra.mxu0 %v4766
  %4988 = vmatprep.subr.bf16.mxu0 0
  %4989 = vmatpush2.bf16.msra.mxu0 %v4765
  %4990 = vmatprep.subr.bf16.mxu0 0
  %4991 = vmatpush2.bf16.msra.mxu0 %v4764
  %4992 = vmatprep.subr.bf16.mxu0 0
  %4993 = vmatpush2.bf16.msra.mxu0 %v4763
  %4994 = vmatprep.subr.bf16.mxu0 0
  %4995 = vmatpush2.bf16.msra.mxu0 %v4762
  %4996 = vmatprep.subr.bf16.mxu0 0
  %4997 = vmatpush2.bf16.msra.mxu0 %v4761
  %4998 = vmatprep.subr.bf16.mxu0 0
  %4999 = vmatpush2.bf16.msra.mxu0 %v4760
  %5000 = vmatprep.mubr.bf16.mxu0 %v4363
  %5001 = vmatmul.mubr.bf16.gmra.mxu0 %v4317
  %v5002 = vpop.f32.mrf.mxu0
  %v5003 = vadd.f32 %v4963, %v5002
  %v5004 = vpop.f32.mrf.mxu0
  %v5005 = vpop.f32.mrf.mxu0
  %v5006 = vpop.f32.mrf.mxu0
  %5007 = vdwg.mxu0
  %5008 = vmatprep.subr.bf16.mxu0 0
  %5009 = vmatpush1.bf16.msra.mxu0 %v4775
  %5010 = vmatprep.subr.bf16.mxu0 0
  %5011 = vmatpush1.bf16.msra.mxu0 %v4774
  %5012 = vmatprep.subr.bf16.mxu0 0
  %5013 = vmatpush1.bf16.msra.mxu0 %v4773
  %5014 = vmatprep.subr.bf16.mxu0 0
  %5015 = vmatpush1.bf16.msra.mxu0 %v4772
  %5016 = vmatprep.subr.bf16.mxu0 0
  %5017 = vmatpush1.bf16.msra.mxu0 %v4771
  %5018 = vmatprep.subr.bf16.mxu0 0
  %5019 = vmatpush1.bf16.msra.mxu0 %v4770
  %5020 = vmatprep.subr.bf16.mxu0 0
  %5021 = vmatpush1.bf16.msra.mxu0 %v4769
  %5022 = vmatprep.subr.bf16.mxu0 0
  %5023 = vmatpush1.bf16.msra.mxu0 %v4768
  %5024 = vmatprep.subr.bf16.mxu0 0
  %5025 = vmatpush2.bf16.msra.mxu0 0
  %5026 = vmatprep.subr.bf16.mxu0 0
  %5027 = vmatpush2.bf16.msra.mxu0 0
  %5028 = vmatprep.subr.bf16.mxu0 0
  %5029 = vmatpush2.bf16.msra.mxu0 0
  %5030 = vmatprep.subr.bf16.mxu0 0
  %5031 = vmatpush2.bf16.msra.mxu0 0
  %5032 = vmatprep.subr.bf16.mxu0 0
  %5033 = vmatpush2.bf16.msra.mxu0 0
  %5034 = vmatprep.subr.bf16.mxu0 0
  %5035 = vmatpush2.bf16.msra.mxu0 0
  %5036 = vmatprep.subr.bf16.mxu0 0
  %5037 = vmatpush2.bf16.msra.mxu0 0
  %5038 = vmatprep.subr.bf16.mxu0 0
  %5039 = vmatpush2.bf16.msra.mxu0 0
  %5040 = vmatprep.mubr.bf16.mxu0 0
  %5041 = vmatmul.mubr.bf16.gmra.mxu0 %v4409
  %v5042 = vpop.f32.mrf.mxu0
  %v5043 = vadd.f32 %v5003, %v5042
  %v5044 = vpop.f32.mrf.mxu0
  %v5045 = vpop.f32.mrf.mxu0
  %v5046 = vpop.f32.mrf.mxu0
  %5047 = vdwg.mxu0
  %v5048 = vpack.c.bf16 %v3840, %v3839
  %v5049 = vpack.c.bf16 %v3842, %v3841
  %v5050 = vpack.c.bf16 %v3843, %v3843
  %v5052 = vsel %vm3997, %v5050, 0
  %5054 = vmatprep.subr.bf16.mxu0 0
  %5055 = vmatpush1.bf16.msra.mxu0 0
  %5056 = vmatprep.subr.bf16.mxu0 0
  %5057 = vmatpush1.bf16.msra.mxu0 0
  %5058 = vmatprep.subr.bf16.mxu0 0
  %5059 = vmatpush1.bf16.msra.mxu0 0
  %5060 = vmatprep.subr.bf16.mxu0 0
  %5061 = vmatpush1.bf16.msra.mxu0 0
  %5062 = vmatprep.subr.bf16.mxu0 0
  %5063 = vmatpush1.bf16.msra.mxu0 0
  %5064 = vmatprep.subr.bf16.mxu0 0
  %5065 = vmatpush1.bf16.msra.mxu0 %v5052
  %5066 = vmatprep.subr.bf16.mxu0 0
  %5067 = vmatpush1.bf16.msra.mxu0 %v5049
  %5068 = vmatprep.subr.bf16.mxu0 0
  %5069 = vmatpush1.bf16.msra.mxu0 %v5048
  %5070 = vmatprep.subr.bf16.mxu0 0
  %5071 = vmatpush2.bf16.msra.mxu0 0
  %5072 = vmatprep.subr.bf16.mxu0 0
  %5073 = vmatpush2.bf16.msra.mxu0 0
  %5074 = vmatprep.subr.bf16.mxu0 0
  %5075 = vmatpush2.bf16.msra.mxu0 0
  %5076 = vmatprep.subr.bf16.mxu0 0
  %5077 = vmatpush2.bf16.msra.mxu0 0
  %5078 = vmatprep.subr.bf16.mxu0 0
  %5079 = vmatpush2.bf16.msra.mxu0 0
  %5080 = vmatprep.subr.bf16.mxu0 0
  %5081 = vmatpush2.bf16.msra.mxu0 0
  %5082 = vmatprep.subr.bf16.mxu0 0
  %5083 = vmatpush2.bf16.msra.mxu0 0
  %5084 = vmatprep.subr.bf16.mxu0 0
  %5085 = vmatpush2.bf16.msra.mxu0 0
  %5086 = vmatprep.mubr.bf16.mxu0 0
  %5087 = vmatmul.mubr.bf16.gmra.mxu0 %v3995
  %v5088 = vpop.f32.mrf.mxu0
  %v5089 = vadd.f32 0.0, %v5088
  %v5090 = vpop.f32.mrf.mxu0
  %v5091 = vpop.f32.mrf.mxu0
  %v5092 = vpop.f32.mrf.mxu0
  %5093 = vdwg.mxu0
  %v5094 = vpack.c.bf16 %v5089, %v5089
  %5095 = vmatprep.subr.bf16.mxu0 0
  %5096 = vmatpush1.bf16.msra.mxu0 0
  %5097 = vmatprep.subr.bf16.mxu0 0
  %5098 = vmatpush1.bf16.msra.mxu0 0
  %5099 = vmatprep.subr.bf16.mxu0 0
  %5100 = vmatpush1.bf16.msra.mxu0 0
  %5101 = vmatprep.subr.bf16.mxu0 0
  %5102 = vmatpush1.bf16.msra.mxu0 0
  %5103 = vmatprep.subr.bf16.mxu0 0
  %5104 = vmatpush1.bf16.msra.mxu0 0
  %5105 = vmatprep.subr.bf16.mxu0 0
  %5106 = vmatpush1.bf16.msra.mxu0 %v5052
  %5107 = vmatprep.subr.bf16.mxu0 0
  %5108 = vmatpush1.bf16.msra.mxu0 %v5049
  %5109 = vmatprep.subr.bf16.mxu0 0
  %5110 = vmatpush1.bf16.msra.mxu0 %v5048
  %5111 = vmatprep.subr.bf16.mxu0 0
  %5112 = vmatpush2.bf16.msra.mxu0 0
  %5113 = vmatprep.subr.bf16.mxu0 0
  %5114 = vmatpush2.bf16.msra.mxu0 0
  %5115 = vmatprep.subr.bf16.mxu0 0
  %5116 = vmatpush2.bf16.msra.mxu0 0
  %5117 = vmatprep.subr.bf16.mxu0 0
  %5118 = vmatpush2.bf16.msra.mxu0 0
  %5119 = vmatprep.subr.bf16.mxu0 0
  %5120 = vmatpush2.bf16.msra.mxu0 0
  %5121 = vmatprep.subr.bf16.mxu0 0
  %5122 = vmatpush2.bf16.msra.mxu0 0
  %5123 = vmatprep.subr.bf16.mxu0 0
  %5124 = vmatpush2.bf16.msra.mxu0 0
  %5125 = vmatprep.subr.bf16.mxu0 0
  %5126 = vmatpush2.bf16.msra.mxu0 0
  %5127 = vmatprep.mubr.bf16.mxu0 0
  %5128 = vmatmul.mubr.bf16.gmra.mxu0 %v4045
  %v5129 = vpop.f32.mrf.mxu0
  %v5130 = vadd.f32 0.0, %v5129
  %v5131 = vpop.f32.mrf.mxu0
  %v5132 = vpop.f32.mrf.mxu0
  %v5133 = vpop.f32.mrf.mxu0
  %5134 = vdwg.mxu0
  %v5135 = vpack.c.bf16 %v5130, %v5130
  %5136 = vmatprep.subr.bf16.mxu0 0
  %5137 = vmatpush1.bf16.msra.mxu0 0
  %5138 = vmatprep.subr.bf16.mxu0 0
  %5139 = vmatpush1.bf16.msra.mxu0 0
  %5140 = vmatprep.subr.bf16.mxu0 0
  %5141 = vmatpush1.bf16.msra.mxu0 0
  %5142 = vmatprep.subr.bf16.mxu0 0
  %5143 = vmatpush1.bf16.msra.mxu0 0
  %5144 = vmatprep.subr.bf16.mxu0 0
  %5145 = vmatpush1.bf16.msra.mxu0 0
  %5146 = vmatprep.subr.bf16.mxu0 0
  %5147 = vmatpush1.bf16.msra.mxu0 %v5052
  %5148 = vmatprep.subr.bf16.mxu0 0
  %5149 = vmatpush1.bf16.msra.mxu0 %v5049
  %5150 = vmatprep.subr.bf16.mxu0 0
  %5151 = vmatpush1.bf16.msra.mxu0 %v5048
  %5152 = vmatprep.subr.bf16.mxu0 0
  %5153 = vmatpush2.bf16.msra.mxu0 0
  %5154 = vmatprep.subr.bf16.mxu0 0
  %5155 = vmatpush2.bf16.msra.mxu0 0
  %5156 = vmatprep.subr.bf16.mxu0 0
  %5157 = vmatpush2.bf16.msra.mxu0 0
  %5158 = vmatprep.subr.bf16.mxu0 0
  %5159 = vmatpush2.bf16.msra.mxu0 0
  %5160 = vmatprep.subr.bf16.mxu0 0
  %5161 = vmatpush2.bf16.msra.mxu0 0
  %5162 = vmatprep.subr.bf16.mxu0 0
  %5163 = vmatpush2.bf16.msra.mxu0 0
  %5164 = vmatprep.subr.bf16.mxu0 0
  %5165 = vmatpush2.bf16.msra.mxu0 0
  %5166 = vmatprep.subr.bf16.mxu0 0
  %5167 = vmatpush2.bf16.msra.mxu0 0
  %5168 = vmatprep.mubr.bf16.mxu0 0
  %5169 = vmatmul.mubr.bf16.gmra.mxu0 %v4091
  %v5170 = vpop.f32.mrf.mxu0
  %v5171 = vadd.f32 0.0, %v5170
  %v5172 = vpop.f32.mrf.mxu0
  %v5173 = vpop.f32.mrf.mxu0
  %v5174 = vpop.f32.mrf.mxu0
  %5175 = vdwg.mxu0
  %v5176 = vpack.c.bf16 %v5171, %v5171
  %5177 = vmatprep.subr.bf16.mxu0 0
  %5178 = vmatpush1.bf16.msra.mxu0 0
  %5179 = vmatprep.subr.bf16.mxu0 0
  %5180 = vmatpush1.bf16.msra.mxu0 0
  %5181 = vmatprep.subr.bf16.mxu0 0
  %5182 = vmatpush1.bf16.msra.mxu0 0
  %5183 = vmatprep.subr.bf16.mxu0 0
  %5184 = vmatpush1.bf16.msra.mxu0 0
  %5185 = vmatprep.subr.bf16.mxu0 0
  %5186 = vmatpush1.bf16.msra.mxu0 0
  %5187 = vmatprep.subr.bf16.mxu0 0
  %5188 = vmatpush1.bf16.msra.mxu0 %v5052
  %5189 = vmatprep.subr.bf16.mxu0 0
  %5190 = vmatpush1.bf16.msra.mxu0 %v5049
  %5191 = vmatprep.subr.bf16.mxu0 0
  %5192 = vmatpush1.bf16.msra.mxu0 %v5048
  %5193 = vmatprep.subr.bf16.mxu0 0
  %5194 = vmatpush2.bf16.msra.mxu0 0
  %5195 = vmatprep.subr.bf16.mxu0 0
  %5196 = vmatpush2.bf16.msra.mxu0 0
  %5197 = vmatprep.subr.bf16.mxu0 0
  %5198 = vmatpush2.bf16.msra.mxu0 0
  %5199 = vmatprep.subr.bf16.mxu0 0
  %5200 = vmatpush2.bf16.msra.mxu0 0
  %5201 = vmatprep.subr.bf16.mxu0 0
  %5202 = vmatpush2.bf16.msra.mxu0 0
  %5203 = vmatprep.subr.bf16.mxu0 0
  %5204 = vmatpush2.bf16.msra.mxu0 0
  %5205 = vmatprep.subr.bf16.mxu0 0
  %5206 = vmatpush2.bf16.msra.mxu0 0
  %5207 = vmatprep.subr.bf16.mxu0 0
  %5208 = vmatpush2.bf16.msra.mxu0 0
  %5209 = vmatprep.mubr.bf16.mxu0 0
  %5210 = vmatmul.mubr.bf16.gmra.mxu0 %v4137
  %v5211 = vpop.f32.mrf.mxu0
  %v5212 = vadd.f32 0.0, %v5211
  %v5213 = vpop.f32.mrf.mxu0
  %v5214 = vpop.f32.mrf.mxu0
  %v5215 = vpop.f32.mrf.mxu0
  %5216 = vdwg.mxu0
  %v5217 = vpack.c.bf16 %v5212, %v5212
  %5218 = vmatprep.subr.bf16.mxu0 0
  %5219 = vmatpush1.bf16.msra.mxu0 0
  %5220 = vmatprep.subr.bf16.mxu0 0
  %5221 = vmatpush1.bf16.msra.mxu0 0
  %5222 = vmatprep.subr.bf16.mxu0 0
  %5223 = vmatpush1.bf16.msra.mxu0 0
  %5224 = vmatprep.subr.bf16.mxu0 0
  %5225 = vmatpush1.bf16.msra.mxu0 0
  %5226 = vmatprep.subr.bf16.mxu0 0
  %5227 = vmatpush1.bf16.msra.mxu0 0
  %5228 = vmatprep.subr.bf16.mxu0 0
  %5229 = vmatpush1.bf16.msra.mxu0 %v5052
  %5230 = vmatprep.subr.bf16.mxu0 0
  %5231 = vmatpush1.bf16.msra.mxu0 %v5049
  %5232 = vmatprep.subr.bf16.mxu0 0
  %5233 = vmatpush1.bf16.msra.mxu0 %v5048
  %5234 = vmatprep.subr.bf16.mxu0 0
  %5235 = vmatpush2.bf16.msra.mxu0 0
  %5236 = vmatprep.subr.bf16.mxu0 0
  %5237 = vmatpush2.bf16.msra.mxu0 0
  %5238 = vmatprep.subr.bf16.mxu0 0
  %5239 = vmatpush2.bf16.msra.mxu0 0
  %5240 = vmatprep.subr.bf16.mxu0 0
  %5241 = vmatpush2.bf16.msra.mxu0 0
  %5242 = vmatprep.subr.bf16.mxu0 0
  %5243 = vmatpush2.bf16.msra.mxu0 0
  %5244 = vmatprep.subr.bf16.mxu0 0
  %5245 = vmatpush2.bf16.msra.mxu0 0
  %5246 = vmatprep.subr.bf16.mxu0 0
  %5247 = vmatpush2.bf16.msra.mxu0 0
  %5248 = vmatprep.subr.bf16.mxu0 0
  %5249 = vmatpush2.bf16.msra.mxu0 0
  %5250 = vmatprep.mubr.bf16.mxu0 0
  %5251 = vmatmul.mubr.bf16.gmra.mxu0 %v4183
  %v5252 = vpop.f32.mrf.mxu0
  %v5253 = vadd.f32 0.0, %v5252
  %v5254 = vpop.f32.mrf.mxu0
  %v5255 = vpop.f32.mrf.mxu0
  %v5256 = vpop.f32.mrf.mxu0
  %5257 = vdwg.mxu0
  %v5258 = vpack.c.bf16 %v5253, %v5253
  %5259 = vmatprep.subr.bf16.mxu0 0
  %5260 = vmatpush1.bf16.msra.mxu0 0
  %5261 = vmatprep.subr.bf16.mxu0 0
  %5262 = vmatpush1.bf16.msra.mxu0 0
  %5263 = vmatprep.subr.bf16.mxu0 0
  %5264 = vmatpush1.bf16.msra.mxu0 0
  %5265 = vmatprep.subr.bf16.mxu0 0
  %5266 = vmatpush1.bf16.msra.mxu0 0
  %5267 = vmatprep.subr.bf16.mxu0 0
  %5268 = vmatpush1.bf16.msra.mxu0 0
  %5269 = vmatprep.subr.bf16.mxu0 0
  %5270 = vmatpush1.bf16.msra.mxu0 %v5052
  %5271 = vmatprep.subr.bf16.mxu0 0
  %5272 = vmatpush1.bf16.msra.mxu0 %v5049
  %5273 = vmatprep.subr.bf16.mxu0 0
  %5274 = vmatpush1.bf16.msra.mxu0 %v5048
  %5275 = vmatprep.subr.bf16.mxu0 0
  %5276 = vmatpush2.bf16.msra.mxu0 0
  %5277 = vmatprep.subr.bf16.mxu0 0
  %5278 = vmatpush2.bf16.msra.mxu0 0
  %5279 = vmatprep.subr.bf16.mxu0 0
  %5280 = vmatpush2.bf16.msra.mxu0 0
  %5281 = vmatprep.subr.bf16.mxu0 0
  %5282 = vmatpush2.bf16.msra.mxu0 0
  %5283 = vmatprep.subr.bf16.mxu0 0
  %5284 = vmatpush2.bf16.msra.mxu0 0
  %5285 = vmatprep.subr.bf16.mxu0 0
  %5286 = vmatpush2.bf16.msra.mxu0 0
  %5287 = vmatprep.subr.bf16.mxu0 0
  %5288 = vmatpush2.bf16.msra.mxu0 0
  %5289 = vmatprep.subr.bf16.mxu0 0
  %5290 = vmatpush2.bf16.msra.mxu0 0
  %5291 = vmatprep.mubr.bf16.mxu0 0
  %5292 = vmatmul.mubr.bf16.gmra.mxu0 %v4229
  %v5293 = vpop.f32.mrf.mxu0
  %v5294 = vadd.f32 0.0, %v5293
  %v5295 = vpop.f32.mrf.mxu0
  %v5296 = vpop.f32.mrf.mxu0
  %v5297 = vpop.f32.mrf.mxu0
  %5298 = vdwg.mxu0
  %v5299 = vpack.c.bf16 %v5294, %v5294
  %5300 = vmatprep.subr.bf16.mxu0 0
  %5301 = vmatpush1.bf16.msra.mxu0 0
  %5302 = vmatprep.subr.bf16.mxu0 0
  %5303 = vmatpush1.bf16.msra.mxu0 0
  %5304 = vmatprep.subr.bf16.mxu0 0
  %5305 = vmatpush1.bf16.msra.mxu0 0
  %5306 = vmatprep.subr.bf16.mxu0 0
  %5307 = vmatpush1.bf16.msra.mxu0 0
  %5308 = vmatprep.subr.bf16.mxu0 0
  %5309 = vmatpush1.bf16.msra.mxu0 0
  %5310 = vmatprep.subr.bf16.mxu0 0
  %5311 = vmatpush1.bf16.msra.mxu0 %v5052
  %5312 = vmatprep.subr.bf16.mxu0 0
  %5313 = vmatpush1.bf16.msra.mxu0 %v5049
  %5314 = vmatprep.subr.bf16.mxu0 0
  %5315 = vmatpush1.bf16.msra.mxu0 %v5048
  %5316 = vmatprep.subr.bf16.mxu0 0
  %5317 = vmatpush2.bf16.msra.mxu0 0
  %5318 = vmatprep.subr.bf16.mxu0 0
  %5319 = vmatpush2.bf16.msra.mxu0 0
  %5320 = vmatprep.subr.bf16.mxu0 0
  %5321 = vmatpush2.bf16.msra.mxu0 0
  %5322 = vmatprep.subr.bf16.mxu0 0
  %5323 = vmatpush2.bf16.msra.mxu0 0
  %5324 = vmatprep.subr.bf16.mxu0 0
  %5325 = vmatpush2.bf16.msra.mxu0 0
  %5326 = vmatprep.subr.bf16.mxu0 0
  %5327 = vmatpush2.bf16.msra.mxu0 0
  %5328 = vmatprep.subr.bf16.mxu0 0
  %5329 = vmatpush2.bf16.msra.mxu0 0
  %5330 = vmatprep.subr.bf16.mxu0 0
  %5331 = vmatpush2.bf16.msra.mxu0 0
  %5332 = vmatprep.mubr.bf16.mxu0 0
  %5333 = vmatmul.mubr.bf16.gmra.mxu0 %v4275
  %v5334 = vpop.f32.mrf.mxu0
  %v5335 = vadd.f32 0.0, %v5334
  %v5336 = vpop.f32.mrf.mxu0
  %v5337 = vpop.f32.mrf.mxu0
  %v5338 = vpop.f32.mrf.mxu0
  %5339 = vdwg.mxu0
  %v5340 = vpack.c.bf16 %v5335, %v5335
  %5341 = vmatprep.subr.bf16.mxu0 0
  %5342 = vmatpush1.bf16.msra.mxu0 0
  %5343 = vmatprep.subr.bf16.mxu0 0
  %5344 = vmatpush1.bf16.msra.mxu0 0
  %5345 = vmatprep.subr.bf16.mxu0 0
  %5346 = vmatpush1.bf16.msra.mxu0 0
  %5347 = vmatprep.subr.bf16.mxu0 0
  %5348 = vmatpush1.bf16.msra.mxu0 0
  %5349 = vmatprep.subr.bf16.mxu0 0
  %5350 = vmatpush1.bf16.msra.mxu0 0
  %5351 = vmatprep.subr.bf16.mxu0 0
  %5352 = vmatpush1.bf16.msra.mxu0 %v5052
  %5353 = vmatprep.subr.bf16.mxu0 0
  %5354 = vmatpush1.bf16.msra.mxu0 %v5049
  %5355 = vmatprep.subr.bf16.mxu0 0
  %5356 = vmatpush1.bf16.msra.mxu0 %v5048
  %5357 = vmatprep.subr.bf16.mxu0 0
  %5358 = vmatpush2.bf16.msra.mxu0 0
  %5359 = vmatprep.subr.bf16.mxu0 0
  %5360 = vmatpush2.bf16.msra.mxu0 0
  %5361 = vmatprep.subr.bf16.mxu0 0
  %5362 = vmatpush2.bf16.msra.mxu0 0
  %5363 = vmatprep.subr.bf16.mxu0 0
  %5364 = vmatpush2.bf16.msra.mxu0 0
  %5365 = vmatprep.subr.bf16.mxu0 0
  %5366 = vmatpush2.bf16.msra.mxu0 0
  %5367 = vmatprep.subr.bf16.mxu0 0
  %5368 = vmatpush2.bf16.msra.mxu0 0
  %5369 = vmatprep.subr.bf16.mxu0 0
  %5370 = vmatpush2.bf16.msra.mxu0 0
  %5371 = vmatprep.subr.bf16.mxu0 0
  %5372 = vmatpush2.bf16.msra.mxu0 0
  %5373 = vmatprep.mubr.bf16.mxu0 0
  %5374 = vmatmul.mubr.bf16.gmra.mxu0 %v4321
  %v5375 = vpop.f32.mrf.mxu0
  %v5376 = vadd.f32 0.0, %v5375
  %v5377 = vpop.f32.mrf.mxu0
  %v5378 = vpop.f32.mrf.mxu0
  %v5379 = vpop.f32.mrf.mxu0
  %5380 = vdwg.mxu0
  %v5381 = vpack.c.bf16 %v5376, %v5376
  %5382 = vmatprep.subr.bf16.mxu0 0
  %5383 = vmatpush1.bf16.msra.mxu0 0
  %5384 = vmatprep.subr.bf16.mxu0 0
  %5385 = vmatpush1.bf16.msra.mxu0 0
  %5386 = vmatprep.subr.bf16.mxu0 0
  %5387 = vmatpush1.bf16.msra.mxu0 0
  %5388 = vmatprep.subr.bf16.mxu0 0
  %5389 = vmatpush1.bf16.msra.mxu0 0
  %5390 = vmatprep.subr.bf16.mxu0 0
  %5391 = vmatpush1.bf16.msra.mxu0 0
  %5392 = vmatprep.subr.bf16.mxu0 0
  %5393 = vmatpush1.bf16.msra.mxu0 %v5052
  %5394 = vmatprep.subr.bf16.mxu0 0
  %5395 = vmatpush1.bf16.msra.mxu0 %v5049
  %5396 = vmatprep.subr.bf16.mxu0 0
  %5397 = vmatpush1.bf16.msra.mxu0 %v5048
  %5398 = vmatprep.subr.bf16.mxu0 0
  %5399 = vmatpush2.bf16.msra.mxu0 0
  %5400 = vmatprep.subr.bf16.mxu0 0
  %5401 = vmatpush2.bf16.msra.mxu0 0
  %5402 = vmatprep.subr.bf16.mxu0 0
  %5403 = vmatpush2.bf16.msra.mxu0 0
  %5404 = vmatprep.subr.bf16.mxu0 0
  %5405 = vmatpush2.bf16.msra.mxu0 0
  %5406 = vmatprep.subr.bf16.mxu0 0
  %5407 = vmatpush2.bf16.msra.mxu0 0
  %5408 = vmatprep.subr.bf16.mxu0 0
  %5409 = vmatpush2.bf16.msra.mxu0 0
  %5410 = vmatprep.subr.bf16.mxu0 0
  %5411 = vmatpush2.bf16.msra.mxu0 0
  %5412 = vmatprep.subr.bf16.mxu0 0
  %5413 = vmatpush2.bf16.msra.mxu0 0
  %5414 = vmatprep.mubr.bf16.mxu0 0
  %5415 = vmatmul.mubr.bf16.gmra.mxu0 %v4367
  %v5416 = vpop.f32.mrf.mxu0
  %v5417 = vadd.f32 0.0, %v5416
  %v5418 = vpop.f32.mrf.mxu0
  %v5419 = vpop.f32.mrf.mxu0
  %v5420 = vpop.f32.mrf.mxu0
  %5421 = vdwg.mxu0
  %v5422 = vpack.c.bf16 %v5417, %v5417
  %5423 = vmatprep.subr.bf16.mxu0 0
  %5424 = vmatpush1.bf16.msra.mxu0 %v4711
  %5425 = vmatprep.subr.bf16.mxu0 0
  %5426 = vmatpush1.bf16.msra.mxu0 %v4710
  %5427 = vmatprep.subr.bf16.mxu0 0
  %5428 = vmatpush1.bf16.msra.mxu0 %v4709
  %5429 = vmatprep.subr.bf16.mxu0 0
  %5430 = vmatpush1.bf16.msra.mxu0 %v4708
  %5431 = vmatprep.subr.bf16.mxu0 0
  %5432 = vmatpush1.bf16.msra.mxu0 %v4707
  %5433 = vmatprep.subr.bf16.mxu0 0
  %5434 = vmatpush1.bf16.msra.mxu0 %v4706
  %5435 = vmatprep.subr.bf16.mxu0 0
  %5436 = vmatpush1.bf16.msra.mxu0 %v4705
  %5437 = vmatprep.subr.bf16.mxu0 0
  %5438 = vmatpush1.bf16.msra.mxu0 %v4704
  %5439 = vmatprep.subr.bf16.mxu0 0
  %5440 = vmatpush2.bf16.msra.mxu0 %v4719
  %5441 = vmatprep.subr.bf16.mxu0 0
  %5442 = vmatpush2.bf16.msra.mxu0 %v4718
  %5443 = vmatprep.subr.bf16.mxu0 0
  %5444 = vmatpush2.bf16.msra.mxu0 %v4717
  %5445 = vmatprep.subr.bf16.mxu0 0
  %5446 = vmatpush2.bf16.msra.mxu0 %v4716
  %5447 = vmatprep.subr.bf16.mxu0 0
  %5448 = vmatpush2.bf16.msra.mxu0 %v4715
  %5449 = vmatprep.subr.bf16.mxu0 0
  %5450 = vmatpush2.bf16.msra.mxu0 %v4714
  %5451 = vmatprep.subr.bf16.mxu0 0
  %5452 = vmatpush2.bf16.msra.mxu0 %v4713
  %5453 = vmatprep.subr.bf16.mxu0 0
  %5454 = vmatpush2.bf16.msra.mxu0 %v4712
  %5455 = vmatprep.mubr.bf16.mxu0 %v5135
  %5456 = vmatmul.mubr.bf16.gmra.mxu0 %v5094
  %v5457 = vpop.f32.mrf.mxu0
  %v5458 = vadd.f32 %v4414, %v5457
  %v5459 = vpop.f32.mrf.mxu0
  %v5460 = vpop.f32.mrf.mxu0
  %v5461 = vpop.f32.mrf.mxu0
  %5462 = vdwg.mxu0
  %5463 = vmatprep.subr.bf16.mxu0 0
  %5464 = vmatpush1.bf16.msra.mxu0 %v4727
  %5465 = vmatprep.subr.bf16.mxu0 0
  %5466 = vmatpush1.bf16.msra.mxu0 %v4726
  %5467 = vmatprep.subr.bf16.mxu0 0
  %5468 = vmatpush1.bf16.msra.mxu0 %v4725
  %5469 = vmatprep.subr.bf16.mxu0 0
  %5470 = vmatpush1.bf16.msra.mxu0 %v4724
  %5471 = vmatprep.subr.bf16.mxu0 0
  %5472 = vmatpush1.bf16.msra.mxu0 %v4723
  %5473 = vmatprep.subr.bf16.mxu0 0
  %5474 = vmatpush1.bf16.msra.mxu0 %v4722
  %5475 = vmatprep.subr.bf16.mxu0 0
  %5476 = vmatpush1.bf16.msra.mxu0 %v4721
  %5477 = vmatprep.subr.bf16.mxu0 0
  %5478 = vmatpush1.bf16.msra.mxu0 %v4720
  %5479 = vmatprep.subr.bf16.mxu0 0
  %5480 = vmatpush2.bf16.msra.mxu0 %v4735
  %5481 = vmatprep.subr.bf16.mxu0 0
  %5482 = vmatpush2.bf16.msra.mxu0 %v4734
  %5483 = vmatprep.subr.bf16.mxu0 0
  %5484 = vmatpush2.bf16.msra.mxu0 %v4733
  %5485 = vmatprep.subr.bf16.mxu0 0
  %5486 = vmatpush2.bf16.msra.mxu0 %v4732
  %5487 = vmatprep.subr.bf16.mxu0 0
  %5488 = vmatpush2.bf16.msra.mxu0 %v4731
  %5489 = vmatprep.subr.bf16.mxu0 0
  %5490 = vmatpush2.bf16.msra.mxu0 %v4730
  %5491 = vmatprep.subr.bf16.mxu0 0
  %5492 = vmatpush2.bf16.msra.mxu0 %v4729
  %5493 = vmatprep.subr.bf16.mxu0 0
  %5494 = vmatpush2.bf16.msra.mxu0 %v4728
  %5495 = vmatprep.mubr.bf16.mxu0 %v5217
  %5496 = vmatmul.mubr.bf16.gmra.mxu0 %v5176
  %v5497 = vpop.f32.mrf.mxu0
  %v5498 = vadd.f32 %v5458, %v5497
  %v5499 = vpop.f32.mrf.mxu0
  %v5500 = vpop.f32.mrf.mxu0
  %v5501 = vpop.f32.mrf.mxu0
  %5502 = vdwg.mxu0
  %5503 = vmatprep.subr.bf16.mxu0 0
  %5504 = vmatpush1.bf16.msra.mxu0 %v4743
  %5505 = vmatprep.subr.bf16.mxu0 0
  %5506 = vmatpush1.bf16.msra.mxu0 %v4742
  %5507 = vmatprep.subr.bf16.mxu0 0
  %5508 = vmatpush1.bf16.msra.mxu0 %v4741
  %5509 = vmatprep.subr.bf16.mxu0 0
  %5510 = vmatpush1.bf16.msra.mxu0 %v4740
  %5511 = vmatprep.subr.bf16.mxu0 0
  %5512 = vmatpush1.bf16.msra.mxu0 %v4739
  %5513 = vmatprep.subr.bf16.mxu0 0
  %5514 = vmatpush1.bf16.msra.mxu0 %v4738
  %5515 = vmatprep.subr.bf16.mxu0 0
  %5516 = vmatpush1.bf16.msra.mxu0 %v4737
  %5517 = vmatprep.subr.bf16.mxu0 0
  %5518 = vmatpush1.bf16.msra.mxu0 %v4736
  %5519 = vmatprep.subr.bf16.mxu0 0
  %5520 = vmatpush2.bf16.msra.mxu0 %v4751
  %5521 = vmatprep.subr.bf16.mxu0 0
  %5522 = vmatpush2.bf16.msra.mxu0 %v4750
  %5523 = vmatprep.subr.bf16.mxu0 0
  %5524 = vmatpush2.bf16.msra.mxu0 %v4749
  %5525 = vmatprep.subr.bf16.mxu0 0
  %5526 = vmatpush2.bf16.msra.mxu0 %v4748
  %5527 = vmatprep.subr.bf16.mxu0 0
  %5528 = vmatpush2.bf16.msra.mxu0 %v4747
  %5529 = vmatprep.subr.bf16.mxu0 0
  %5530 = vmatpush2.bf16.msra.mxu0 %v4746
  %5531 = vmatprep.subr.bf16.mxu0 0
  %5532 = vmatpush2.bf16.msra.mxu0 %v4745
  %5533 = vmatprep.subr.bf16.mxu0 0
  %5534 = vmatpush2.bf16.msra.mxu0 %v4744
  %5535 = vmatprep.mubr.bf16.mxu0 %v5299
  %5536 = vmatmul.mubr.bf16.gmra.mxu0 %v5258
  %v5537 = vpop.f32.mrf.mxu0
  %v5538 = vadd.f32 %v5498, %v5537
  %v5539 = vpop.f32.mrf.mxu0
  %v5540 = vpop.f32.mrf.mxu0
  %v5541 = vpop.f32.mrf.mxu0
  %5542 = vdwg.mxu0
  %5543 = vmatprep.subr.bf16.mxu0 0
  %5544 = vmatpush1.bf16.msra.mxu0 %v4759
  %5545 = vmatprep.subr.bf16.mxu0 0
  %5546 = vmatpush1.bf16.msra.mxu0 %v4758
  %5547 = vmatprep.subr.bf16.mxu0 0
  %5548 = vmatpush1.bf16.msra.mxu0 %v4757
  %5549 = vmatprep.subr.bf16.mxu0 0
  %5550 = vmatpush1.bf16.msra.mxu0 %v4756
  %5551 = vmatprep.subr.bf16.mxu0 0
  %5552 = vmatpush1.bf16.msra.mxu0 %v4755
  %5553 = vmatprep.subr.bf16.mxu0 0
  %5554 = vmatpush1.bf16.msra.mxu0 %v4754
  %5555 = vmatprep.subr.bf16.mxu0 0
  %5556 = vmatpush1.bf16.msra.mxu0 %v4753
  %5557 = vmatprep.subr.bf16.mxu0 0
  %5558 = vmatpush1.bf16.msra.mxu0 %v4752
  %5559 = vmatprep.subr.bf16.mxu0 0
  %5560 = vmatpush2.bf16.msra.mxu0 %v4767
  %5561 = vmatprep.subr.bf16.mxu0 0
  %5562 = vmatpush2.bf16.msra.mxu0 %v4766
  %5563 = vmatprep.subr.bf16.mxu0 0
  %5564 = vmatpush2.bf16.msra.mxu0 %v4765
  %5565 = vmatprep.subr.bf16.mxu0 0
  %5566 = vmatpush2.bf16.msra.mxu0 %v4764
  %5567 = vmatprep.subr.bf16.mxu0 0
  %5568 = vmatpush2.bf16.msra.mxu0 %v4763
  %5569 = vmatprep.subr.bf16.mxu0 0
  %5570 = vmatpush2.bf16.msra.mxu0 %v4762
  %5571 = vmatprep.subr.bf16.mxu0 0
  %5572 = vmatpush2.bf16.msra.mxu0 %v4761
  %5573 = vmatprep.subr.bf16.mxu0 0
  %5574 = vmatpush2.bf16.msra.mxu0 %v4760
  %5575 = vmatprep.mubr.bf16.mxu0 %v5381
  %5576 = vmatmul.mubr.bf16.gmra.mxu0 %v5340
  %v5577 = vpop.f32.mrf.mxu0
  %v5578 = vadd.f32 %v5538, %v5577
  %v5579 = vpop.f32.mrf.mxu0
  %v5580 = vpop.f32.mrf.mxu0
  %v5581 = vpop.f32.mrf.mxu0
  %5582 = vdwg.mxu0
  %5583 = vmatprep.subr.bf16.mxu0 0
  %5584 = vmatpush1.bf16.msra.mxu0 %v4775
  %5585 = vmatprep.subr.bf16.mxu0 0
  %5586 = vmatpush1.bf16.msra.mxu0 %v4774
  %5587 = vmatprep.subr.bf16.mxu0 0
  %5588 = vmatpush1.bf16.msra.mxu0 %v4773
  %5589 = vmatprep.subr.bf16.mxu0 0
  %5590 = vmatpush1.bf16.msra.mxu0 %v4772
  %5591 = vmatprep.subr.bf16.mxu0 0
  %5592 = vmatpush1.bf16.msra.mxu0 %v4771
  %5593 = vmatprep.subr.bf16.mxu0 0
  %5594 = vmatpush1.bf16.msra.mxu0 %v4770
  %5595 = vmatprep.subr.bf16.mxu0 0
  %5596 = vmatpush1.bf16.msra.mxu0 %v4769
  %5597 = vmatprep.subr.bf16.mxu0 0
  %5598 = vmatpush1.bf16.msra.mxu0 %v4768
  %5599 = vmatprep.subr.bf16.mxu0 0
  %5600 = vmatpush2.bf16.msra.mxu0 0
  %5601 = vmatprep.subr.bf16.mxu0 0
  %5602 = vmatpush2.bf16.msra.mxu0 0
  %5603 = vmatprep.subr.bf16.mxu0 0
  %5604 = vmatpush2.bf16.msra.mxu0 0
  %5605 = vmatprep.subr.bf16.mxu0 0
  %5606 = vmatpush2.bf16.msra.mxu0 0
  %5607 = vmatprep.subr.bf16.mxu0 0
  %5608 = vmatpush2.bf16.msra.mxu0 0
  %5609 = vmatprep.subr.bf16.mxu0 0
  %5610 = vmatpush2.bf16.msra.mxu0 0
  %5611 = vmatprep.subr.bf16.mxu0 0
  %5612 = vmatpush2.bf16.msra.mxu0 0
  %5613 = vmatprep.subr.bf16.mxu0 0
  %5614 = vmatpush2.bf16.msra.mxu0 0
  %5615 = vmatprep.mubr.bf16.mxu0 0
  %5616 = vmatmul.mubr.bf16.gmra.mxu0 %v5422
  %v5617 = vpop.f32.mrf.mxu0
  %v5618 = vadd.f32 %v5578, %v5617
  %v5619 = vpop.f32.mrf.mxu0
  %v5620 = vpop.f32.mrf.mxu0
  %v5621 = vpop.f32.mrf.mxu0
  %5622 = vdwg.mxu0
  %v5623 = vld [vmem:[%s13] sm:$0x1]
  %v5624 = vld [vmem:[%s14] sm:$0x1]
  %v5625 = vmax.f32 %v5043, 0.0
  %v5626 = vmax.f32 %v5618, 0.0
  %v5627 = vsel %vm3745, %v5625, 0.0
  %v5628 = vrot.slane %v5627, 4
  %v5629 = vadd.f32 %v5627, %v5628
  %v5630 = vrot.slane %v5629, 2
  %v5631 = vadd.f32 %v5629, %v5630
  %v5632 = vrot.slane %v5631, 1
  %v5633 = vadd.f32 %v5631, %v5632
  %v5634 = vsel %vm3745, %v5626, 0.0
  %v5635 = vrot.slane %v5634, 4
  %v5636 = vadd.f32 %v5634, %v5635
  %v5637 = vrot.slane %v5636, 2
  %v5638 = vadd.f32 %v5636, %v5637
  %v5639 = vrot.slane %v5638, 1
  %v5640 = vadd.f32 %v5638, %v5639
  %v5641 = vadd.f32 %v5633, %v5640
  %v5642 = vmul.f32 %v5641, 0.125
  %v5643 = vsub.f32 %v5625, %v5642
  %v5644 = vsub.f32 %v5626, %v5642
  %v5645 = vmul.f32 %v5643, %v5643
  %v5646 = vsel %vm3745, %v5645, 0.0
  %v5647 = vrot.slane %v5646, 4
  %v5648 = vadd.f32 %v5646, %v5647
  %v5649 = vrot.slane %v5648, 2
  %v5650 = vadd.f32 %v5648, %v5649
  %v5651 = vrot.slane %v5650, 1
  %v5652 = vadd.f32 %v5650, %v5651
  %v5653 = vmul.f32 %v5644, %v5644
  %v5654 = vsel %vm3745, %v5653, 0.0
  %v5655 = vrot.slane %v5654, 4
  %v5656 = vadd.f32 %v5654, %v5655
  %v5657 = vrot.slane %v5656, 2
  %v5658 = vadd.f32 %v5656, %v5657
  %v5659 = vrot.slane %v5658, 1
  %v5660 = vadd.f32 %v5658, %v5659
  %v5661 = vadd.f32 %v5652, %v5660
  %v5662 = vmul.f32 %v5661, 0.125
  %v5663 = vadd.f32 %v5662, 1e-05
  %v5664 = vrsqrt.pop %v5663
  %v5665 = vmul.f32 %v5664, %v5623
  %v5666 = vlaneseq
  %v5667 = vshrl.u32 %v5666, 7
  %v5668 = vsub.s32 0, %v5667
  %v5669 = vrot.slane %v5665, %v5668
  %v5670 = vmul.f32 %v5643, %v5669
  %v5672 = vlaneseq
  %v5673 = vshrl.u32 %v5672, 7
  %v5674 = vsub.s32 0, %v5673
  %v5675 = vrot.slane %v5624, %v5674
  %v5677 = vadd.f32 %v5670, %v5675
  %v5678 = vmul.f32 %v5644, %v5669
  %v5679 = vadd.f32 %v5678, %v5675
  %v5680 = vld [vmem:[%s15] sm:$0xf]
  %v5681 = vld [vmem:[%s15 + $0x4] sm:$0xf]
  %v5682 = vld [vmem:[%s15 + $0x8] sm:$0xf]
  %v5683 = vld [vmem:[%s15 + $0xc] sm:$0xf]
  %v5684 = vld [vmem:[%s15 + $0x10] sm:$0xf]
  %v5685 = vld [vmem:[%s15 + $0x14] sm:$0xf]
  %v5686 = vld [vmem:[%s15 + $0x18] sm:$0xf]
  %v5687 = vld [vmem:[%s15 + $0x1c] sm:$0xf]
  %v5688 = vld [vmem:[%s15 + $0x20] sm:$0xf]
  %v5689 = vld [vmem:[%s15 + $0x24] sm:$0xf]
  %v5690 = vld [vmem:[%s15 + $0x28] sm:$0xf]
  %v5691 = vld [vmem:[%s15 + $0x2c] sm:$0xf]
  %v5692 = vld [vmem:[%s15 + $0x30] sm:$0xf]
  %v5693 = vld [vmem:[%s15 + $0x34] sm:$0xf]
  %v5694 = vld [vmem:[%s15 + $0x38] sm:$0xf]
  %v5695 = vld [vmem:[%s15 + $0x3c] sm:$0xf]
  %v5696 = vld [vmem:[%s16] sm:$0x1]
  %v5697 = vsel %vm3745, %v5677, 0.0
  %v5698 = vrot.slane %v5697, 4
  %v5699 = vadd.f32 %v5697, %v5698
  %v5700 = vrot.slane %v5699, 2
  %v5701 = vadd.f32 %v5699, %v5700
  %v5702 = vrot.slane %v5701, 1
  %v5703 = vadd.f32 %v5701, %v5702
  %v5704 = vrcp.pop 4.0
  %v5705 = vmul.f32 %v5703, %v5704
  %v5706 = vpack.c.bf16 %v5705, %v5705
  %v5723 = vunpack.c.l.b16 %v5680
  %v5724 = vunpack.c.l.b16 %v5681
  %v5725 = vunpack.c.l.b16 %v5682
  %v5726 = vunpack.c.l.b16 %v5683
  %v5727 = vunpack.c.l.b16 %v5684
  %v5728 = vunpack.c.l.b16 %v5685
  %v5729 = vunpack.c.l.b16 %v5686
  %v5730 = vunpack.c.l.b16 %v5687
  %v5731 = vunpack.c.l.b16 %v5688
  %v5732 = vunpack.c.l.b16 %v5689
  %v5733 = vunpack.c.l.b16 %v5690
  %v5734 = vunpack.c.l.b16 %v5691
  %v5735 = vunpack.c.l.b16 %v5692
  %v5736 = vunpack.c.l.b16 %v5693
  %v5737 = vunpack.c.l.b16 %v5694
  %v5738 = vunpack.c.l.b16 %v5695
  %v5739 = vpack.c.b16 %v5724, %v5723
  %v5740 = vpack.c.b16 %v5726, %v5725
  %v5741 = vpack.c.b16 %v5728, %v5727
  %v5742 = vpack.c.b16 %v5730, %v5729
  %v5743 = vpack.c.b16 %v5732, %v5731
  %v5744 = vpack.c.b16 %v5734, %v5733
  %v5745 = vpack.c.b16 %v5736, %v5735
  %v5746 = vpack.c.b16 %v5738, %v5737
  %5755 = vmatprep.subr.bf16.mxu0 0
  %5756 = vmatpush1.bf16.msra.mxu0 %v5746
  %5757 = vmatprep.subr.bf16.mxu0 0
  %5758 = vmatpush1.bf16.msra.mxu0 %v5745
  %5759 = vmatprep.subr.bf16.mxu0 0
  %5760 = vmatpush1.bf16.msra.mxu0 %v5744
  %5761 = vmatprep.subr.bf16.mxu0 0
  %5762 = vmatpush1.bf16.msra.mxu0 %v5743
  %5763 = vmatprep.subr.bf16.mxu0 0
  %5764 = vmatpush1.bf16.msra.mxu0 %v5742
  %5765 = vmatprep.subr.bf16.mxu0 0
  %5766 = vmatpush1.bf16.msra.mxu0 %v5741
  %5767 = vmatprep.subr.bf16.mxu0 0
  %5768 = vmatpush1.bf16.msra.mxu0 %v5740
  %5769 = vmatprep.subr.bf16.mxu0 0
  %5770 = vmatpush1.bf16.msra.mxu0 %v5739
  %5771 = vmatprep.subr.bf16.mxu0 0
  %5772 = vmatpush2.bf16.msra.mxu0 0
  %5773 = vmatprep.subr.bf16.mxu0 0
  %5774 = vmatpush2.bf16.msra.mxu0 0
  %5775 = vmatprep.subr.bf16.mxu0 0
  %5776 = vmatpush2.bf16.msra.mxu0 0
  %5777 = vmatprep.subr.bf16.mxu0 0
  %5778 = vmatpush2.bf16.msra.mxu0 0
  %5779 = vmatprep.subr.bf16.mxu0 0
  %5780 = vmatpush2.bf16.msra.mxu0 0
  %5781 = vmatprep.subr.bf16.mxu0 0
  %5782 = vmatpush2.bf16.msra.mxu0 0
  %5783 = vmatprep.subr.bf16.mxu0 0
  %5784 = vmatpush2.bf16.msra.mxu0 0
  %5785 = vmatprep.subr.bf16.mxu0 0
  %5786 = vmatpush2.bf16.msra.mxu0 0
  %5787 = vmatprep.mubr.bf16.mxu0 0
  %5788 = vmatmul.mubr.bf16.gmra.mxu0 %v5706
  %v5789 = vpop.f32.mrf.mxu0
  %v5790 = vadd.f32 %v5696, %v5789
  %v5791 = vpop.f32.mrf.mxu0
  %v5792 = vpop.f32.mrf.mxu0
  %v5793 = vpop.f32.mrf.mxu0
  %5794 = vdwg.mxu0
  %5795 = vst [vmem:[%s17] sm:$0x1] %v5790
  %v5796 = vsel %vm3745, %v5679, 0.0
  %v5797 = vrot.slane %v5796, 4
  %v5798 = vadd.f32 %v5796, %v5797
  %v5799 = vrot.slane %v5798, 2
  %v5800 = vadd.f32 %v5798, %v5799
  %v5801 = vrot.slane %v5800, 1
  %v5802 = vadd.f32 %v5800, %v5801
  %v5803 = vmul.f32 %v5802, %v5704
  %v5804 = vpack.c.bf16 %v5803, %v5803
  %5805 = vmatprep.subr.bf16.mxu0 0
  %5806 = vmatpush1.bf16.msra.mxu0 %v5746
  %5807 = vmatprep.subr.bf16.mxu0 0
  %5808 = vmatpush1.bf16.msra.mxu0 %v5745
  %5809 = vmatprep.subr.bf16.mxu0 0
  %5810 = vmatpush1.bf16.msra.mxu0 %v5744
  %5811 = vmatprep.subr.bf16.mxu0 0
  %5812 = vmatpush1.bf16.msra.mxu0 %v5743
  %5813 = vmatprep.subr.bf16.mxu0 0
  %5814 = vmatpush1.bf16.msra.mxu0 %v5742
  %5815 = vmatprep.subr.bf16.mxu0 0
  %5816 = vmatpush1.bf16.msra.mxu0 %v5741
  %5817 = vmatprep.subr.bf16.mxu0 0
  %5818 = vmatpush1.bf16.msra.mxu0 %v5740
  %5819 = vmatprep.subr.bf16.mxu0 0
  %5820 = vmatpush1.bf16.msra.mxu0 %v5739
  %5821 = vmatprep.subr.bf16.mxu0 0
  %5822 = vmatpush2.bf16.msra.mxu0 0
  %5823 = vmatprep.subr.bf16.mxu0 0
  %5824 = vmatpush2.bf16.msra.mxu0 0
  %5825 = vmatprep.subr.bf16.mxu0 0
  %5826 = vmatpush2.bf16.msra.mxu0 0
  %5827 = vmatprep.subr.bf16.mxu0 0
  %5828 = vmatpush2.bf16.msra.mxu0 0
  %5829 = vmatprep.subr.bf16.mxu0 0
  %5830 = vmatpush2.bf16.msra.mxu0 0
  %5831 = vmatprep.subr.bf16.mxu0 0
  %5832 = vmatpush2.bf16.msra.mxu0 0
  %5833 = vmatprep.subr.bf16.mxu0 0
  %5834 = vmatpush2.bf16.msra.mxu0 0
  %5835 = vmatprep.subr.bf16.mxu0 0
  %5836 = vmatpush2.bf16.msra.mxu0 0
  %5837 = vmatprep.mubr.bf16.mxu0 0
  %5838 = vmatmul.mubr.bf16.gmra.mxu0 %v5804
  %v5839 = vpop.f32.mrf.mxu0
  %v5840 = vadd.f32 %v5696, %v5839
  %v5841 = vpop.f32.mrf.mxu0
  %v5842 = vpop.f32.mrf.mxu0
  %v5843 = vpop.f32.mrf.mxu0
  %5844 = vdwg.mxu0
  %s5845 = scalar_lea.vmem %s17, 1
  %5846 = vst [vmem:[%s5845] sm:$0x1] %v5840
  // Predicated region
  $region70: #{simple_cnn_forward.1} parent=0 // pred_check
    _
  $region71: #{simple_cnn_forward.1} parent=0 // pred_check_branch
    %5848 = sbr.rel (0) target = $region73
  $region72: #{simple_cnn_forward.1} parent=0 // pred_region
    _
  $region73: #{simple_cnn_forward.1} parent=0 // pred_fallthru
    _
  // Predicated region
  $region74: #{simple_cnn_forward.1} parent=0 // pred_check
    _
  $region75: #{simple_cnn_forward.1} parent=0 // pred_check_branch
    %5850 = sbr.rel (0) target = $region77
  $region76: #{simple_cnn_forward.1} parent=0 // pred_region
    _
  $region77: #{simple_cnn_forward.1} parent=0 // pred_fallthru
    _

</llo_original>
